<compile_context>
chip_gen: v7x
topology: tpu7x:2x2x1
jax: 0.10.0
libtpu: 0.0.40
codegen_flags: <defaults>
</compile_context>

<pallas_src>
import jax
import jax.numpy as jnp
from jax import lax
from jax.experimental import pallas as pl
from jax.experimental.pallas import tpu as pltpu

# Input length implied by fc1 = Linear(128*29, 64):
#   246 -conv3-> 244 -pool-> 122 -conv3-> 120 -pool-> 60 -conv3-> 58 -pool-> 29
L_IN, C_IN = 246, 64
L1, P1 = 244, 122
L2, P2 = 120, 60
L3, P3 = 58, 29


# ---------------------------------------------------------------------------
# Fused kernel: (conv+relu+pool) x3  ->  fc1 -> fc2, one batch tile per step.
# ---------------------------------------------------------------------------
def fused_kernel(x_ref, w1_ref, b1_ref, w2_ref, b2_ref, w3_ref, b3_ref,
                 fw1_ref, fb1_ref, fw2_ref, fb2_ref,
                 o_ref,
                 s1, p1, s2, p2, s3, feat):
    f32 = jnp.float32
    bt = x_ref.shape[0]                       # batch-tile size (static)

    def per_sample(s, carry):
        # conv1 + relu : (246, 64) -> (244, 32)
        y = (jnp.dot(x_ref[s, pl.ds(0, L1), :], w1_ref[0], preferred_element_type=f32)
             + jnp.dot(x_ref[s, pl.ds(1, L1), :], w1_ref[1], preferred_element_type=f32)
             + jnp.dot(x_ref[s, pl.ds(2, L1), :], w1_ref[2], preferred_element_type=f32)
             + b1_ref[...])
        s1[...] = jnp.maximum(y, 0.0)
        # maxpool(2): (244, 32) -> (122, 32)
        p1[...] = jnp.maximum(s1[pl.ds(0, P1, stride=2), :],
                              s1[pl.ds(1, P1, stride=2), :])

        # conv2 + relu : (122, 32) -> (120, 64)
        y = (jnp.dot(p1[pl.ds(0, L2), :], w2_ref[0], preferred_element_type=f32)
             + jnp.dot(p1[pl.ds(1, L2), :], w2_ref[1], preferred_element_type=f32)
             + jnp.dot(p1[pl.ds(2, L2), :], w2_ref[2], preferred_element_type=f32)
             + b2_ref[...])
        s2[...] = jnp.maximum(y, 0.0)
        # maxpool(2): (120, 64) -> (60, 64)
        p2[...] = jnp.maximum(s2[pl.ds(0, P2, stride=2), :],
                              s2[pl.ds(1, P2, stride=2), :])

        # conv3 + relu : (60, 64) -> (58, 128)
        y = (jnp.dot(p2[pl.ds(0, L3), :], w3_ref[0], preferred_element_type=f32)
             + jnp.dot(p2[pl.ds(1, L3), :], w3_ref[1], preferred_element_type=f32)
             + jnp.dot(p2[pl.ds(2, L3), :], w3_ref[2], preferred_element_type=f32)
             + b3_ref[...])
        s3[...] = jnp.maximum(y, 0.0)
        # maxpool(2): (58, 128) -> (29, 128), stash per-sample feature in VMEM
        feat[s] = jnp.maximum(s3[pl.ds(0, P3, stride=2), :],
                              s3[pl.ds(1, P3, stride=2), :])
        return carry

    lax.fori_loop(0, bt, per_sample, 0)

    # fc1 for the whole tile: contract (bt, 29, 128) with fw1 (29, 128, 64).
    # The PyTorch flatten order (c*29+w) was folded into fw1 by the wrapper,
    # so no transpose/flatten of the feature map is needed here.
    acc = jnp.zeros((bt, 64), f32) + fb1_ref[...]
    for w in range(P3):                       # static unroll, 29 small matmuls
        acc = acc + jnp.dot(feat[:, w, :], fw1_ref[w],
                            preferred_element_type=f32)

    # fc2 (no activation between fc1 and fc2, matching the module)
    o_ref[...] = (jnp.dot(acc, fw2_ref[...], preferred_element_type=f32)
                  + fb2_ref[...])


# ---------------------------------------------------------------------------
# Wrapper
# ---------------------------------------------------------------------------
def frequency_net_forward(x_ncw, params, block_batch=8):
    """x_ncw: (B, 64, 246) float32 (PyTorch NCW). Returns (B, 64)."""
    B = x_ncw.shape[0]
    bt = max(1, min(block_batch, B))
    n_blk = -(-B // bt)
    Bp = n_blk * bt

    # TODO(synk): the NCW->NWC transpose could be done in-kernel on the XLU to
    # save one HBM pass over the input; kept in the wrapper for simplicity.
    x_nwc = jnp.transpose(x_ncw, (0, 2, 1)).astype(jnp.float32)   # (B, 246, 64)
    if Bp != B:
        x_nwc = jnp.pad(x_nwc, ((0, Bp - B), (0, 0), (0, 0)))

    # Conv weights: PyTorch (Cout, Cin, K) -> kernel layout (K, Cin, Cout)
    w1k = jnp.transpose(params["w1"], (2, 1, 0))                  # (3, 64, 32)
    w2k = jnp.transpose(params["w2"], (2, 1, 0))                  # (3, 32, 64)
    w3k = jnp.transpose(params["w3"], (2, 1, 0))                  # (3, 64, 128)
    b1 = params["b1"].reshape(1, 32)
    b2 = params["b2"].reshape(1, 64)
    b3 = params["b3"].reshape(1, 128)

    # fc1 weight: torch layout (64, 128*29) with column index c*29 + w.
    # Re-pack once to (29, 128, 64) so it directly matches the NWC feature
    # layout (w on rows, c on lanes) -> no transpose/flatten of the features.
    fw1 = jnp.transpose(params["fc1_w"].reshape(64, 128, P3), (2, 1, 0))
    fb1 = params["fc1_b"].reshape(1, 64)
    fw2 = params["fc2_w"].T                                       # (64, 64)
    fb2 = params["fc2_b"].reshape(1, 64)

    out = pl.pallas_call(
        fused_kernel,
        out_shape=jax.ShapeDtypeStruct((Bp, 64), jnp.float32),
        grid=(n_blk,),
        in_specs=[
            pl.BlockSpec((bt, L_IN, C_IN), lambda i: (i, 0, 0)),
            pl.BlockSpec((3, 64, 32), lambda i: (0, 0, 0)),
            pl.BlockSpec((1, 32), lambda i: (0, 0)),
            pl.BlockSpec((3, 32, 64), lambda i: (0, 0, 0)),
            pl.BlockSpec((1, 64), lambda i: (0, 0)),
            pl.BlockSpec((3, 64, 128), lambda i: (0, 0, 0)),
            pl.BlockSpec((1, 128), lambda i: (0, 0)),
            pl.BlockSpec((P3, 128, 64), lambda i: (0, 0, 0)),
            pl.BlockSpec((1, 64), lambda i: (0, 0)),
            pl.BlockSpec((64, 64), lambda i: (0, 0)),
            pl.BlockSpec((1, 64), lambda i: (0, 0)),
        ],
        out_specs=pl.BlockSpec((bt, 64), lambda i: (i, 0)),
        scratch_shapes=[
            pltpu.VMEM((L1, 32), jnp.float32),    # conv1 pre-pool
            pltpu.VMEM((P1, 32), jnp.float32),    # pool1
            pltpu.VMEM((L2, 64), jnp.float32),    # conv2 pre-pool
            pltpu.VMEM((P2, 64), jnp.float32),    # pool2
            pltpu.VMEM((L3, 128), jnp.float32),   # conv3 pre-pool
            pltpu.VMEM((bt, P3, 128), jnp.float32),  # per-tile features
        ],
        compiler_params=pltpu.CompilerParams(
            dimension_semantics=("parallel",)),
    )(x_nwc, w1k, b1, w2k, b2, w3k, b3, fw1, fb1, fw2, fb2)
    return out[:B]


# ---------------------------------------------------------------------------
# Pure-JAX reference (same math, PyTorch layout) for a correctness check.
# ---------------------------------------------------------------------------
def reference_forward(x_ncw, p):
    hp = jax.lax.Precision.HIGHEST

    def conv1d(x, w, b):
        Cout, _, K = w.shape
        Lout = x.shape[-1] - K + 1
        out = jnp.zeros((x.shape[0], Cout, Lout), jnp.float32)
        for k in range(K):
            out = out + jnp.einsum("bcl,oc->bol", x[:, :, k:k + Lout],
                                   w[:, :, k], precision=hp)
        return out + b[None, :, None]

    def pool(x):
        B, C, L = x.shape
        return x[:, :, : (L // 2) * 2].reshape(B, C, L // 2, 2).max(axis=-1)

    y = pool(jax.nn.relu(conv1d(x_ncw, p["w1"], p["b1"])))
    y = pool(jax.nn.relu(conv1d(y, p["w2"], p["b2"])))
    y = pool(jax.nn.relu(conv1d(y, p["w3"], p["b3"])))
    yf = y.reshape(y.shape[0], -1)
    h = jnp.dot(yf, p["fc1_w"].T, precision=hp) + p["fc1_b"]
    return jnp.dot(h, p["fc2_w"].T, precision=hp) + p["fc2_b"]


def init_params(key):
    ks = jax.random.split(key, 10)

    def uinit(k, shape, fan_in):
        bound = 1.0 / (fan_in ** 0.5)
        return jax.random.uniform(k, shape, jnp.float32, -bound, bound)

    return {
        "w1": uinit(ks[0], (32, 64, 3), 64 * 3),
        "b1": uinit(ks[1], (32,), 64 * 3),
        "w2": uinit(ks[2], (64, 32, 3), 32 * 3),
        "b2": uinit(ks[3], (64,), 32 * 3),
        "w3": uinit(ks[4], (128, 64, 3), 64 * 3),
        "b3": uinit(ks[5], (128,), 64 * 3),
        "fc1_w": uinit(ks[6], (64, 128 * 29), 128 * 29),
        "fc1_b": uinit(ks[7], (64,), 128 * 29),
        "fc2_w": uinit(ks[8], (64, 64), 64),
        "fc2_b": uinit(ks[9], (64,), 64),
    }


if __name__ == "__main__":
    key = jax.random.PRNGKey(0)
    pkey, xkey, xkey2 = jax.random.split(key, 3)
    params = init_params(pkey)

    # Small-shape test: batch=2, length 246 dictated by fc1 = Linear(128*29, 64).
    x = jax.random.normal(xkey, (2, C_IN, L_IN), jnp.float32)
    out = jax.block_until_ready(frequency_net_forward(x, params))
    assert out.shape == (2, 64), out.shape
    ref = reference_forward(x, params)
    assert jnp.allclose(out, ref, atol=3e-2, rtol=3e-2), (
        float(jnp.max(jnp.abs(out - ref))))

    # Exercise the batched path: grid > 1 and batch padding to a tile multiple.
    xb = jax.random.normal(xkey2, (10, C_IN, L_IN), jnp.float32)
    outb = jax.block_until_ready(frequency_net_forward(xb, params, block_batch=8))
    assert outb.shape == (10, 64), outb.shape
    refb = reference_forward(xb, params)
    assert jnp.allclose(outb, refb, atol=3e-2, rtol=3e-2), (
        float(jnp.max(jnp.abs(outb - refb))))

    print("KERNEL_OK")
</pallas_src>

<mosaic_0001>
module attributes {stable_mosaic.version = 11 : i64} {
  func.func @fused_kernel(%arg0: i32, %arg1: memref<2x246x64xf32, #tpu.memory_space<vmem>>, %arg2: memref<3x64x32xf32, #tpu.memory_space<vmem>>, %arg3: memref<1x32xf32, #tpu.memory_space<vmem>>, %arg4: memref<3x32x64xf32, #tpu.memory_space<vmem>>, %arg5: memref<1x64xf32, #tpu.memory_space<vmem>>, %arg6: memref<3x64x128xf32, #tpu.memory_space<vmem>>, %arg7: memref<1x128xf32, #tpu.memory_space<vmem>>, %arg8: memref<29x128x64xf32, #tpu.memory_space<vmem>>, %arg9: memref<1x64xf32, #tpu.memory_space<vmem>>, %arg10: memref<64x64xf32, #tpu.memory_space<vmem>>, %arg11: memref<1x64xf32, #tpu.memory_space<vmem>>, %arg12: memref<2x64xf32, #tpu.memory_space<vmem>>, %arg13: memref<244x32xf32, #tpu.memory_space<vmem>>, %arg14: memref<122x32xf32, #tpu.memory_space<vmem>>, %arg15: memref<120x64xf32, #tpu.memory_space<vmem>>, %arg16: memref<60x64xf32, #tpu.memory_space<vmem>>, %arg17: memref<58x128xf32, #tpu.memory_space<vmem>>, %arg18: memref<2x29x128xf32, #tpu.memory_space<vmem>>) attributes {dimension_semantics = [#tpu.dimension_semantics<parallel>], iteration_bounds = array<i64: 1>, scalar_prefetch = 0 : i64, scratch_operands = 6 : i64, tpu.core_type = #tpu.core_type<tc>, window_params = [{transform_indices = @transform_0, window_bounds = array<i64: 2, 246, 64>}, {pipeline_mode = #tpu.pipeline_mode<synchronous>, transform_indices = @transform_1, window_bounds = array<i64: 3, 64, 32>}, {pipeline_mode = #tpu.pipeline_mode<synchronous>, transform_indices = @transform_2, window_bounds = array<i64: 1, 32>}, {pipeline_mode = #tpu.pipeline_mode<synchronous>, transform_indices = @transform_3, window_bounds = array<i64: 3, 32, 64>}, {pipeline_mode = #tpu.pipeline_mode<synchronous>, transform_indices = @transform_4, window_bounds = array<i64: 1, 64>}, {pipeline_mode = #tpu.pipeline_mode<synchronous>, transform_indices = @transform_5, window_bounds = array<i64: 3, 64, 128>}, {pipeline_mode = #tpu.pipeline_mode<synchronous>, transform_indices = @transform_6, window_bounds = array<i64: 1, 128>}, {pipeline_mode = #tpu.pipeline_mode<synchronous>, transform_indices = @transform_7, window_bounds = array<i64: 29, 128, 64>}, {pipeline_mode = #tpu.pipeline_mode<synchronous>, transform_indices = @transform_8, window_bounds = array<i64: 1, 64>}, {pipeline_mode = #tpu.pipeline_mode<synchronous>, transform_indices = @transform_9, window_bounds = array<i64: 64, 64>}, {pipeline_mode = #tpu.pipeline_mode<synchronous>, transform_indices = @transform_10, window_bounds = array<i64: 1, 64>}, {transform_indices = @transform_11, window_bounds = array<i64: 2, 64>}]} {
    %c0_i32 = arith.constant 0 : i32
    %c2_i32 = arith.constant 2 : i32
    %0 = arith.addi %c0_i32, %c2_i32 : i32
    %c1_i32 = arith.constant 1 : i32
    scf.for %arg19 = %c0_i32 to %0 step %c1_i32  : i32 {
      %185 = arith.index_cast %arg19 : i32 to index
      %c0_184 = arith.constant 0 : index
      %c0_185 = arith.constant 0 : index
      %186 = vector.load %arg1[%185, %c0_184, %c0_185] : memref<2x246x64xf32, #tpu.memory_space<vmem>>, vector<1x244x64xf32>
      %187 = vector.shape_cast %186 : vector<1x244x64xf32> to vector<244x64xf32>
      %c0_186 = arith.constant 0 : index
      %c0_187 = arith.constant 0 : index
      %c0_188 = arith.constant 0 : index
      %188 = vector.load %arg2[%c0_186, %c0_187, %c0_188] : memref<3x64x32xf32, #tpu.memory_space<vmem>>, vector<1x64x32xf32>
      %189 = vector.shape_cast %188 : vector<1x64x32xf32> to vector<64x32xf32>
      %cst_189 = arith.constant dense<0.000000e+00> : vector<244x32xf32>
      %190 = tpu.matmul %187, %189, %cst_189 {dimension_numbers = #tpu.dot_dimension_numbers<[1], [0], [0], [1], [0, 0, 1, 1], [], []>} : vector<244x64xf32>, vector<64x32xf32>, vector<244x32xf32> -> vector<244x32xf32>
      %191 = arith.index_cast %arg19 : i32 to index
      %c1_190 = arith.constant 1 : index
      %c0_191 = arith.constant 0 : index
      %192 = vector.load %arg1[%191, %c1_190, %c0_191] : memref<2x246x64xf32, #tpu.memory_space<vmem>>, vector<1x244x64xf32>
      %193 = vector.shape_cast %192 : vector<1x244x64xf32> to vector<244x64xf32>
      %c1_192 = arith.constant 1 : index
      %c0_193 = arith.constant 0 : index
      %c0_194 = arith.constant 0 : index
      %194 = vector.load %arg2[%c1_192, %c0_193, %c0_194] : memref<3x64x32xf32, #tpu.memory_space<vmem>>, vector<1x64x32xf32>
      %195 = vector.shape_cast %194 : vector<1x64x32xf32> to vector<64x32xf32>
      %cst_195 = arith.constant dense<0.000000e+00> : vector<244x32xf32>
      %196 = tpu.matmul %193, %195, %cst_195 {dimension_numbers = #tpu.dot_dimension_numbers<[1], [0], [0], [1], [0, 0, 1, 1], [], []>} : vector<244x64xf32>, vector<64x32xf32>, vector<244x32xf32> -> vector<244x32xf32>
      %197 = arith.addf %190, %196 : vector<244x32xf32>
      %198 = arith.index_cast %arg19 : i32 to index
      %c2_196 = arith.constant 2 : index
      %c0_197 = arith.constant 0 : index
      %199 = vector.load %arg1[%198, %c2_196, %c0_197] : memref<2x246x64xf32, #tpu.memory_space<vmem>>, vector<1x244x64xf32>
      %200 = vector.shape_cast %199 : vector<1x244x64xf32> to vector<244x64xf32>
      %c2_198 = arith.constant 2 : index
      %c0_199 = arith.constant 0 : index
      %c0_200 = arith.constant 0 : index
      %201 = vector.load %arg2[%c2_198, %c0_199, %c0_200] : memref<3x64x32xf32, #tpu.memory_space<vmem>>, vector<1x64x32xf32>
      %202 = vector.shape_cast %201 : vector<1x64x32xf32> to vector<64x32xf32>
      %cst_201 = arith.constant dense<0.000000e+00> : vector<244x32xf32>
      %203 = tpu.matmul %200, %202, %cst_201 {dimension_numbers = #tpu.dot_dimension_numbers<[1], [0], [0], [1], [0, 0, 1, 1], [], []>} : vector<244x64xf32>, vector<64x32xf32>, vector<244x32xf32> -> vector<244x32xf32>
      %204 = arith.addf %197, %203 : vector<244x32xf32>
      %c0_202 = arith.constant 0 : index
      %c0_203 = arith.constant 0 : index
      %205 = vector.load %arg3[%c0_202, %c0_203] : memref<1x32xf32, #tpu.memory_space<vmem>>, vector<1x32xf32>
      %206 = vector.broadcast %205 : vector<1x32xf32> to vector<244x32xf32>
      %207 = arith.addf %204, %206 : vector<244x32xf32>
      %cst_204 = arith.constant 0.000000e+00 : f32
      %208 = vector.broadcast %cst_204 : f32 to vector<244x32xf32>
      %209 = arith.maximumf %207, %208 : vector<244x32xf32>
      %c0_205 = arith.constant 0 : index
      %c0_206 = arith.constant 0 : index
      %210 = vector.load %arg13[%c0_205, %c0_206] : memref<244x32xf32, #tpu.memory_space<vmem>>, vector<244x32xf32>
      tpu.vector_store %arg13[%c0_205, %c0_206], %209 {strides = array<i32>} : memref<244x32xf32, #tpu.memory_space<vmem>>, vector<244x32xf32>,
      %c0_207 = arith.constant 0 : index
      %c0_208 = arith.constant 0 : index
      %211 = tpu.strided_load %arg13[%c0_207, %c0_208] {strides = array<i32: 2, 1>} : memref<244x32xf32, #tpu.memory_space<vmem>>, vector<122x32xf32>
      %c1_209 = arith.constant 1 : index
      %c0_210 = arith.constant 0 : index
      %212 = tpu.strided_load %arg13[%c1_209, %c0_210] {strides = array<i32: 2, 1>} : memref<244x32xf32, #tpu.memory_space<vmem>>, vector<122x32xf32>
      %213 = arith.maximumf %211, %212 : vector<122x32xf32>
      %c0_211 = arith.constant 0 : index
      %c0_212 = arith.constant 0 : index
      %214 = vector.load %arg14[%c0_211, %c0_212] : memref<122x32xf32, #tpu.memory_space<vmem>>, vector<122x32xf32>
      tpu.vector_store %arg14[%c0_211, %c0_212], %213 {strides = array<i32>} : memref<122x32xf32, #tpu.memory_space<vmem>>, vector<122x32xf32>,
      %c0_213 = arith.constant 0 : index
      %c0_214 = arith.constant 0 : index
      %215 = vector.load %arg14[%c0_213, %c0_214] : memref<122x32xf32, #tpu.memory_space<vmem>>, vector<120x32xf32>
      %c0_215 = arith.constant 0 : index
      %c0_216 = arith.constant 0 : index
      %c0_217 = arith.constant 0 : index
      %216 = vector.load %arg4[%c0_215, %c0_216, %c0_217] : memref<3x32x64xf32, #tpu.memory_space<vmem>>, vector<1x32x64xf32>
      %217 = vector.shape_cast %216 : vector<1x32x64xf32> to vector<32x64xf32>
      %cst_218 = arith.constant dense<0.000000e+00> : vector<120x64xf32>
      %218 = tpu.matmul %215, %217, %cst_218 {dimension_numbers = #tpu.dot_dimension_numbers<[1], [0], [0], [1], [0, 0, 1, 1], [], []>} : vector<120x32xf32>, vector<32x64xf32>, vector<120x64xf32> -> vector<120x64xf32>
      %c1_219 = arith.constant 1 : index
      %c0_220 = arith.constant 0 : index
      %219 = vector.load %arg14[%c1_219, %c0_220] : memref<122x32xf32, #tpu.memory_space<vmem>>, vector<120x32xf32>
      %c1_221 = arith.constant 1 : index
      %c0_222 = arith.constant 0 : index
      %c0_223 = arith.constant 0 : index
      %220 = vector.load %arg4[%c1_221, %c0_222, %c0_223] : memref<3x32x64xf32, #tpu.memory_space<vmem>>, vector<1x32x64xf32>
      %221 = vector.shape_cast %220 : vector<1x32x64xf32> to vector<32x64xf32>
      %cst_224 = arith.constant dense<0.000000e+00> : vector<120x64xf32>
      %222 = tpu.matmul %219, %221, %cst_224 {dimension_numbers = #tpu.dot_dimension_numbers<[1], [0], [0], [1], [0, 0, 1, 1], [], []>} : vector<120x32xf32>, vector<32x64xf32>, vector<120x64xf32> -> vector<120x64xf32>
      %223 = arith.addf %218, %222 : vector<120x64xf32>
      %c2_225 = arith.constant 2 : index
      %c0_226 = arith.constant 0 : index
      %224 = vector.load %arg14[%c2_225, %c0_226] : memref<122x32xf32, #tpu.memory_space<vmem>>, vector<120x32xf32>
      %c2_227 = arith.constant 2 : index
      %c0_228 = arith.constant 0 : index
      %c0_229 = arith.constant 0 : index
      %225 = vector.load %arg4[%c2_227, %c0_228, %c0_229] : memref<3x32x64xf32, #tpu.memory_space<vmem>>, vector<1x32x64xf32>
      %226 = vector.shape_cast %225 : vector<1x32x64xf32> to vector<32x64xf32>
      %cst_230 = arith.constant dense<0.000000e+00> : vector<120x64xf32>
      %227 = tpu.matmul %224, %226, %cst_230 {dimension_numbers = #tpu.dot_dimension_numbers<[1], [0], [0], [1], [0, 0, 1, 1], [], []>} : vector<120x32xf32>, vector<32x64xf32>, vector<120x64xf32> -> vector<120x64xf32>
      %228 = arith.addf %223, %227 : vector<120x64xf32>
      %c0_231 = arith.constant 0 : index
      %c0_232 = arith.constant 0 : index
      %229 = vector.load %arg5[%c0_231, %c0_232] : memref<1x64xf32, #tpu.memory_space<vmem>>, vector<1x64xf32>
      %230 = vector.broadcast %229 : vector<1x64xf32> to vector<120x64xf32>
      %231 = arith.addf %228, %230 : vector<120x64xf32>
      %cst_233 = arith.constant 0.000000e+00 : f32
      %232 = vector.broadcast %cst_233 : f32 to vector<120x64xf32>
      %233 = arith.maximumf %231, %232 : vector<120x64xf32>
      %c0_234 = arith.constant 0 : index
      %c0_235 = arith.constant 0 : index
      %234 = vector.load %arg15[%c0_234, %c0_235] : memref<120x64xf32, #tpu.memory_space<vmem>>, vector<120x64xf32>
      tpu.vector_store %arg15[%c0_234, %c0_235], %233 {strides = array<i32>} : memref<120x64xf32, #tpu.memory_space<vmem>>, vector<120x64xf32>,
      %c0_236 = arith.constant 0 : index
      %c0_237 = arith.constant 0 : index
      %235 = tpu.strided_load %arg15[%c0_236, %c0_237] {strides = array<i32: 2, 1>} : memref<120x64xf32, #tpu.memory_space<vmem>>, vector<60x64xf32>
      %c1_238 = arith.constant 1 : index
      %c0_239 = arith.constant 0 : index
      %236 = tpu.strided_load %arg15[%c1_238, %c0_239] {strides = array<i32: 2, 1>} : memref<120x64xf32, #tpu.memory_space<vmem>>, vector<60x64xf32>
      %237 = arith.maximumf %235, %236 : vector<60x64xf32>
      %c0_240 = arith.constant 0 : index
      %c0_241 = arith.constant 0 : index
      %238 = vector.load %arg16[%c0_240, %c0_241] : memref<60x64xf32, #tpu.memory_space<vmem>>, vector<60x64xf32>
      tpu.vector_store %arg16[%c0_240, %c0_241], %237 {strides = array<i32>} : memref<60x64xf32, #tpu.memory_space<vmem>>, vector<60x64xf32>,
      %c0_242 = arith.constant 0 : index
      %c0_243 = arith.constant 0 : index
      %239 = vector.load %arg16[%c0_242, %c0_243] : memref<60x64xf32, #tpu.memory_space<vmem>>, vector<58x64xf32>
      %c0_244 = arith.constant 0 : index
      %c0_245 = arith.constant 0 : index
      %c0_246 = arith.constant 0 : index
      %240 = vector.load %arg6[%c0_244, %c0_245, %c0_246] : memref<3x64x128xf32, #tpu.memory_space<vmem>>, vector<1x64x128xf32>
      %241 = vector.shape_cast %240 : vector<1x64x128xf32> to vector<64x128xf32>
      %cst_247 = arith.constant dense<0.000000e+00> : vector<58x128xf32>
      %242 = tpu.matmul %239, %241, %cst_247 {dimension_numbers = #tpu.dot_dimension_numbers<[1], [0], [0], [1], [0, 0, 1, 1], [], []>} : vector<58x64xf32>, vector<64x128xf32>, vector<58x128xf32> -> vector<58x128xf32>
      %c1_248 = arith.constant 1 : index
      %c0_249 = arith.constant 0 : index
      %243 = vector.load %arg16[%c1_248, %c0_249] : memref<60x64xf32, #tpu.memory_space<vmem>>, vector<58x64xf32>
      %c1_250 = arith.constant 1 : index
      %c0_251 = arith.constant 0 : index
      %c0_252 = arith.constant 0 : index
      %244 = vector.load %arg6[%c1_250, %c0_251, %c0_252] : memref<3x64x128xf32, #tpu.memory_space<vmem>>, vector<1x64x128xf32>
      %245 = vector.shape_cast %244 : vector<1x64x128xf32> to vector<64x128xf32>
      %cst_253 = arith.constant dense<0.000000e+00> : vector<58x128xf32>
      %246 = tpu.matmul %243, %245, %cst_253 {dimension_numbers = #tpu.dot_dimension_numbers<[1], [0], [0], [1], [0, 0, 1, 1], [], []>} : vector<58x64xf32>, vector<64x128xf32>, vector<58x128xf32> -> vector<58x128xf32>
      %247 = arith.addf %242, %246 : vector<58x128xf32>
      %c2_254 = arith.constant 2 : index
      %c0_255 = arith.constant 0 : index
      %248 = vector.load %arg16[%c2_254, %c0_255] : memref<60x64xf32, #tpu.memory_space<vmem>>, vector<58x64xf32>
      %c2_256 = arith.constant 2 : index
      %c0_257 = arith.constant 0 : index
      %c0_258 = arith.constant 0 : index
      %249 = vector.load %arg6[%c2_256, %c0_257, %c0_258] : memref<3x64x128xf32, #tpu.memory_space<vmem>>, vector<1x64x128xf32>
      %250 = vector.shape_cast %249 : vector<1x64x128xf32> to vector<64x128xf32>
      %cst_259 = arith.constant dense<0.000000e+00> : vector<58x128xf32>
      %251 = tpu.matmul %248, %250, %cst_259 {dimension_numbers = #tpu.dot_dimension_numbers<[1], [0], [0], [1], [0, 0, 1, 1], [], []>} : vector<58x64xf32>, vector<64x128xf32>, vector<58x128xf32> -> vector<58x128xf32>
      %252 = arith.addf %247, %251 : vector<58x128xf32>
      %c0_260 = arith.constant 0 : index
      %c0_261 = arith.constant 0 : index
      %253 = vector.load %arg7[%c0_260, %c0_261] : memref<1x128xf32, #tpu.memory_space<vmem>>, vector<1x128xf32>
      %254 = vector.broadcast %253 : vector<1x128xf32> to vector<58x128xf32>
      %255 = arith.addf %252, %254 : vector<58x128xf32>
      %cst_262 = arith.constant 0.000000e+00 : f32
      %256 = vector.broadcast %cst_262 : f32 to vector<58x128xf32>
      %257 = arith.maximumf %255, %256 : vector<58x128xf32>
      %c0_263 = arith.constant 0 : index
      %c0_264 = arith.constant 0 : index
      %258 = vector.load %arg17[%c0_263, %c0_264] : memref<58x128xf32, #tpu.memory_space<vmem>>, vector<58x128xf32>
      tpu.vector_store %arg17[%c0_263, %c0_264], %257 {strides = array<i32>} : memref<58x128xf32, #tpu.memory_space<vmem>>, vector<58x128xf32>,
      %c0_265 = arith.constant 0 : index
      %c0_266 = arith.constant 0 : index
      %259 = tpu.strided_load %arg17[%c0_265, %c0_266] {strides = array<i32: 2, 1>} : memref<58x128xf32, #tpu.memory_space<vmem>>, vector<29x128xf32>
      %c1_267 = arith.constant 1 : index
      %c0_268 = arith.constant 0 : index
      %260 = tpu.strided_load %arg17[%c1_267, %c0_268] {strides = array<i32: 2, 1>} : memref<58x128xf32, #tpu.memory_space<vmem>>, vector<29x128xf32>
      %261 = arith.maximumf %259, %260 : vector<29x128xf32>
      %262 = arith.index_cast %arg19 : i32 to index
      %c0_269 = arith.constant 0 : index
      %c0_270 = arith.constant 0 : index
      %263 = vector.load %arg18[%262, %c0_269, %c0_270] : memref<2x29x128xf32, #tpu.memory_space<vmem>>, vector<1x29x128xf32>
      %264 = vector.shape_cast %263 : vector<1x29x128xf32> to vector<29x128xf32>
      %265 = vector.shape_cast %261 : vector<29x128xf32> to vector<1x29x128xf32>
      tpu.vector_store %arg18[%262, %c0_269, %c0_270], %265 {strides = array<i32>} : memref<2x29x128xf32, #tpu.memory_space<vmem>>, vector<1x29x128xf32>,
    }
    %c2_i32_0 = arith.constant 2 : i32
    %cst = arith.constant 0.000000e+00 : f32
    %1 = vector.broadcast %cst : f32 to vector<2x64xf32>
    %c0 = arith.constant 0 : index
    %c0_1 = arith.constant 0 : index
    %2 = vector.load %arg9[%c0, %c0_1] : memref<1x64xf32, #tpu.memory_space<vmem>>, vector<1x64xf32>
    %3 = vector.broadcast %2 : vector<1x64xf32> to vector<2x64xf32>
    %4 = arith.addf %1, %3 : vector<2x64xf32>
    %c0_2 = arith.constant 0 : index
    %c0_3 = arith.constant 0 : index
    %c0_4 = arith.constant 0 : index
    %5 = vector.load %arg18[%c0_2, %c0_3, %c0_4] : memref<2x29x128xf32, #tpu.memory_space<vmem>>, vector<2x1x128xf32>
    %6 = vector.shape_cast %5 : vector<2x1x128xf32> to vector<2x128xf32>
    %c0_5 = arith.constant 0 : index
    %c0_6 = arith.constant 0 : index
    %c0_7 = arith.constant 0 : index
    %7 = vector.load %arg8[%c0_5, %c0_6, %c0_7] : memref<29x128x64xf32, #tpu.memory_space<vmem>>, vector<1x128x64xf32>
    %8 = vector.shape_cast %7 : vector<1x128x64xf32> to vector<128x64xf32>
    %cst_8 = arith.constant dense<0.000000e+00> : vector<2x64xf32>
    %9 = tpu.matmul %6, %8, %cst_8 {dimension_numbers = #tpu.dot_dimension_numbers<[1], [0], [0], [1], [0, 0, 1, 1], [], []>} : vector<2x128xf32>, vector<128x64xf32>, vector<2x64xf32> -> vector<2x64xf32>
    %10 = arith.addf %4, %9 : vector<2x64xf32>
    %c0_9 = arith.constant 0 : index
    %c1 = arith.constant 1 : index
    %c0_10 = arith.constant 0 : index
    %11 = vector.load %arg18[%c0_9, %c1, %c0_10] : memref<2x29x128xf32, #tpu.memory_space<vmem>>, vector<2x1x128xf32>
    %12 = vector.shape_cast %11 : vector<2x1x128xf32> to vector<2x128xf32>
    %c1_11 = arith.constant 1 : index
    %c0_12 = arith.constant 0 : index
    %c0_13 = arith.constant 0 : index
    %13 = vector.load %arg8[%c1_11, %c0_12, %c0_13] : memref<29x128x64xf32, #tpu.memory_space<vmem>>, vector<1x128x64xf32>
    %14 = vector.shape_cast %13 : vector<1x128x64xf32> to vector<128x64xf32>
    %cst_14 = arith.constant dense<0.000000e+00> : vector<2x64xf32>
    %15 = tpu.matmul %12, %14, %cst_14 {dimension_numbers = #tpu.dot_dimension_numbers<[1], [0], [0], [1], [0, 0, 1, 1], [], []>} : vector<2x128xf32>, vector<128x64xf32>, vector<2x64xf32> -> vector<2x64xf32>
    %16 = arith.addf %10, %15 : vector<2x64xf32>
    %c0_15 = arith.constant 0 : index
    %c2 = arith.constant 2 : index
    %c0_16 = arith.constant 0 : index
    %17 = vector.load %arg18[%c0_15, %c2, %c0_16] : memref<2x29x128xf32, #tpu.memory_space<vmem>>, vector<2x1x128xf32>
    %18 = vector.shape_cast %17 : vector<2x1x128xf32> to vector<2x128xf32>
    %c2_17 = arith.constant 2 : index
    %c0_18 = arith.constant 0 : index
    %c0_19 = arith.constant 0 : index
    %19 = vector.load %arg8[%c2_17, %c0_18, %c0_19] : memref<29x128x64xf32, #tpu.memory_space<vmem>>, vector<1x128x64xf32>
    %20 = vector.shape_cast %19 : vector<1x128x64xf32> to vector<128x64xf32>
    %cst_20 = arith.constant dense<0.000000e+00> : vector<2x64xf32>
    %21 = tpu.matmul %18, %20, %cst_20 {dimension_numbers = #tpu.dot_dimension_numbers<[1], [0], [0], [1], [0, 0, 1, 1], [], []>} : vector<2x128xf32>, vector<128x64xf32>, vector<2x64xf32> -> vector<2x64xf32>
    %22 = arith.addf %16, %21 : vector<2x64xf32>
    %c0_21 = arith.constant 0 : index
    %c3 = arith.constant 3 : index
    %c0_22 = arith.constant 0 : index
    %23 = vector.load %arg18[%c0_21, %c3, %c0_22] : memref<2x29x128xf32, #tpu.memory_space<vmem>>, vector<2x1x128xf32>
    %24 = vector.shape_cast %23 : vector<2x1x128xf32> to vector<2x128xf32>
    %c3_23 = arith.constant 3 : index
    %c0_24 = arith.constant 0 : index
    %c0_25 = arith.constant 0 : index
    %25 = vector.load %arg8[%c3_23, %c0_24, %c0_25] : memref<29x128x64xf32, #tpu.memory_space<vmem>>, vector<1x128x64xf32>
    %26 = vector.shape_cast %25 : vector<1x128x64xf32> to vector<128x64xf32>
    %cst_26 = arith.constant dense<0.000000e+00> : vector<2x64xf32>
    %27 = tpu.matmul %24, %26, %cst_26 {dimension_numbers = #tpu.dot_dimension_numbers<[1], [0], [0], [1], [0, 0, 1, 1], [], []>} : vector<2x128xf32>, vector<128x64xf32>, vector<2x64xf32> -> vector<2x64xf32>
    %28 = arith.addf %22, %27 : vector<2x64xf32>
    %c0_27 = arith.constant 0 : index
    %c4 = arith.constant 4 : index
    %c0_28 = arith.constant 0 : index
    %29 = vector.load %arg18[%c0_27, %c4, %c0_28] : memref<2x29x128xf32, #tpu.memory_space<vmem>>, vector<2x1x128xf32>
    %30 = vector.shape_cast %29 : vector<2x1x128xf32> to vector<2x128xf32>
    %c4_29 = arith.constant 4 : index
    %c0_30 = arith.constant 0 : index
    %c0_31 = arith.constant 0 : index
    %31 = vector.load %arg8[%c4_29, %c0_30, %c0_31] : memref<29x128x64xf32, #tpu.memory_space<vmem>>, vector<1x128x64xf32>
    %32 = vector.shape_cast %31 : vector<1x128x64xf32> to vector<128x64xf32>
    %cst_32 = arith.constant dense<0.000000e+00> : vector<2x64xf32>
    %33 = tpu.matmul %30, %32, %cst_32 {dimension_numbers = #tpu.dot_dimension_numbers<[1], [0], [0], [1], [0, 0, 1, 1], [], []>} : vector<2x128xf32>, vector<128x64xf32>, vector<2x64xf32> -> vector<2x64xf32>
    %34 = arith.addf %28, %33 : vector<2x64xf32>
    %c0_33 = arith.constant 0 : index
    %c5 = arith.constant 5 : index
    %c0_34 = arith.constant 0 : index
    %35 = vector.load %arg18[%c0_33, %c5, %c0_34] : memref<2x29x128xf32, #tpu.memory_space<vmem>>, vector<2x1x128xf32>
    %36 = vector.shape_cast %35 : vector<2x1x128xf32> to vector<2x128xf32>
    %c5_35 = arith.constant 5 : index
    %c0_36 = arith.constant 0 : index
    %c0_37 = arith.constant 0 : index
    %37 = vector.load %arg8[%c5_35, %c0_36, %c0_37] : memref<29x128x64xf32, #tpu.memory_space<vmem>>, vector<1x128x64xf32>
    %38 = vector.shape_cast %37 : vector<1x128x64xf32> to vector<128x64xf32>
    %cst_38 = arith.constant dense<0.000000e+00> : vector<2x64xf32>
    %39 = tpu.matmul %36, %38, %cst_38 {dimension_numbers = #tpu.dot_dimension_numbers<[1], [0], [0], [1], [0, 0, 1, 1], [], []>} : vector<2x128xf32>, vector<128x64xf32>, vector<2x64xf32> -> vector<2x64xf32>
    %40 = arith.addf %34, %39 : vector<2x64xf32>
    %c0_39 = arith.constant 0 : index
    %c6 = arith.constant 6 : index
    %c0_40 = arith.constant 0 : index
    %41 = vector.load %arg18[%c0_39, %c6, %c0_40] : memref<2x29x128xf32, #tpu.memory_space<vmem>>, vector<2x1x128xf32>
    %42 = vector.shape_cast %41 : vector<2x1x128xf32> to vector<2x128xf32>
    %c6_41 = arith.constant 6 : index
    %c0_42 = arith.constant 0 : index
    %c0_43 = arith.constant 0 : index
    %43 = vector.load %arg8[%c6_41, %c0_42, %c0_43] : memref<29x128x64xf32, #tpu.memory_space<vmem>>, vector<1x128x64xf32>
    %44 = vector.shape_cast %43 : vector<1x128x64xf32> to vector<128x64xf32>
    %cst_44 = arith.constant dense<0.000000e+00> : vector<2x64xf32>
    %45 = tpu.matmul %42, %44, %cst_44 {dimension_numbers = #tpu.dot_dimension_numbers<[1], [0], [0], [1], [0, 0, 1, 1], [], []>} : vector<2x128xf32>, vector<128x64xf32>, vector<2x64xf32> -> vector<2x64xf32>
    %46 = arith.addf %40, %45 : vector<2x64xf32>
    %c0_45 = arith.constant 0 : index
    %c7 = arith.constant 7 : index
    %c0_46 = arith.constant 0 : index
    %47 = vector.load %arg18[%c0_45, %c7, %c0_46] : memref<2x29x128xf32, #tpu.memory_space<vmem>>, vector<2x1x128xf32>
    %48 = vector.shape_cast %47 : vector<2x1x128xf32> to vector<2x128xf32>
    %c7_47 = arith.constant 7 : index
    %c0_48 = arith.constant 0 : index
    %c0_49 = arith.constant 0 : index
    %49 = vector.load %arg8[%c7_47, %c0_48, %c0_49] : memref<29x128x64xf32, #tpu.memory_space<vmem>>, vector<1x128x64xf32>
    %50 = vector.shape_cast %49 : vector<1x128x64xf32> to vector<128x64xf32>
    %cst_50 = arith.constant dense<0.000000e+00> : vector<2x64xf32>
    %51 = tpu.matmul %48, %50, %cst_50 {dimension_numbers = #tpu.dot_dimension_numbers<[1], [0], [0], [1], [0, 0, 1, 1], [], []>} : vector<2x128xf32>, vector<128x64xf32>, vector<2x64xf32> -> vector<2x64xf32>
    %52 = arith.addf %46, %51 : vector<2x64xf32>
    %c0_51 = arith.constant 0 : index
    %c8 = arith.constant 8 : index
    %c0_52 = arith.constant 0 : index
    %53 = vector.load %arg18[%c0_51, %c8, %c0_52] : memref<2x29x128xf32, #tpu.memory_space<vmem>>, vector<2x1x128xf32>
    %54 = vector.shape_cast %53 : vector<2x1x128xf32> to vector<2x128xf32>
    %c8_53 = arith.constant 8 : index
    %c0_54 = arith.constant 0 : index
    %c0_55 = arith.constant 0 : index
    %55 = vector.load %arg8[%c8_53, %c0_54, %c0_55] : memref<29x128x64xf32, #tpu.memory_space<vmem>>, vector<1x128x64xf32>
    %56 = vector.shape_cast %55 : vector<1x128x64xf32> to vector<128x64xf32>
    %cst_56 = arith.constant dense<0.000000e+00> : vector<2x64xf32>
    %57 = tpu.matmul %54, %56, %cst_56 {dimension_numbers = #tpu.dot_dimension_numbers<[1], [0], [0], [1], [0, 0, 1, 1], [], []>} : vector<2x128xf32>, vector<128x64xf32>, vector<2x64xf32> -> vector<2x64xf32>
    %58 = arith.addf %52, %57 : vector<2x64xf32>
    %c0_57 = arith.constant 0 : index
    %c9 = arith.constant 9 : index
    %c0_58 = arith.constant 0 : index
    %59 = vector.load %arg18[%c0_57, %c9, %c0_58] : memref<2x29x128xf32, #tpu.memory_space<vmem>>, vector<2x1x128xf32>
    %60 = vector.shape_cast %59 : vector<2x1x128xf32> to vector<2x128xf32>
    %c9_59 = arith.constant 9 : index
    %c0_60 = arith.constant 0 : index
    %c0_61 = arith.constant 0 : index
    %61 = vector.load %arg8[%c9_59, %c0_60, %c0_61] : memref<29x128x64xf32, #tpu.memory_space<vmem>>, vector<1x128x64xf32>
    %62 = vector.shape_cast %61 : vector<1x128x64xf32> to vector<128x64xf32>
    %cst_62 = arith.constant dense<0.000000e+00> : vector<2x64xf32>
    %63 = tpu.matmul %60, %62, %cst_62 {dimension_numbers = #tpu.dot_dimension_numbers<[1], [0], [0], [1], [0, 0, 1, 1], [], []>} : vector<2x128xf32>, vector<128x64xf32>, vector<2x64xf32> -> vector<2x64xf32>
    %64 = arith.addf %58, %63 : vector<2x64xf32>
    %c0_63 = arith.constant 0 : index
    %c10 = arith.constant 10 : index
    %c0_64 = arith.constant 0 : index
    %65 = vector.load %arg18[%c0_63, %c10, %c0_64] : memref<2x29x128xf32, #tpu.memory_space<vmem>>, vector<2x1x128xf32>
    %66 = vector.shape_cast %65 : vector<2x1x128xf32> to vector<2x128xf32>
    %c10_65 = arith.constant 10 : index
    %c0_66 = arith.constant 0 : index
    %c0_67 = arith.constant 0 : index
    %67 = vector.load %arg8[%c10_65, %c0_66, %c0_67] : memref<29x128x64xf32, #tpu.memory_space<vmem>>, vector<1x128x64xf32>
    %68 = vector.shape_cast %67 : vector<1x128x64xf32> to vector<128x64xf32>
    %cst_68 = arith.constant dense<0.000000e+00> : vector<2x64xf32>
    %69 = tpu.matmul %66, %68, %cst_68 {dimension_numbers = #tpu.dot_dimension_numbers<[1], [0], [0], [1], [0, 0, 1, 1], [], []>} : vector<2x128xf32>, vector<128x64xf32>, vector<2x64xf32> -> vector<2x64xf32>
    %70 = arith.addf %64, %69 : vector<2x64xf32>
    %c0_69 = arith.constant 0 : index
    %c11 = arith.constant 11 : index
    %c0_70 = arith.constant 0 : index
    %71 = vector.load %arg18[%c0_69, %c11, %c0_70] : memref<2x29x128xf32, #tpu.memory_space<vmem>>, vector<2x1x128xf32>
    %72 = vector.shape_cast %71 : vector<2x1x128xf32> to vector<2x128xf32>
    %c11_71 = arith.constant 11 : index
    %c0_72 = arith.constant 0 : index
    %c0_73 = arith.constant 0 : index
    %73 = vector.load %arg8[%c11_71, %c0_72, %c0_73] : memref<29x128x64xf32, #tpu.memory_space<vmem>>, vector<1x128x64xf32>
    %74 = vector.shape_cast %73 : vector<1x128x64xf32> to vector<128x64xf32>
    %cst_74 = arith.constant dense<0.000000e+00> : vector<2x64xf32>
    %75 = tpu.matmul %72, %74, %cst_74 {dimension_numbers = #tpu.dot_dimension_numbers<[1], [0], [0], [1], [0, 0, 1, 1], [], []>} : vector<2x128xf32>, vector<128x64xf32>, vector<2x64xf32> -> vector<2x64xf32>
    %76 = arith.addf %70, %75 : vector<2x64xf32>
    %c0_75 = arith.constant 0 : index
    %c12 = arith.constant 12 : index
    %c0_76 = arith.constant 0 : index
    %77 = vector.load %arg18[%c0_75, %c12, %c0_76] : memref<2x29x128xf32, #tpu.memory_space<vmem>>, vector<2x1x128xf32>
    %78 = vector.shape_cast %77 : vector<2x1x128xf32> to vector<2x128xf32>
    %c12_77 = arith.constant 12 : index
    %c0_78 = arith.constant 0 : index
    %c0_79 = arith.constant 0 : index
    %79 = vector.load %arg8[%c12_77, %c0_78, %c0_79] : memref<29x128x64xf32, #tpu.memory_space<vmem>>, vector<1x128x64xf32>
    %80 = vector.shape_cast %79 : vector<1x128x64xf32> to vector<128x64xf32>
    %cst_80 = arith.constant dense<0.000000e+00> : vector<2x64xf32>
    %81 = tpu.matmul %78, %80, %cst_80 {dimension_numbers = #tpu.dot_dimension_numbers<[1], [0], [0], [1], [0, 0, 1, 1], [], []>} : vector<2x128xf32>, vector<128x64xf32>, vector<2x64xf32> -> vector<2x64xf32>
    %82 = arith.addf %76, %81 : vector<2x64xf32>
    %c0_81 = arith.constant 0 : index
    %c13 = arith.constant 13 : index
    %c0_82 = arith.constant 0 : index
    %83 = vector.load %arg18[%c0_81, %c13, %c0_82] : memref<2x29x128xf32, #tpu.memory_space<vmem>>, vector<2x1x128xf32>
    %84 = vector.shape_cast %83 : vector<2x1x128xf32> to vector<2x128xf32>
    %c13_83 = arith.constant 13 : index
    %c0_84 = arith.constant 0 : index
    %c0_85 = arith.constant 0 : index
    %85 = vector.load %arg8[%c13_83, %c0_84, %c0_85] : memref<29x128x64xf32, #tpu.memory_space<vmem>>, vector<1x128x64xf32>
    %86 = vector.shape_cast %85 : vector<1x128x64xf32> to vector<128x64xf32>
    %cst_86 = arith.constant dense<0.000000e+00> : vector<2x64xf32>
    %87 = tpu.matmul %84, %86, %cst_86 {dimension_numbers = #tpu.dot_dimension_numbers<[1], [0], [0], [1], [0, 0, 1, 1], [], []>} : vector<2x128xf32>, vector<128x64xf32>, vector<2x64xf32> -> vector<2x64xf32>
    %88 = arith.addf %82, %87 : vector<2x64xf32>
    %c0_87 = arith.constant 0 : index
    %c14 = arith.constant 14 : index
    %c0_88 = arith.constant 0 : index
    %89 = vector.load %arg18[%c0_87, %c14, %c0_88] : memref<2x29x128xf32, #tpu.memory_space<vmem>>, vector<2x1x128xf32>
    %90 = vector.shape_cast %89 : vector<2x1x128xf32> to vector<2x128xf32>
    %c14_89 = arith.constant 14 : index
    %c0_90 = arith.constant 0 : index
    %c0_91 = arith.constant 0 : index
    %91 = vector.load %arg8[%c14_89, %c0_90, %c0_91] : memref<29x128x64xf32, #tpu.memory_space<vmem>>, vector<1x128x64xf32>
    %92 = vector.shape_cast %91 : vector<1x128x64xf32> to vector<128x64xf32>
    %cst_92 = arith.constant dense<0.000000e+00> : vector<2x64xf32>
    %93 = tpu.matmul %90, %92, %cst_92 {dimension_numbers = #tpu.dot_dimension_numbers<[1], [0], [0], [1], [0, 0, 1, 1], [], []>} : vector<2x128xf32>, vector<128x64xf32>, vector<2x64xf32> -> vector<2x64xf32>
    %94 = arith.addf %88, %93 : vector<2x64xf32>
    %c0_93 = arith.constant 0 : index
    %c15 = arith.constant 15 : index
    %c0_94 = arith.constant 0 : index
    %95 = vector.load %arg18[%c0_93, %c15, %c0_94] : memref<2x29x128xf32, #tpu.memory_space<vmem>>, vector<2x1x128xf32>
    %96 = vector.shape_cast %95 : vector<2x1x128xf32> to vector<2x128xf32>
    %c15_95 = arith.constant 15 : index
    %c0_96 = arith.constant 0 : index
    %c0_97 = arith.constant 0 : index
    %97 = vector.load %arg8[%c15_95, %c0_96, %c0_97] : memref<29x128x64xf32, #tpu.memory_space<vmem>>, vector<1x128x64xf32>
    %98 = vector.shape_cast %97 : vector<1x128x64xf32> to vector<128x64xf32>
    %cst_98 = arith.constant dense<0.000000e+00> : vector<2x64xf32>
    %99 = tpu.matmul %96, %98, %cst_98 {dimension_numbers = #tpu.dot_dimension_numbers<[1], [0], [0], [1], [0, 0, 1, 1], [], []>} : vector<2x128xf32>, vector<128x64xf32>, vector<2x64xf32> -> vector<2x64xf32>
    %100 = arith.addf %94, %99 : vector<2x64xf32>
    %c0_99 = arith.constant 0 : index
    %c16 = arith.constant 16 : index
    %c0_100 = arith.constant 0 : index
    %101 = vector.load %arg18[%c0_99, %c16, %c0_100] : memref<2x29x128xf32, #tpu.memory_space<vmem>>, vector<2x1x128xf32>
    %102 = vector.shape_cast %101 : vector<2x1x128xf32> to vector<2x128xf32>
    %c16_101 = arith.constant 16 : index
    %c0_102 = arith.constant 0 : index
    %c0_103 = arith.constant 0 : index
    %103 = vector.load %arg8[%c16_101, %c0_102, %c0_103] : memref<29x128x64xf32, #tpu.memory_space<vmem>>, vector<1x128x64xf32>
    %104 = vector.shape_cast %103 : vector<1x128x64xf32> to vector<128x64xf32>
    %cst_104 = arith.constant dense<0.000000e+00> : vector<2x64xf32>
    %105 = tpu.matmul %102, %104, %cst_104 {dimension_numbers = #tpu.dot_dimension_numbers<[1], [0], [0], [1], [0, 0, 1, 1], [], []>} : vector<2x128xf32>, vector<128x64xf32>, vector<2x64xf32> -> vector<2x64xf32>
    %106 = arith.addf %100, %105 : vector<2x64xf32>
    %c0_105 = arith.constant 0 : index
    %c17 = arith.constant 17 : index
    %c0_106 = arith.constant 0 : index
    %107 = vector.load %arg18[%c0_105, %c17, %c0_106] : memref<2x29x128xf32, #tpu.memory_space<vmem>>, vector<2x1x128xf32>
    %108 = vector.shape_cast %107 : vector<2x1x128xf32> to vector<2x128xf32>
    %c17_107 = arith.constant 17 : index
    %c0_108 = arith.constant 0 : index
    %c0_109 = arith.constant 0 : index
    %109 = vector.load %arg8[%c17_107, %c0_108, %c0_109] : memref<29x128x64xf32, #tpu.memory_space<vmem>>, vector<1x128x64xf32>
    %110 = vector.shape_cast %109 : vector<1x128x64xf32> to vector<128x64xf32>
    %cst_110 = arith.constant dense<0.000000e+00> : vector<2x64xf32>
    %111 = tpu.matmul %108, %110, %cst_110 {dimension_numbers = #tpu.dot_dimension_numbers<[1], [0], [0], [1], [0, 0, 1, 1], [], []>} : vector<2x128xf32>, vector<128x64xf32>, vector<2x64xf32> -> vector<2x64xf32>
    %112 = arith.addf %106, %111 : vector<2x64xf32>
    %c0_111 = arith.constant 0 : index
    %c18 = arith.constant 18 : index
    %c0_112 = arith.constant 0 : index
    %113 = vector.load %arg18[%c0_111, %c18, %c0_112] : memref<2x29x128xf32, #tpu.memory_space<vmem>>, vector<2x1x128xf32>
    %114 = vector.shape_cast %113 : vector<2x1x128xf32> to vector<2x128xf32>
    %c18_113 = arith.constant 18 : index
    %c0_114 = arith.constant 0 : index
    %c0_115 = arith.constant 0 : index
    %115 = vector.load %arg8[%c18_113, %c0_114, %c0_115] : memref<29x128x64xf32, #tpu.memory_space<vmem>>, vector<1x128x64xf32>
    %116 = vector.shape_cast %115 : vector<1x128x64xf32> to vector<128x64xf32>
    %cst_116 = arith.constant dense<0.000000e+00> : vector<2x64xf32>
    %117 = tpu.matmul %114, %116, %cst_116 {dimension_numbers = #tpu.dot_dimension_numbers<[1], [0], [0], [1], [0, 0, 1, 1], [], []>} : vector<2x128xf32>, vector<128x64xf32>, vector<2x64xf32> -> vector<2x64xf32>
    %118 = arith.addf %112, %117 : vector<2x64xf32>
    %c0_117 = arith.constant 0 : index
    %c19 = arith.constant 19 : index
    %c0_118 = arith.constant 0 : index
    %119 = vector.load %arg18[%c0_117, %c19, %c0_118] : memref<2x29x128xf32, #tpu.memory_space<vmem>>, vector<2x1x128xf32>
    %120 = vector.shape_cast %119 : vector<2x1x128xf32> to vector<2x128xf32>
    %c19_119 = arith.constant 19 : index
    %c0_120 = arith.constant 0 : index
    %c0_121 = arith.constant 0 : index
    %121 = vector.load %arg8[%c19_119, %c0_120, %c0_121] : memref<29x128x64xf32, #tpu.memory_space<vmem>>, vector<1x128x64xf32>
    %122 = vector.shape_cast %121 : vector<1x128x64xf32> to vector<128x64xf32>
    %cst_122 = arith.constant dense<0.000000e+00> : vector<2x64xf32>
    %123 = tpu.matmul %120, %122, %cst_122 {dimension_numbers = #tpu.dot_dimension_numbers<[1], [0], [0], [1], [0, 0, 1, 1], [], []>} : vector<2x128xf32>, vector<128x64xf32>, vector<2x64xf32> -> vector<2x64xf32>
    %124 = arith.addf %118, %123 : vector<2x64xf32>
    %c0_123 = arith.constant 0 : index
    %c20 = arith.constant 20 : index
    %c0_124 = arith.constant 0 : index
    %125 = vector.load %arg18[%c0_123, %c20, %c0_124] : memref<2x29x128xf32, #tpu.memory_space<vmem>>, vector<2x1x128xf32>
    %126 = vector.shape_cast %125 : vector<2x1x128xf32> to vector<2x128xf32>
    %c20_125 = arith.constant 20 : index
    %c0_126 = arith.constant 0 : index
    %c0_127 = arith.constant 0 : index
    %127 = vector.load %arg8[%c20_125, %c0_126, %c0_127] : memref<29x128x64xf32, #tpu.memory_space<vmem>>, vector<1x128x64xf32>
    %128 = vector.shape_cast %127 : vector<1x128x64xf32> to vector<128x64xf32>
    %cst_128 = arith.constant dense<0.000000e+00> : vector<2x64xf32>
    %129 = tpu.matmul %126, %128, %cst_128 {dimension_numbers = #tpu.dot_dimension_numbers<[1], [0], [0], [1], [0, 0, 1, 1], [], []>} : vector<2x128xf32>, vector<128x64xf32>, vector<2x64xf32> -> vector<2x64xf32>
    %130 = arith.addf %124, %129 : vector<2x64xf32>
    %c0_129 = arith.constant 0 : index
    %c21 = arith.constant 21 : index
    %c0_130 = arith.constant 0 : index
    %131 = vector.load %arg18[%c0_129, %c21, %c0_130] : memref<2x29x128xf32, #tpu.memory_space<vmem>>, vector<2x1x128xf32>
    %132 = vector.shape_cast %131 : vector<2x1x128xf32> to vector<2x128xf32>
    %c21_131 = arith.constant 21 : index
    %c0_132 = arith.constant 0 : index
    %c0_133 = arith.constant 0 : index
    %133 = vector.load %arg8[%c21_131, %c0_132, %c0_133] : memref<29x128x64xf32, #tpu.memory_space<vmem>>, vector<1x128x64xf32>
    %134 = vector.shape_cast %133 : vector<1x128x64xf32> to vector<128x64xf32>
    %cst_134 = arith.constant dense<0.000000e+00> : vector<2x64xf32>
    %135 = tpu.matmul %132, %134, %cst_134 {dimension_numbers = #tpu.dot_dimension_numbers<[1], [0], [0], [1], [0, 0, 1, 1], [], []>} : vector<2x128xf32>, vector<128x64xf32>, vector<2x64xf32> -> vector<2x64xf32>
    %136 = arith.addf %130, %135 : vector<2x64xf32>
    %c0_135 = arith.constant 0 : index
    %c22 = arith.constant 22 : index
    %c0_136 = arith.constant 0 : index
    %137 = vector.load %arg18[%c0_135, %c22, %c0_136] : memref<2x29x128xf32, #tpu.memory_space<vmem>>, vector<2x1x128xf32>
    %138 = vector.shape_cast %137 : vector<2x1x128xf32> to vector<2x128xf32>
    %c22_137 = arith.constant 22 : index
    %c0_138 = arith.constant 0 : index
    %c0_139 = arith.constant 0 : index
    %139 = vector.load %arg8[%c22_137, %c0_138, %c0_139] : memref<29x128x64xf32, #tpu.memory_space<vmem>>, vector<1x128x64xf32>
    %140 = vector.shape_cast %139 : vector<1x128x64xf32> to vector<128x64xf32>
    %cst_140 = arith.constant dense<0.000000e+00> : vector<2x64xf32>
    %141 = tpu.matmul %138, %140, %cst_140 {dimension_numbers = #tpu.dot_dimension_numbers<[1], [0], [0], [1], [0, 0, 1, 1], [], []>} : vector<2x128xf32>, vector<128x64xf32>, vector<2x64xf32> -> vector<2x64xf32>
    %142 = arith.addf %136, %141 : vector<2x64xf32>
    %c0_141 = arith.constant 0 : index
    %c23 = arith.constant 23 : index
    %c0_142 = arith.constant 0 : index
    %143 = vector.load %arg18[%c0_141, %c23, %c0_142] : memref<2x29x128xf32, #tpu.memory_space<vmem>>, vector<2x1x128xf32>
    %144 = vector.shape_cast %143 : vector<2x1x128xf32> to vector<2x128xf32>
    %c23_143 = arith.constant 23 : index
    %c0_144 = arith.constant 0 : index
    %c0_145 = arith.constant 0 : index
    %145 = vector.load %arg8[%c23_143, %c0_144, %c0_145] : memref<29x128x64xf32, #tpu.memory_space<vmem>>, vector<1x128x64xf32>
    %146 = vector.shape_cast %145 : vector<1x128x64xf32> to vector<128x64xf32>
    %cst_146 = arith.constant dense<0.000000e+00> : vector<2x64xf32>
    %147 = tpu.matmul %144, %146, %cst_146 {dimension_numbers = #tpu.dot_dimension_numbers<[1], [0], [0], [1], [0, 0, 1, 1], [], []>} : vector<2x128xf32>, vector<128x64xf32>, vector<2x64xf32> -> vector<2x64xf32>
    %148 = arith.addf %142, %147 : vector<2x64xf32>
    %c0_147 = arith.constant 0 : index
    %c24 = arith.constant 24 : index
    %c0_148 = arith.constant 0 : index
    %149 = vector.load %arg18[%c0_147, %c24, %c0_148] : memref<2x29x128xf32, #tpu.memory_space<vmem>>, vector<2x1x128xf32>
    %150 = vector.shape_cast %149 : vector<2x1x128xf32> to vector<2x128xf32>
    %c24_149 = arith.constant 24 : index
    %c0_150 = arith.constant 0 : index
    %c0_151 = arith.constant 0 : index
    %151 = vector.load %arg8[%c24_149, %c0_150, %c0_151] : memref<29x128x64xf32, #tpu.memory_space<vmem>>, vector<1x128x64xf32>
    %152 = vector.shape_cast %151 : vector<1x128x64xf32> to vector<128x64xf32>
    %cst_152 = arith.constant dense<0.000000e+00> : vector<2x64xf32>
    %153 = tpu.matmul %150, %152, %cst_152 {dimension_numbers = #tpu.dot_dimension_numbers<[1], [0], [0], [1], [0, 0, 1, 1], [], []>} : vector<2x128xf32>, vector<128x64xf32>, vector<2x64xf32> -> vector<2x64xf32>
    %154 = arith.addf %148, %153 : vector<2x64xf32>
    %c0_153 = arith.constant 0 : index
    %c25 = arith.constant 25 : index
    %c0_154 = arith.constant 0 : index
    %155 = vector.load %arg18[%c0_153, %c25, %c0_154] : memref<2x29x128xf32, #tpu.memory_space<vmem>>, vector<2x1x128xf32>
    %156 = vector.shape_cast %155 : vector<2x1x128xf32> to vector<2x128xf32>
    %c25_155 = arith.constant 25 : index
    %c0_156 = arith.constant 0 : index
    %c0_157 = arith.constant 0 : index
    %157 = vector.load %arg8[%c25_155, %c0_156, %c0_157] : memref<29x128x64xf32, #tpu.memory_space<vmem>>, vector<1x128x64xf32>
    %158 = vector.shape_cast %157 : vector<1x128x64xf32> to vector<128x64xf32>
    %cst_158 = arith.constant dense<0.000000e+00> : vector<2x64xf32>
    %159 = tpu.matmul %156, %158, %cst_158 {dimension_numbers = #tpu.dot_dimension_numbers<[1], [0], [0], [1], [0, 0, 1, 1], [], []>} : vector<2x128xf32>, vector<128x64xf32>, vector<2x64xf32> -> vector<2x64xf32>
    %160 = arith.addf %154, %159 : vector<2x64xf32>
    %c0_159 = arith.constant 0 : index
    %c26 = arith.constant 26 : index
    %c0_160 = arith.constant 0 : index
    %161 = vector.load %arg18[%c0_159, %c26, %c0_160] : memref<2x29x128xf32, #tpu.memory_space<vmem>>, vector<2x1x128xf32>
    %162 = vector.shape_cast %161 : vector<2x1x128xf32> to vector<2x128xf32>
    %c26_161 = arith.constant 26 : index
    %c0_162 = arith.constant 0 : index
    %c0_163 = arith.constant 0 : index
    %163 = vector.load %arg8[%c26_161, %c0_162, %c0_163] : memref<29x128x64xf32, #tpu.memory_space<vmem>>, vector<1x128x64xf32>
    %164 = vector.shape_cast %163 : vector<1x128x64xf32> to vector<128x64xf32>
    %cst_164 = arith.constant dense<0.000000e+00> : vector<2x64xf32>
    %165 = tpu.matmul %162, %164, %cst_164 {dimension_numbers = #tpu.dot_dimension_numbers<[1], [0], [0], [1], [0, 0, 1, 1], [], []>} : vector<2x128xf32>, vector<128x64xf32>, vector<2x64xf32> -> vector<2x64xf32>
    %166 = arith.addf %160, %165 : vector<2x64xf32>
    %c0_165 = arith.constant 0 : index
    %c27 = arith.constant 27 : index
    %c0_166 = arith.constant 0 : index
    %167 = vector.load %arg18[%c0_165, %c27, %c0_166] : memref<2x29x128xf32, #tpu.memory_space<vmem>>, vector<2x1x128xf32>
    %168 = vector.shape_cast %167 : vector<2x1x128xf32> to vector<2x128xf32>
    %c27_167 = arith.constant 27 : index
    %c0_168 = arith.constant 0 : index
    %c0_169 = arith.constant 0 : index
    %169 = vector.load %arg8[%c27_167, %c0_168, %c0_169] : memref<29x128x64xf32, #tpu.memory_space<vmem>>, vector<1x128x64xf32>
    %170 = vector.shape_cast %169 : vector<1x128x64xf32> to vector<128x64xf32>
    %cst_170 = arith.constant dense<0.000000e+00> : vector<2x64xf32>
    %171 = tpu.matmul %168, %170, %cst_170 {dimension_numbers = #tpu.dot_dimension_numbers<[1], [0], [0], [1], [0, 0, 1, 1], [], []>} : vector<2x128xf32>, vector<128x64xf32>, vector<2x64xf32> -> vector<2x64xf32>
    %172 = arith.addf %166, %171 : vector<2x64xf32>
    %c0_171 = arith.constant 0 : index
    %c28 = arith.constant 28 : index
    %c0_172 = arith.constant 0 : index
    %173 = vector.load %arg18[%c0_171, %c28, %c0_172] : memref<2x29x128xf32, #tpu.memory_space<vmem>>, vector<2x1x128xf32>
    %174 = vector.shape_cast %173 : vector<2x1x128xf32> to vector<2x128xf32>
    %c28_173 = arith.constant 28 : index
    %c0_174 = arith.constant 0 : index
    %c0_175 = arith.constant 0 : index
    %175 = vector.load %arg8[%c28_173, %c0_174, %c0_175] : memref<29x128x64xf32, #tpu.memory_space<vmem>>, vector<1x128x64xf32>
    %176 = vector.shape_cast %175 : vector<1x128x64xf32> to vector<128x64xf32>
    %cst_176 = arith.constant dense<0.000000e+00> : vector<2x64xf32>
    %177 = tpu.matmul %174, %176, %cst_176 {dimension_numbers = #tpu.dot_dimension_numbers<[1], [0], [0], [1], [0, 0, 1, 1], [], []>} : vector<2x128xf32>, vector<128x64xf32>, vector<2x64xf32> -> vector<2x64xf32>
    %178 = arith.addf %172, %177 : vector<2x64xf32>
    %c0_177 = arith.constant 0 : index
    %c0_178 = arith.constant 0 : index
    %179 = vector.load %arg10[%c0_177, %c0_178] : memref<64x64xf32, #tpu.memory_space<vmem>>, vector<64x64xf32>
    %cst_179 = arith.constant dense<0.000000e+00> : vector<2x64xf32>
    %180 = tpu.matmul %178, %179, %cst_179 {dimension_numbers = #tpu.dot_dimension_numbers<[1], [0], [0], [1], [0, 0, 1, 1], [], []>} : vector<2x64xf32>, vector<64x64xf32>, vector<2x64xf32> -> vector<2x64xf32>
    %c0_180 = arith.constant 0 : index
    %c0_181 = arith.constant 0 : index
    %181 = vector.load %arg11[%c0_180, %c0_181] : memref<1x64xf32, #tpu.memory_space<vmem>>, vector<1x64xf32>
    %182 = vector.broadcast %181 : vector<1x64xf32> to vector<2x64xf32>
    %183 = arith.addf %180, %182 : vector<2x64xf32>
    %c0_182 = arith.constant 0 : index
    %c0_183 = arith.constant 0 : index
    %184 = vector.load %arg12[%c0_182, %c0_183] : memref<2x64xf32, #tpu.memory_space<vmem>>, vector<2x64xf32>
    tpu.vector_store %arg12[%c0_182, %c0_183], %183 {strides = array<i32>} : memref<2x64xf32, #tpu.memory_space<vmem>>, vector<2x64xf32>,
    return
  }
  func.func @transform_0(%arg0: i32) -> (i32, i32, i32) {
    %c0_i32 = arith.constant 0 : i32
    %c0_i32_0 = arith.constant 0 : i32
    %c0_i32_1 = arith.constant 0 : i32
    return %arg0, %c0_i32, %c0_i32_0 : i32, i32, i32
  }
  func.func @transform_1(%arg0: i32) -> (i32, i32, i32) {
    %c0_i32 = arith.constant 0 : i32
    %c0_i32_0 = arith.constant 0 : i32
    %c0_i32_1 = arith.constant 0 : i32
    %c0_i32_2 = arith.constant 0 : i32
    return %c0_i32, %c0_i32_0, %c0_i32_1 : i32, i32, i32
  }
  func.func @transform_2(%arg0: i32) -> (i32, i32) {
    %c0_i32 = arith.constant 0 : i32
    %c0_i32_0 = arith.constant 0 : i32
    %c0_i32_1 = arith.constant 0 : i32
    return %c0_i32, %c0_i32_0 : i32, i32
  }
  func.func @transform_3(%arg0: i32) -> (i32, i32, i32) {
    %c0_i32 = arith.constant 0 : i32
    %c0_i32_0 = arith.constant 0 : i32
    %c0_i32_1 = arith.constant 0 : i32
    %c0_i32_2 = arith.constant 0 : i32
    return %c0_i32, %c0_i32_0, %c0_i32_1 : i32, i32, i32
  }
  func.func @transform_4(%arg0: i32) -> (i32, i32) {
    %c0_i32 = arith.constant 0 : i32
    %c0_i32_0 = arith.constant 0 : i32
    %c0_i32_1 = arith.constant 0 : i32
    return %c0_i32, %c0_i32_0 : i32, i32
  }
  func.func @transform_5(%arg0: i32) -> (i32, i32, i32) {
    %c0_i32 = arith.constant 0 : i32
    %c0_i32_0 = arith.constant 0 : i32
    %c0_i32_1 = arith.constant 0 : i32
    %c0_i32_2 = arith.constant 0 : i32
    return %c0_i32, %c0_i32_0, %c0_i32_1 : i32, i32, i32
  }
  func.func @transform_6(%arg0: i32) -> (i32, i32) {
    %c0_i32 = arith.constant 0 : i32
    %c0_i32_0 = arith.constant 0 : i32
    %c0_i32_1 = arith.constant 0 : i32
    return %c0_i32, %c0_i32_0 : i32, i32
  }
  func.func @transform_7(%arg0: i32) -> (i32, i32, i32) {
    %c0_i32 = arith.constant 0 : i32
    %c0_i32_0 = arith.constant 0 : i32
    %c0_i32_1 = arith.constant 0 : i32
    %c0_i32_2 = arith.constant 0 : i32
    return %c0_i32, %c0_i32_0, %c0_i32_1 : i32, i32, i32
  }
  func.func @transform_8(%arg0: i32) -> (i32, i32) {
    %c0_i32 = arith.constant 0 : i32
    %c0_i32_0 = arith.constant 0 : i32
    %c0_i32_1 = arith.constant 0 : i32
    return %c0_i32, %c0_i32_0 : i32, i32
  }
  func.func @transform_9(%arg0: i32) -> (i32, i32) {
    %c0_i32 = arith.constant 0 : i32
    %c0_i32_0 = arith.constant 0 : i32
    %c0_i32_1 = arith.constant 0 : i32
    return %c0_i32, %c0_i32_0 : i32, i32
  }
  func.func @transform_10(%arg0: i32) -> (i32, i32) {
    %c0_i32 = arith.constant 0 : i32
    %c0_i32_0 = arith.constant 0 : i32
    %c0_i32_1 = arith.constant 0 : i32
    return %c0_i32, %c0_i32_0 : i32, i32
  }
  func.func @transform_11(%arg0: i32) -> (i32, i32) {
    %c0_i32 = arith.constant 0 : i32
    %c0_i32_0 = arith.constant 0 : i32
    return %arg0, %c0_i32 : i32, i32
  }
}

</mosaic_0001>

<llo_original>
// kernel: tpu_custom_call.1
$region0: #{tpu_custom_call.1}
  #allocation0 [shape = 'u32[]', space=smem, size = 0x4, offset = 0x4, fixed_abs, tag = 'smem constant byte address 0x4 - core index']
  #allocation1 [shape = 'u32[144,128]{1,0:T(1,128)}', space=vmem, size = 0x12000, scoped, tag = 'internal scratch']
  #allocation2 [shape = 'f32[244,32]{1,0:T(8,128)}', space=vmem, size = 0x1f000, scoped, tag = 'scratch operand']
  #allocation3 [shape = 'f32[122,32]{1,0:T(8,128)}', space=vmem, size = 0x10000, scoped, tag = 'scratch operand']
  #allocation4 [shape = 'f32[120,64]{1,0:T(8,128)}', space=vmem, size = 0xf000, scoped, tag = 'scratch operand']
  #allocation5 [shape = 'f32[60,64]{1,0:T(8,128)}', space=vmem, size = 0x8000, scoped, tag = 'scratch operand']
  #allocation6 [shape = 'f32[58,128]{1,0:T(8,128)}', space=vmem, size = 0x8000, scoped, tag = 'scratch operand']
  #allocation7 [shape = 'f32[2,29,128]{2,1,0:T(8,128)}', space=vmem, size = 0x8000, scoped, tag = 'scratch operand']
  %s0 = inlined_call_operand.vmem [shape: f32[2,246,64], index: 0, kind: input, shape index: {}]
  %s1 = inlined_call_operand.vmem [shape: f32[3,64,32], index: 1, kind: input, shape index: {}]
  %s2 = inlined_call_operand.vmem [shape: f32[1,32], index: 2, kind: input, shape index: {}]
  %s3 = inlined_call_operand.vmem [shape: f32[3,32,64], index: 3, kind: input, shape index: {}]
  %s4 = inlined_call_operand.vmem [shape: f32[1,64], index: 4, kind: input, shape index: {}]
  %s5 = inlined_call_operand.vmem [shape: f32[3,64,128], index: 5, kind: input, shape index: {}]
  %s6 = inlined_call_operand.vmem [shape: f32[1,128], index: 6, kind: input, shape index: {}]
  %s7 = inlined_call_operand.vmem [shape: f32[29,128,64], index: 7, kind: input, shape index: {}]
  %s8 = inlined_call_operand.vmem [shape: f32[1,64], index: 8, kind: input, shape index: {}]
  %s9 = inlined_call_operand.vmem [shape: f32[64,64], index: 9, kind: input, shape index: {}]
  %s10 = inlined_call_operand.vmem [shape: f32[1,64], index: 10, kind: input, shape index: {}]
  %s11 = inlined_call_operand.hbm [shape: f32[2,64], index: 11, kind: output, shape index: {}]
  %s12 = sld [smem:[#allocation0]]
  $region61: #{tpu_custom_call.1} parent=0
    _
  %s14 = ssub.s32 1, %s12
  %s15 = scalar_select 0, %s14, %s12
  $region1: #{tpu_custom_call.1} parent=0
    #allocation8 [shape = 'u8[1024]{0}', space=vmem, size = 0x400, scoped, tag = 'output window, operand 0, single buffered']
    #allocation9 [shape = 's32[1]{0}', space=sflag, size = 0x4, scoped, tag = 'scoped memory for tpu_custom_call.1']
    %16 = vsyncpa [#allocation9], 0
    // Predicated region
    $region2: #{tpu_custom_call.1} parent=1 // pred_check
      _
    $region3: #{tpu_custom_call.1} parent=1 // pred_check_branch
      %18 = sbr.rel (0) target = $region5
    $region4: #{tpu_custom_call.1} parent=1 // pred_region
      _
    $region5: #{tpu_custom_call.1} parent=1 // pred_fallthru
      _
    // Predicated region
    $region6: #{tpu_custom_call.1} parent=1 // pred_check
      _
    $region7: #{tpu_custom_call.1} parent=1 // pred_check_branch
      %20 = sbr.rel (0) target = $region9
    $region8: #{tpu_custom_call.1} parent=1 // pred_region
      _
    $region9: #{tpu_custom_call.1} parent=1 // pred_fallthru
      _
    // Predicated region
    $region10: #{tpu_custom_call.1} parent=1 // pred_check
      _
    $region11: #{tpu_custom_call.1} parent=1 // pred_check_branch
      %22 = sbr.rel (0) target = $region13
    $region12: #{tpu_custom_call.1} parent=1 // pred_region
      _
    $region13: #{tpu_custom_call.1} parent=1 // pred_fallthru
      _
    // Predicated region
    $region14: #{tpu_custom_call.1} parent=1 // pred_check
      _
    $region15: #{tpu_custom_call.1} parent=1 // pred_check_branch
      %24 = sbr.rel (0) target = $region17
    $region16: #{tpu_custom_call.1} parent=1 // pred_region
      _
    $region17: #{tpu_custom_call.1} parent=1 // pred_fallthru
      _
    // Predicated region
    $region18: #{tpu_custom_call.1} parent=1 // pred_check
      _
    $region19: #{tpu_custom_call.1} parent=1 // pred_check_branch
      %26 = sbr.rel (0) target = $region21
    $region20: #{tpu_custom_call.1} parent=1 // pred_region
      _
    $region21: #{tpu_custom_call.1} parent=1 // pred_fallthru
      _
    // Predicated region
    $region22: #{tpu_custom_call.1} parent=1 // pred_check
      _
    $region23: #{tpu_custom_call.1} parent=1 // pred_check_branch
      %28 = sbr.rel (0) target = $region25
    $region24: #{tpu_custom_call.1} parent=1 // pred_region
      _
    $region25: #{tpu_custom_call.1} parent=1 // pred_fallthru
      _
    // Predicated region
    $region26: #{tpu_custom_call.1} parent=1 // pred_check
      _
    $region27: #{tpu_custom_call.1} parent=1 // pred_check_branch
      %30 = sbr.rel (0) target = $region29
    $region28: #{tpu_custom_call.1} parent=1 // pred_region
      _
    $region29: #{tpu_custom_call.1} parent=1 // pred_fallthru
      _
    // Predicated region
    $region30: #{tpu_custom_call.1} parent=1 // pred_check
      _
    $region31: #{tpu_custom_call.1} parent=1 // pred_check_branch
      %32 = sbr.rel (0) target = $region33
    $region32: #{tpu_custom_call.1} parent=1 // pred_region
      _
    $region33: #{tpu_custom_call.1} parent=1 // pred_fallthru
      _
    // Predicated region
    $region34: #{tpu_custom_call.1} parent=1 // pred_check
      _
    $region35: #{tpu_custom_call.1} parent=1 // pred_check_branch
      %34 = sbr.rel (0) target = $region37
    $region36: #{tpu_custom_call.1} parent=1 // pred_region
      _
    $region37: #{tpu_custom_call.1} parent=1 // pred_fallthru
      _
    // Predicated region
    $region38: #{tpu_custom_call.1} parent=1 // pred_check
      _
    $region39: #{tpu_custom_call.1} parent=1 // pred_check_branch
      %36 = sbr.rel (0) target = $region41
    $region40: #{tpu_custom_call.1} parent=1 // pred_region
      _
    $region41: #{tpu_custom_call.1} parent=1 // pred_fallthru
      _
    // Predicated region
    $region42: #{tpu_custom_call.1} parent=1 // pred_check
      _
    $region43: #{tpu_custom_call.1} parent=1 // pred_check_branch
      %38 = sbr.rel (0) target = $region45
    $region44: #{tpu_custom_call.1} parent=1 // pred_region
      _
    $region45: #{tpu_custom_call.1} parent=1 // pred_fallthru
      _
    loop: start=0, step=1, limit=2
    $region46: #{tpu_custom_call.1} parent=1 // loop_pre_header
      _
    $region47: #{tpu_custom_call.1} parent=1 // loop_header
      %s40 = sphi 0, %s44
      %p41 = scmp.ge.s32.totalorder %s40, 2
    $region48: #{tpu_custom_call.1} parent=1 // loop_header_branch
      %43 = sbr.rel (%p41) target = $region52
    $region49: #{tpu_custom_call.1} parent=1 // loop_body
      %s45 = smul.u32 %s40, 248
      %s46 = scalar_lea.vmem %s0, %s45
      %v47 = vld [vmem:[%s46] sm:$0xff]
      %v48 = vld [vmem:[%s46 + $0x8] sm:$0xff]
      %v49 = vld [vmem:[%s46 + $0x10] sm:$0xff]
      %v50 = vld [vmem:[%s46 + $0x18] sm:$0xff]
      %v51 = vld [vmem:[%s46 + $0x20] sm:$0xff]
      %v52 = vld [vmem:[%s46 + $0x28] sm:$0xff]
      %v53 = vld [vmem:[%s46 + $0x30] sm:$0xff]
      %v54 = vld [vmem:[%s46 + $0x38] sm:$0xff]
      %v55 = vld [vmem:[%s46 + $0x40] sm:$0xff]
      %v56 = vld [vmem:[%s46 + $0x48] sm:$0xff]
      %v57 = vld [vmem:[%s46 + $0x50] sm:$0xff]
      %v58 = vld [vmem:[%s46 + $0x58] sm:$0xff]
      %v59 = vld [vmem:[%s46 + $0x60] sm:$0xff]
      %v60 = vld [vmem:[%s46 + $0x68] sm:$0xff]
      %v61 = vld [vmem:[%s46 + $0x70] sm:$0xff]
      %v62 = vld [vmem:[%s46 + $0x78] sm:$0xff]
      %v63 = vld [vmem:[%s46 + $0x80] sm:$0xff]
      %v64 = vld [vmem:[%s46 + $0x88] sm:$0xff]
      %v65 = vld [vmem:[%s46 + $0x90] sm:$0xff]
      %v66 = vld [vmem:[%s46 + $0x98] sm:$0xff]
      %v67 = vld [vmem:[%s46 + $0xa0] sm:$0xff]
      %v68 = vld [vmem:[%s46 + $0xa8] sm:$0xff]
      %v69 = vld [vmem:[%s46 + $0xb0] sm:$0xff]
      %v70 = vld [vmem:[%s46 + $0xb8] sm:$0xff]
      %v71 = vld [vmem:[%s46 + $0xc0] sm:$0xff]
      %v72 = vld [vmem:[%s46 + $0xc8] sm:$0xff]
      %v73 = vld [vmem:[%s46 + $0xd0] sm:$0xff]
      %v74 = vld [vmem:[%s46 + $0xd8] sm:$0xff]
      %v75 = vld [vmem:[%s46 + $0xe0] sm:$0xff]
      %v76 = vld [vmem:[%s46 + $0xe8] sm:$0xff]
      %v77 = vld [vmem:[%s46 + $0xf0] sm:$0xf]
      %v78 = vld [vmem:[%s1] sm:$0xff]
      %v79 = vld [vmem:[%s1 + $0x8] sm:$0xff]
      %v80 = vld [vmem:[%s1 + $0x10] sm:$0xff]
      %v81 = vld [vmem:[%s1 + $0x18] sm:$0xff]
      %v82 = vld [vmem:[%s1 + $0x20] sm:$0xff]
      %v83 = vld [vmem:[%s1 + $0x28] sm:$0xff]
      %v84 = vld [vmem:[%s1 + $0x30] sm:$0xff]
      %v85 = vld [vmem:[%s1 + $0x38] sm:$0xff]
      %v86 = vld [vmem:[%s46 + $0x1] sm:$0xff]
      %v87 = vld [vmem:[%s46 + $0x9] sm:$0xff]
      %v88 = vld [vmem:[%s46 + $0x11] sm:$0xff]
      %v89 = vld [vmem:[%s46 + $0x19] sm:$0xff]
      %v90 = vld [vmem:[%s46 + $0x21] sm:$0xff]
      %v91 = vld [vmem:[%s46 + $0x29] sm:$0xff]
      %v92 = vld [vmem:[%s46 + $0x31] sm:$0xff]
      %v93 = vld [vmem:[%s46 + $0x39] sm:$0xff]
      %v94 = vld [vmem:[%s46 + $0x41] sm:$0xff]
      %v95 = vld [vmem:[%s46 + $0x49] sm:$0xff]
      %v96 = vld [vmem:[%s46 + $0x51] sm:$0xff]
      %v97 = vld [vmem:[%s46 + $0x59] sm:$0xff]
      %v98 = vld [vmem:[%s46 + $0x61] sm:$0xff]
      %v99 = vld [vmem:[%s46 + $0x69] sm:$0xff]
      %v100 = vld [vmem:[%s46 + $0x71] sm:$0xff]
      %v101 = vld [vmem:[%s46 + $0x79] sm:$0xff]
      %v102 = vld [vmem:[%s46 + $0x81] sm:$0xff]
      %v103 = vld [vmem:[%s46 + $0x89] sm:$0xff]
      %v104 = vld [vmem:[%s46 + $0x91] sm:$0xff]
      %v105 = vld [vmem:[%s46 + $0x99] sm:$0xff]
      %v106 = vld [vmem:[%s46 + $0xa1] sm:$0xff]
      %v107 = vld [vmem:[%s46 + $0xa9] sm:$0xff]
      %v108 = vld [vmem:[%s46 + $0xb1] sm:$0xff]
      %v109 = vld [vmem:[%s46 + $0xb9] sm:$0xff]
      %v110 = vld [vmem:[%s46 + $0xc1] sm:$0xff]
      %v111 = vld [vmem:[%s46 + $0xc9] sm:$0xff]
      %v112 = vld [vmem:[%s46 + $0xd1] sm:$0xff]
      %v113 = vld [vmem:[%s46 + $0xd9] sm:$0xff]
      %v114 = vld [vmem:[%s46 + $0xe1] sm:$0xff]
      %v115 = vld [vmem:[%s46 + $0xe9] sm:$0xff]
      %v116 = vld [vmem:[%s46 + $0xf1] sm:$0xf]
      %s117 = scalar_lea.vmem %s1, 64
      %v118 = vld [vmem:[%s117] sm:$0xff]
      %v119 = vld [vmem:[%s117 + $0x8] sm:$0xff]
      %v120 = vld [vmem:[%s117 + $0x10] sm:$0xff]
      %v121 = vld [vmem:[%s117 + $0x18] sm:$0xff]
      %v122 = vld [vmem:[%s117 + $0x20] sm:$0xff]
      %v123 = vld [vmem:[%s117 + $0x28] sm:$0xff]
      %v124 = vld [vmem:[%s117 + $0x30] sm:$0xff]
      %v125 = vld [vmem:[%s117 + $0x38] sm:$0xff]
      %vm126 = vcmask 523264
      %v128 = vsel %vm126, %v86, 0
      %v131 = vsel %vm126, %v87, 0
      %v134 = vsel %vm126, %v88, 0
      %v137 = vsel %vm126, %v89, 0
      %v140 = vsel %vm126, %v90, 0
      %v143 = vsel %vm126, %v91, 0
      %v146 = vsel %vm126, %v92, 0
      %v149 = vsel %vm126, %v93, 0
      %v152 = vsel %vm126, %v94, 0
      %v155 = vsel %vm126, %v95, 0
      %v158 = vsel %vm126, %v96, 0
      %v161 = vsel %vm126, %v97, 0
      %v164 = vsel %vm126, %v98, 0
      %v167 = vsel %vm126, %v99, 0
      %v170 = vsel %vm126, %v100, 0
      %v173 = vsel %vm126, %v101, 0
      %v176 = vsel %vm126, %v102, 0
      %v179 = vsel %vm126, %v103, 0
      %v182 = vsel %vm126, %v104, 0
      %v185 = vsel %vm126, %v105, 0
      %v188 = vsel %vm126, %v106, 0
      %v191 = vsel %vm126, %v107, 0
      %v194 = vsel %vm126, %v108, 0
      %v197 = vsel %vm126, %v109, 0
      %v200 = vsel %vm126, %v110, 0
      %v203 = vsel %vm126, %v111, 0
      %v206 = vsel %vm126, %v112, 0
      %v209 = vsel %vm126, %v113, 0
      %v212 = vsel %vm126, %v114, 0
      %v215 = vsel %vm126, %v115, 0
      %v218 = vsel %vm126, %v116, 0
      %220 = vmatprep.subr.mxu0 0.0
      %221 = vmatpush1.msra.mxu0 %v118
      %222 = vmatprep.subr.mxu0 0.0
      %223 = vmatpush1.msra.mxu0 %v119
      %224 = vmatprep.subr.mxu0 0.0
      %225 = vmatpush1.msra.mxu0 %v120
      %226 = vmatprep.subr.mxu0 0.0
      %227 = vmatpush1.msra.mxu0 %v121
      %228 = vmatprep.subr.mxu0 0.0
      %229 = vmatpush1.msra.mxu0 %v122
      %230 = vmatprep.subr.mxu0 0.0
      %231 = vmatpush1.msra.mxu0 %v123
      %232 = vmatprep.subr.mxu0 0.0
      %233 = vmatpush1.msra.mxu0 %v124
      %234 = vmatprep.subr.mxu0 0.0
      %235 = vmatpush1.msra.mxu0 %v125
      %236 = vmatprep.subr.mxu0 0.0
      %237 = vmatpush1.msra.mxu0 0.0
      %238 = vmatprep.subr.mxu0 0.0
      %239 = vmatpush1.msra.mxu0 0.0
      %240 = vmatprep.subr.mxu0 0.0
      %241 = vmatpush1.msra.mxu0 0.0
      %242 = vmatprep.subr.mxu0 0.0
      %243 = vmatpush1.msra.mxu0 0.0
      %244 = vmatprep.subr.mxu0 0.0
      %245 = vmatpush1.msra.mxu0 0.0
      %246 = vmatprep.subr.mxu0 0.0
      %247 = vmatpush1.msra.mxu0 0.0
      %248 = vmatprep.subr.mxu0 0.0
      %249 = vmatpush1.msra.mxu0 0.0
      %250 = vmatprep.subr.mxu0 0.0
      %251 = vmatpush1.msra.mxu0 0.0
      %252 = vmatprep.subr.mxu0 0.0
      %253 = vmatpush1.msra.mxu0 0.0
      %254 = vmatprep.subr.mxu0 0.0
      %255 = vmatpush1.msra.mxu0 0.0
      %256 = vmatprep.subr.mxu0 0.0
      %257 = vmatpush1.msra.mxu0 0.0
      %258 = vmatprep.subr.mxu0 0.0
      %259 = vmatpush1.msra.mxu0 0.0
      %260 = vmatprep.subr.mxu0 0.0
      %261 = vmatpush1.msra.mxu0 0.0
      %262 = vmatprep.subr.mxu0 0.0
      %263 = vmatpush1.msra.mxu0 0.0
      %264 = vmatprep.subr.mxu0 0.0
      %265 = vmatpush1.msra.mxu0 0.0
      %266 = vmatprep.subr.mxu0 0.0
      %267 = vmatpush1.msra.mxu0 0.0
      %268 = vmatprep.subr.mxu0 0.0
      %269 = vmatpush1.msra.mxu0 0.0
      %270 = vmatprep.subr.mxu0 0.0
      %271 = vmatpush1.msra.mxu0 0.0
      %272 = vmatprep.subr.mxu0 0.0
      %273 = vmatpush1.msra.mxu0 0.0
      %274 = vmatprep.subr.mxu0 0.0
      %275 = vmatpush1.msra.mxu0 0.0
      %276 = vmatprep.subr.mxu0 0.0
      %277 = vmatpush1.msra.mxu0 0.0
      %278 = vmatprep.subr.mxu0 0.0
      %279 = vmatpush1.msra.mxu0 0.0
      %280 = vmatprep.subr.mxu0 0.0
      %281 = vmatpush1.msra.mxu0 0.0
      %282 = vmatprep.subr.mxu0 0.0
      %283 = vmatpush1.msra.mxu0 0.0
      %284 = vmatprep.mubr.f32.mxu0 0.0
      %285 = vmatmul.mubr.f32.gmra.mrb[0].mxu0 %v128
      %v286 = vpop.f32.mrb[0].mxu0
      %v287 = vadd.f32 0.0, %v286
      %v288 = vpop.f32.mrb[0].mxu0
      %289 = vmatprep.mubr.f32.mxu0 0.0
      %290 = vmatmul.mubr.f32.gmra.mrb[0].mxu0 %v131
      %v291 = vpop.f32.mrb[0].mxu0
      %v292 = vadd.f32 0.0, %v291
      %v293 = vpop.f32.mrb[0].mxu0
      %294 = vmatprep.mubr.f32.mxu0 0.0
      %295 = vmatmul.mubr.f32.gmra.mrb[0].mxu0 %v134
      %v296 = vpop.f32.mrb[0].mxu0
      %v297 = vadd.f32 0.0, %v296
      %v298 = vpop.f32.mrb[0].mxu0
      %299 = vmatprep.mubr.f32.mxu0 0.0
      %300 = vmatmul.mubr.f32.gmra.mrb[0].mxu0 %v137
      %v301 = vpop.f32.mrb[0].mxu0
      %v302 = vadd.f32 0.0, %v301
      %v303 = vpop.f32.mrb[0].mxu0
      %304 = vmatprep.mubr.f32.mxu0 0.0
      %305 = vmatmul.mubr.f32.gmra.mrb[0].mxu0 %v140
      %v306 = vpop.f32.mrb[0].mxu0
      %v307 = vadd.f32 0.0, %v306
      %v308 = vpop.f32.mrb[0].mxu0
      %309 = vmatprep.mubr.f32.mxu0 0.0
      %310 = vmatmul.mubr.f32.gmra.mrb[0].mxu0 %v143
      %v311 = vpop.f32.mrb[0].mxu0
      %v312 = vadd.f32 0.0, %v311
      %v313 = vpop.f32.mrb[0].mxu0
      %314 = vmatprep.mubr.f32.mxu0 0.0
      %315 = vmatmul.mubr.f32.gmra.mrb[0].mxu0 %v146
      %v316 = vpop.f32.mrb[0].mxu0
      %v317 = vadd.f32 0.0, %v316
      %v318 = vpop.f32.mrb[0].mxu0
      %319 = vmatprep.mubr.f32.mxu0 0.0
      %320 = vmatmul.mubr.f32.gmra.mrb[0].mxu0 %v149
      %v321 = vpop.f32.mrb[0].mxu0
      %v322 = vadd.f32 0.0, %v321
      %v323 = vpop.f32.mrb[0].mxu0
      %324 = vmatprep.mubr.f32.mxu0 0.0
      %325 = vmatmul.mubr.f32.gmra.mrb[0].mxu0 %v152
      %v326 = vpop.f32.mrb[0].mxu0
      %v327 = vadd.f32 0.0, %v326
      %v328 = vpop.f32.mrb[0].mxu0
      %329 = vmatprep.mubr.f32.mxu0 0.0
      %330 = vmatmul.mubr.f32.gmra.mrb[0].mxu0 %v155
      %v331 = vpop.f32.mrb[0].mxu0
      %v332 = vadd.f32 0.0, %v331
      %v333 = vpop.f32.mrb[0].mxu0
      %334 = vmatprep.mubr.f32.mxu0 0.0
      %335 = vmatmul.mubr.f32.gmra.mrb[0].mxu0 %v158
      %v336 = vpop.f32.mrb[0].mxu0
      %v337 = vadd.f32 0.0, %v336
      %v338 = vpop.f32.mrb[0].mxu0
      %339 = vmatprep.mubr.f32.mxu0 0.0
      %340 = vmatmul.mubr.f32.gmra.mrb[0].mxu0 %v161
      %v341 = vpop.f32.mrb[0].mxu0
      %v342 = vadd.f32 0.0, %v341
      %v343 = vpop.f32.mrb[0].mxu0
      %344 = vmatprep.mubr.f32.mxu0 0.0
      %345 = vmatmul.mubr.f32.gmra.mrb[0].mxu0 %v164
      %v346 = vpop.f32.mrb[0].mxu0
      %v347 = vadd.f32 0.0, %v346
      %v348 = vpop.f32.mrb[0].mxu0
      %349 = vmatprep.mubr.f32.mxu0 0.0
      %350 = vmatmul.mubr.f32.gmra.mrb[0].mxu0 %v167
      %v351 = vpop.f32.mrb[0].mxu0
      %v352 = vadd.f32 0.0, %v351
      %v353 = vpop.f32.mrb[0].mxu0
      %354 = vmatprep.mubr.f32.mxu0 0.0
      %355 = vmatmul.mubr.f32.gmra.mrb[0].mxu0 %v170
      %v356 = vpop.f32.mrb[0].mxu0
      %v357 = vadd.f32 0.0, %v356
      %v358 = vpop.f32.mrb[0].mxu0
      %359 = vmatprep.mubr.f32.mxu0 0.0
      %360 = vmatmul.mubr.f32.gmra.mrb[0].mxu0 %v173
      %v361 = vpop.f32.mrb[0].mxu0
      %v362 = vadd.f32 0.0, %v361
      %v363 = vpop.f32.mrb[0].mxu0
      %364 = vmatprep.mubr.f32.mxu0 0.0
      %365 = vmatmul.mubr.f32.gmra.mrb[0].mxu0 %v176
      %v366 = vpop.f32.mrb[0].mxu0
      %v367 = vadd.f32 0.0, %v366
      %v368 = vpop.f32.mrb[0].mxu0
      %369 = vmatprep.mubr.f32.mxu0 0.0
      %370 = vmatmul.mubr.f32.gmra.mrb[0].mxu0 %v179
      %v371 = vpop.f32.mrb[0].mxu0
      %v372 = vadd.f32 0.0, %v371
      %v373 = vpop.f32.mrb[0].mxu0
      %374 = vmatprep.mubr.f32.mxu0 0.0
      %375 = vmatmul.mubr.f32.gmra.mrb[0].mxu0 %v182
      %v376 = vpop.f32.mrb[0].mxu0
      %v377 = vadd.f32 0.0, %v376
      %v378 = vpop.f32.mrb[0].mxu0
      %379 = vmatprep.mubr.f32.mxu0 0.0
      %380 = vmatmul.mubr.f32.gmra.mrb[0].mxu0 %v185
      %v381 = vpop.f32.mrb[0].mxu0
      %v382 = vadd.f32 0.0, %v381
      %v383 = vpop.f32.mrb[0].mxu0
      %384 = vmatprep.mubr.f32.mxu0 0.0
      %385 = vmatmul.mubr.f32.gmra.mrb[0].mxu0 %v188
      %v386 = vpop.f32.mrb[0].mxu0
      %v387 = vadd.f32 0.0, %v386
      %v388 = vpop.f32.mrb[0].mxu0
      %389 = vmatprep.mubr.f32.mxu0 0.0
      %390 = vmatmul.mubr.f32.gmra.mrb[0].mxu0 %v191
      %v391 = vpop.f32.mrb[0].mxu0
      %v392 = vadd.f32 0.0, %v391
      %v393 = vpop.f32.mrb[0].mxu0
      %394 = vmatprep.mubr.f32.mxu0 0.0
      %395 = vmatmul.mubr.f32.gmra.mrb[0].mxu0 %v194
      %v396 = vpop.f32.mrb[0].mxu0
      %v397 = vadd.f32 0.0, %v396
      %v398 = vpop.f32.mrb[0].mxu0
      %399 = vmatprep.mubr.f32.mxu0 0.0
      %400 = vmatmul.mubr.f32.gmra.mrb[0].mxu0 %v197
      %v401 = vpop.f32.mrb[0].mxu0
      %v402 = vadd.f32 0.0, %v401
      %v403 = vpop.f32.mrb[0].mxu0
      %404 = vmatprep.mubr.f32.mxu0 0.0
      %405 = vmatmul.mubr.f32.gmra.mrb[0].mxu0 %v200
      %v406 = vpop.f32.mrb[0].mxu0
      %v407 = vadd.f32 0.0, %v406
      %v408 = vpop.f32.mrb[0].mxu0
      %409 = vmatprep.mubr.f32.mxu0 0.0
      %410 = vmatmul.mubr.f32.gmra.mrb[0].mxu0 %v203
      %v411 = vpop.f32.mrb[0].mxu0
      %v412 = vadd.f32 0.0, %v411
      %v413 = vpop.f32.mrb[0].mxu0
      %414 = vmatprep.mubr.f32.mxu0 0.0
      %415 = vmatmul.mubr.f32.gmra.mrb[0].mxu0 %v206
      %v416 = vpop.f32.mrb[0].mxu0
      %v417 = vadd.f32 0.0, %v416
      %v418 = vpop.f32.mrb[0].mxu0
      %419 = vmatprep.mubr.f32.mxu0 0.0
      %420 = vmatmul.mubr.f32.gmra.mrb[0].mxu0 %v209
      %v421 = vpop.f32.mrb[0].mxu0
      %v422 = vadd.f32 0.0, %v421
      %v423 = vpop.f32.mrb[0].mxu0
      %424 = vmatprep.mubr.f32.mxu0 0.0
      %425 = vmatmul.mubr.f32.gmra.mrb[0].mxu0 %v212
      %v426 = vpop.f32.mrb[0].mxu0
      %v427 = vadd.f32 0.0, %v426
      %v428 = vpop.f32.mrb[0].mxu0
      %429 = vmatprep.mubr.f32.mxu0 0.0
      %430 = vmatmul.mubr.f32.gmra.mrb[0].mxu0 %v215
      %v431 = vpop.f32.mrb[0].mxu0
      %v432 = vadd.f32 0.0, %v431
      %v433 = vpop.f32.mrb[0].mxu0
      %434 = vmatprep.mubr.f32.mxu0 0.0
      %435 = vmatmul.mubr.f32.gmra.mrb[0].mxu0 %v218
      %v436 = vpop.f32.mrb[0].mxu0
      %v437 = vadd.f32 0.0, %v436
      %v438 = vpop.f32.mrb[0].mxu0
      %439 = vdwg.mxu0
      %v441 = vsel %vm126, %v47, 0
      %v444 = vsel %vm126, %v48, 0
      %v447 = vsel %vm126, %v49, 0
      %v450 = vsel %vm126, %v50, 0
      %v453 = vsel %vm126, %v51, 0
      %v456 = vsel %vm126, %v52, 0
      %v459 = vsel %vm126, %v53, 0
      %v462 = vsel %vm126, %v54, 0
      %v465 = vsel %vm126, %v55, 0
      %v468 = vsel %vm126, %v56, 0
      %v471 = vsel %vm126, %v57, 0
      %v474 = vsel %vm126, %v58, 0
      %v477 = vsel %vm126, %v59, 0
      %v480 = vsel %vm126, %v60, 0
      %v483 = vsel %vm126, %v61, 0
      %v486 = vsel %vm126, %v62, 0
      %v489 = vsel %vm126, %v63, 0
      %v492 = vsel %vm126, %v64, 0
      %v495 = vsel %vm126, %v65, 0
      %v498 = vsel %vm126, %v66, 0
      %v501 = vsel %vm126, %v67, 0
      %v504 = vsel %vm126, %v68, 0
      %v507 = vsel %vm126, %v69, 0
      %v510 = vsel %vm126, %v70, 0
      %v513 = vsel %vm126, %v71, 0
      %v516 = vsel %vm126, %v72, 0
      %v519 = vsel %vm126, %v73, 0
      %v522 = vsel %vm126, %v74, 0
      %v525 = vsel %vm126, %v75, 0
      %v528 = vsel %vm126, %v76, 0
      %v531 = vsel %vm126, %v77, 0
      %533 = vmatprep.subr.mxu0 0.0
      %534 = vmatpush1.msra.mxu0 %v78
      %535 = vmatprep.subr.mxu0 0.0
      %536 = vmatpush1.msra.mxu0 %v79
      %537 = vmatprep.subr.mxu0 0.0
      %538 = vmatpush1.msra.mxu0 %v80
      %539 = vmatprep.subr.mxu0 0.0
      %540 = vmatpush1.msra.mxu0 %v81
      %541 = vmatprep.subr.mxu0 0.0
      %542 = vmatpush1.msra.mxu0 %v82
      %543 = vmatprep.subr.mxu0 0.0
      %544 = vmatpush1.msra.mxu0 %v83
      %545 = vmatprep.subr.mxu0 0.0
      %546 = vmatpush1.msra.mxu0 %v84
      %547 = vmatprep.subr.mxu0 0.0
      %548 = vmatpush1.msra.mxu0 %v85
      %549 = vmatprep.subr.mxu0 0.0
      %550 = vmatpush1.msra.mxu0 0.0
      %551 = vmatprep.subr.mxu0 0.0
      %552 = vmatpush1.msra.mxu0 0.0
      %553 = vmatprep.subr.mxu0 0.0
      %554 = vmatpush1.msra.mxu0 0.0
      %555 = vmatprep.subr.mxu0 0.0
      %556 = vmatpush1.msra.mxu0 0.0
      %557 = vmatprep.subr.mxu0 0.0
      %558 = vmatpush1.msra.mxu0 0.0
      %559 = vmatprep.subr.mxu0 0.0
      %560 = vmatpush1.msra.mxu0 0.0
      %561 = vmatprep.subr.mxu0 0.0
      %562 = vmatpush1.msra.mxu0 0.0
      %563 = vmatprep.subr.mxu0 0.0
      %564 = vmatpush1.msra.mxu0 0.0
      %565 = vmatprep.subr.mxu0 0.0
      %566 = vmatpush1.msra.mxu0 0.0
      %567 = vmatprep.subr.mxu0 0.0
      %568 = vmatpush1.msra.mxu0 0.0
      %569 = vmatprep.subr.mxu0 0.0
      %570 = vmatpush1.msra.mxu0 0.0
      %571 = vmatprep.subr.mxu0 0.0
      %572 = vmatpush1.msra.mxu0 0.0
      %573 = vmatprep.subr.mxu0 0.0
      %574 = vmatpush1.msra.mxu0 0.0
      %575 = vmatprep.subr.mxu0 0.0
      %576 = vmatpush1.msra.mxu0 0.0
      %577 = vmatprep.subr.mxu0 0.0
      %578 = vmatpush1.msra.mxu0 0.0
      %579 = vmatprep.subr.mxu0 0.0
      %580 = vmatpush1.msra.mxu0 0.0
      %581 = vmatprep.subr.mxu0 0.0
      %582 = vmatpush1.msra.mxu0 0.0
      %583 = vmatprep.subr.mxu0 0.0
      %584 = vmatpush1.msra.mxu0 0.0
      %585 = vmatprep.subr.mxu0 0.0
      %586 = vmatpush1.msra.mxu0 0.0
      %587 = vmatprep.subr.mxu0 0.0
      %588 = vmatpush1.msra.mxu0 0.0
      %589 = vmatprep.subr.mxu0 0.0
      %590 = vmatpush1.msra.mxu0 0.0
      %591 = vmatprep.subr.mxu0 0.0
      %592 = vmatpush1.msra.mxu0 0.0
      %593 = vmatprep.subr.mxu0 0.0
      %594 = vmatpush1.msra.mxu0 0.0
      %595 = vmatprep.subr.mxu0 0.0
      %596 = vmatpush1.msra.mxu0 0.0
      %597 = vmatprep.mubr.f32.mxu0 0.0
      %598 = vmatmul.mubr.f32.gmra.mrb[0].mxu0 %v441
      %v599 = vpop.f32.mrb[0].mxu0
      %v600 = vadd.f32 %v287, %v599
      %v601 = vpop.f32.mrb[0].mxu0
      %602 = vmatprep.mubr.f32.mxu0 0.0
      %603 = vmatmul.mubr.f32.gmra.mrb[0].mxu0 %v444
      %v604 = vpop.f32.mrb[0].mxu0
      %v605 = vadd.f32 %v292, %v604
      %v606 = vpop.f32.mrb[0].mxu0
      %607 = vmatprep.mubr.f32.mxu0 0.0
      %608 = vmatmul.mubr.f32.gmra.mrb[0].mxu0 %v447
      %v609 = vpop.f32.mrb[0].mxu0
      %v610 = vadd.f32 %v297, %v609
      %v611 = vpop.f32.mrb[0].mxu0
      %612 = vmatprep.mubr.f32.mxu0 0.0
      %613 = vmatmul.mubr.f32.gmra.mrb[0].mxu0 %v450
      %v614 = vpop.f32.mrb[0].mxu0
      %v615 = vadd.f32 %v302, %v614
      %v616 = vpop.f32.mrb[0].mxu0
      %617 = vmatprep.mubr.f32.mxu0 0.0
      %618 = vmatmul.mubr.f32.gmra.mrb[0].mxu0 %v453
      %v619 = vpop.f32.mrb[0].mxu0
      %v620 = vadd.f32 %v307, %v619
      %v621 = vpop.f32.mrb[0].mxu0
      %622 = vmatprep.mubr.f32.mxu0 0.0
      %623 = vmatmul.mubr.f32.gmra.mrb[0].mxu0 %v456
      %v624 = vpop.f32.mrb[0].mxu0
      %v625 = vadd.f32 %v312, %v624
      %v626 = vpop.f32.mrb[0].mxu0
      %627 = vmatprep.mubr.f32.mxu0 0.0
      %628 = vmatmul.mubr.f32.gmra.mrb[0].mxu0 %v459
      %v629 = vpop.f32.mrb[0].mxu0
      %v630 = vadd.f32 %v317, %v629
      %v631 = vpop.f32.mrb[0].mxu0
      %632 = vmatprep.mubr.f32.mxu0 0.0
      %633 = vmatmul.mubr.f32.gmra.mrb[0].mxu0 %v462
      %v634 = vpop.f32.mrb[0].mxu0
      %v635 = vadd.f32 %v322, %v634
      %v636 = vpop.f32.mrb[0].mxu0
      %637 = vmatprep.mubr.f32.mxu0 0.0
      %638 = vmatmul.mubr.f32.gmra.mrb[0].mxu0 %v465
      %v639 = vpop.f32.mrb[0].mxu0
      %v640 = vadd.f32 %v327, %v639
      %v641 = vpop.f32.mrb[0].mxu0
      %642 = vmatprep.mubr.f32.mxu0 0.0
      %643 = vmatmul.mubr.f32.gmra.mrb[0].mxu0 %v468
      %v644 = vpop.f32.mrb[0].mxu0
      %v645 = vadd.f32 %v332, %v644
      %v646 = vpop.f32.mrb[0].mxu0
      %647 = vmatprep.mubr.f32.mxu0 0.0
      %648 = vmatmul.mubr.f32.gmra.mrb[0].mxu0 %v471
      %v649 = vpop.f32.mrb[0].mxu0
      %v650 = vadd.f32 %v337, %v649
      %v651 = vpop.f32.mrb[0].mxu0
      %652 = vmatprep.mubr.f32.mxu0 0.0
      %653 = vmatmul.mubr.f32.gmra.mrb[0].mxu0 %v474
      %v654 = vpop.f32.mrb[0].mxu0
      %v655 = vadd.f32 %v342, %v654
      %v656 = vpop.f32.mrb[0].mxu0
      %657 = vmatprep.mubr.f32.mxu0 0.0
      %658 = vmatmul.mubr.f32.gmra.mrb[0].mxu0 %v477
      %v659 = vpop.f32.mrb[0].mxu0
      %v660 = vadd.f32 %v347, %v659
      %v661 = vpop.f32.mrb[0].mxu0
      %662 = vmatprep.mubr.f32.mxu0 0.0
      %663 = vmatmul.mubr.f32.gmra.mrb[0].mxu0 %v480
      %v664 = vpop.f32.mrb[0].mxu0
      %v665 = vadd.f32 %v352, %v664
      %v666 = vpop.f32.mrb[0].mxu0
      %667 = vmatprep.mubr.f32.mxu0 0.0
      %668 = vmatmul.mubr.f32.gmra.mrb[0].mxu0 %v483
      %v669 = vpop.f32.mrb[0].mxu0
      %v670 = vadd.f32 %v357, %v669
      %v671 = vpop.f32.mrb[0].mxu0
      %672 = vmatprep.mubr.f32.mxu0 0.0
      %673 = vmatmul.mubr.f32.gmra.mrb[0].mxu0 %v486
      %v674 = vpop.f32.mrb[0].mxu0
      %v675 = vadd.f32 %v362, %v674
      %v676 = vpop.f32.mrb[0].mxu0
      %677 = vmatprep.mubr.f32.mxu0 0.0
      %678 = vmatmul.mubr.f32.gmra.mrb[0].mxu0 %v489
      %v679 = vpop.f32.mrb[0].mxu0
      %v680 = vadd.f32 %v367, %v679
      %v681 = vpop.f32.mrb[0].mxu0
      %682 = vmatprep.mubr.f32.mxu0 0.0
      %683 = vmatmul.mubr.f32.gmra.mrb[0].mxu0 %v492
      %v684 = vpop.f32.mrb[0].mxu0
      %v685 = vadd.f32 %v372, %v684
      %v686 = vpop.f32.mrb[0].mxu0
      %687 = vmatprep.mubr.f32.mxu0 0.0
      %688 = vmatmul.mubr.f32.gmra.mrb[0].mxu0 %v495
      %v689 = vpop.f32.mrb[0].mxu0
      %v690 = vadd.f32 %v377, %v689
      %v691 = vpop.f32.mrb[0].mxu0
      %692 = vmatprep.mubr.f32.mxu0 0.0
      %693 = vmatmul.mubr.f32.gmra.mrb[0].mxu0 %v498
      %v694 = vpop.f32.mrb[0].mxu0
      %v695 = vadd.f32 %v382, %v694
      %v696 = vpop.f32.mrb[0].mxu0
      %697 = vmatprep.mubr.f32.mxu0 0.0
      %698 = vmatmul.mubr.f32.gmra.mrb[0].mxu0 %v501
      %v699 = vpop.f32.mrb[0].mxu0
      %v700 = vadd.f32 %v387, %v699
      %v701 = vpop.f32.mrb[0].mxu0
      %702 = vmatprep.mubr.f32.mxu0 0.0
      %703 = vmatmul.mubr.f32.gmra.mrb[0].mxu0 %v504
      %v704 = vpop.f32.mrb[0].mxu0
      %v705 = vadd.f32 %v392, %v704
      %v706 = vpop.f32.mrb[0].mxu0
      %707 = vmatprep.mubr.f32.mxu0 0.0
      %708 = vmatmul.mubr.f32.gmra.mrb[0].mxu0 %v507
      %v709 = vpop.f32.mrb[0].mxu0
      %v710 = vadd.f32 %v397, %v709
      %v711 = vpop.f32.mrb[0].mxu0
      %712 = vmatprep.mubr.f32.mxu0 0.0
      %713 = vmatmul.mubr.f32.gmra.mrb[0].mxu0 %v510
      %v714 = vpop.f32.mrb[0].mxu0
      %v715 = vadd.f32 %v402, %v714
      %v716 = vpop.f32.mrb[0].mxu0
      %717 = vmatprep.mubr.f32.mxu0 0.0
      %718 = vmatmul.mubr.f32.gmra.mrb[0].mxu0 %v513
      %v719 = vpop.f32.mrb[0].mxu0
      %v720 = vadd.f32 %v407, %v719
      %v721 = vpop.f32.mrb[0].mxu0
      %722 = vmatprep.mubr.f32.mxu0 0.0
      %723 = vmatmul.mubr.f32.gmra.mrb[0].mxu0 %v516
      %v724 = vpop.f32.mrb[0].mxu0
      %v725 = vadd.f32 %v412, %v724
      %v726 = vpop.f32.mrb[0].mxu0
      %727 = vmatprep.mubr.f32.mxu0 0.0
      %728 = vmatmul.mubr.f32.gmra.mrb[0].mxu0 %v519
      %v729 = vpop.f32.mrb[0].mxu0
      %v730 = vadd.f32 %v417, %v729
      %v731 = vpop.f32.mrb[0].mxu0
      %732 = vmatprep.mubr.f32.mxu0 0.0
      %733 = vmatmul.mubr.f32.gmra.mrb[0].mxu0 %v522
      %v734 = vpop.f32.mrb[0].mxu0
      %v735 = vadd.f32 %v422, %v734
      %v736 = vpop.f32.mrb[0].mxu0
      %737 = vmatprep.mubr.f32.mxu0 0.0
      %738 = vmatmul.mubr.f32.gmra.mrb[0].mxu0 %v525
      %v739 = vpop.f32.mrb[0].mxu0
      %v740 = vadd.f32 %v427, %v739
      %v741 = vpop.f32.mrb[0].mxu0
      %742 = vmatprep.mubr.f32.mxu0 0.0
      %743 = vmatmul.mubr.f32.gmra.mrb[0].mxu0 %v528
      %v744 = vpop.f32.mrb[0].mxu0
      %v745 = vadd.f32 %v432, %v744
      %v746 = vpop.f32.mrb[0].mxu0
      %747 = vmatprep.mubr.f32.mxu0 0.0
      %748 = vmatmul.mubr.f32.gmra.mrb[0].mxu0 %v531
      %v749 = vpop.f32.mrb[0].mxu0
      %v750 = vadd.f32 %v437, %v749
      %v751 = vpop.f32.mrb[0].mxu0
      %752 = vdwg.mxu0
      %v753 = vld [vmem:[%s46 + $0x2] sm:$0xff]
      %v754 = vld [vmem:[%s46 + $0xa] sm:$0xff]
      %v755 = vld [vmem:[%s46 + $0x12] sm:$0xff]
      %v756 = vld [vmem:[%s46 + $0x1a] sm:$0xff]
      %v757 = vld [vmem:[%s46 + $0x22] sm:$0xff]
      %v758 = vld [vmem:[%s46 + $0x2a] sm:$0xff]
      %v759 = vld [vmem:[%s46 + $0x32] sm:$0xff]
      %v760 = vld [vmem:[%s46 + $0x3a] sm:$0xff]
      %v761 = vld [vmem:[%s46 + $0x42] sm:$0xff]
      %v762 = vld [vmem:[%s46 + $0x4a] sm:$0xff]
      %v763 = vld [vmem:[%s46 + $0x52] sm:$0xff]
      %v764 = vld [vmem:[%s46 + $0x5a] sm:$0xff]
      %v765 = vld [vmem:[%s46 + $0x62] sm:$0xff]
      %v766 = vld [vmem:[%s46 + $0x6a] sm:$0xff]
      %v767 = vld [vmem:[%s46 + $0x72] sm:$0xff]
      %v768 = vld [vmem:[%s46 + $0x7a] sm:$0xff]
      %v769 = vld [vmem:[%s46 + $0x82] sm:$0xff]
      %v770 = vld [vmem:[%s46 + $0x8a] sm:$0xff]
      %v771 = vld [vmem:[%s46 + $0x92] sm:$0xff]
      %v772 = vld [vmem:[%s46 + $0x9a] sm:$0xff]
      %v773 = vld [vmem:[%s46 + $0xa2] sm:$0xff]
      %v774 = vld [vmem:[%s46 + $0xaa] sm:$0xff]
      %v775 = vld [vmem:[%s46 + $0xb2] sm:$0xff]
      %v776 = vld [vmem:[%s46 + $0xba] sm:$0xff]
      %v777 = vld [vmem:[%s46 + $0xc2] sm:$0xff]
      %v778 = vld [vmem:[%s46 + $0xca] sm:$0xff]
      %v779 = vld [vmem:[%s46 + $0xd2] sm:$0xff]
      %v780 = vld [vmem:[%s46 + $0xda] sm:$0xff]
      %v781 = vld [vmem:[%s46 + $0xe2] sm:$0xff]
      %v782 = vld [vmem:[%s46 + $0xea] sm:$0xff]
      %v783 = vld [vmem:[%s46 + $0xf2] sm:$0xf]
      %s784 = scalar_lea.vmem %s1, 128
      %v785 = vld [vmem:[%s784] sm:$0xff]
      %v786 = vld [vmem:[%s784 + $0x8] sm:$0xff]
      %v787 = vld [vmem:[%s784 + $0x10] sm:$0xff]
      %v788 = vld [vmem:[%s784 + $0x18] sm:$0xff]
      %v789 = vld [vmem:[%s784 + $0x20] sm:$0xff]
      %v790 = vld [vmem:[%s784 + $0x28] sm:$0xff]
      %v791 = vld [vmem:[%s784 + $0x30] sm:$0xff]
      %v792 = vld [vmem:[%s784 + $0x38] sm:$0xff]
      %v794 = vsel %vm126, %v753, 0
      %v797 = vsel %vm126, %v754, 0
      %v800 = vsel %vm126, %v755, 0
      %v803 = vsel %vm126, %v756, 0
      %v806 = vsel %vm126, %v757, 0
      %v809 = vsel %vm126, %v758, 0
      %v812 = vsel %vm126, %v759, 0
      %v815 = vsel %vm126, %v760, 0
      %v818 = vsel %vm126, %v761, 0
      %v821 = vsel %vm126, %v762, 0
      %v824 = vsel %vm126, %v763, 0
      %v827 = vsel %vm126, %v764, 0
      %v830 = vsel %vm126, %v765, 0
      %v833 = vsel %vm126, %v766, 0
      %v836 = vsel %vm126, %v767, 0
      %v839 = vsel %vm126, %v768, 0
      %v842 = vsel %vm126, %v769, 0
      %v845 = vsel %vm126, %v770, 0
      %v848 = vsel %vm126, %v771, 0
      %v851 = vsel %vm126, %v772, 0
      %v854 = vsel %vm126, %v773, 0
      %v857 = vsel %vm126, %v774, 0
      %v860 = vsel %vm126, %v775, 0
      %v863 = vsel %vm126, %v776, 0
      %v866 = vsel %vm126, %v777, 0
      %v869 = vsel %vm126, %v778, 0
      %v872 = vsel %vm126, %v779, 0
      %v875 = vsel %vm126, %v780, 0
      %v878 = vsel %vm126, %v781, 0
      %v881 = vsel %vm126, %v782, 0
      %v884 = vsel %vm126, %v783, 0
      %886 = vmatprep.subr.mxu0 0.0
      %887 = vmatpush1.msra.mxu0 %v785
      %888 = vmatprep.subr.mxu0 0.0
      %889 = vmatpush1.msra.mxu0 %v786
      %890 = vmatprep.subr.mxu0 0.0
      %891 = vmatpush1.msra.mxu0 %v787
      %892 = vmatprep.subr.mxu0 0.0
      %893 = vmatpush1.msra.mxu0 %v788
      %894 = vmatprep.subr.mxu0 0.0
      %895 = vmatpush1.msra.mxu0 %v789
      %896 = vmatprep.subr.mxu0 0.0
      %897 = vmatpush1.msra.mxu0 %v790
      %898 = vmatprep.subr.mxu0 0.0
      %899 = vmatpush1.msra.mxu0 %v791
      %900 = vmatprep.subr.mxu0 0.0
      %901 = vmatpush1.msra.mxu0 %v792
      %902 = vmatprep.subr.mxu0 0.0
      %903 = vmatpush1.msra.mxu0 0.0
      %904 = vmatprep.subr.mxu0 0.0
      %905 = vmatpush1.msra.mxu0 0.0
      %906 = vmatprep.subr.mxu0 0.0
      %907 = vmatpush1.msra.mxu0 0.0
      %908 = vmatprep.subr.mxu0 0.0
      %909 = vmatpush1.msra.mxu0 0.0
      %910 = vmatprep.subr.mxu0 0.0
      %911 = vmatpush1.msra.mxu0 0.0
      %912 = vmatprep.subr.mxu0 0.0
      %913 = vmatpush1.msra.mxu0 0.0
      %914 = vmatprep.subr.mxu0 0.0
      %915 = vmatpush1.msra.mxu0 0.0
      %916 = vmatprep.subr.mxu0 0.0
      %917 = vmatpush1.msra.mxu0 0.0
      %918 = vmatprep.subr.mxu0 0.0
      %919 = vmatpush1.msra.mxu0 0.0
      %920 = vmatprep.subr.mxu0 0.0
      %921 = vmatpush1.msra.mxu0 0.0
      %922 = vmatprep.subr.mxu0 0.0
      %923 = vmatpush1.msra.mxu0 0.0
      %924 = vmatprep.subr.mxu0 0.0
      %925 = vmatpush1.msra.mxu0 0.0
      %926 = vmatprep.subr.mxu0 0.0
      %927 = vmatpush1.msra.mxu0 0.0
      %928 = vmatprep.subr.mxu0 0.0
      %929 = vmatpush1.msra.mxu0 0.0
      %930 = vmatprep.subr.mxu0 0.0
      %931 = vmatpush1.msra.mxu0 0.0
      %932 = vmatprep.subr.mxu0 0.0
      %933 = vmatpush1.msra.mxu0 0.0
      %934 = vmatprep.subr.mxu0 0.0
      %935 = vmatpush1.msra.mxu0 0.0
      %936 = vmatprep.subr.mxu0 0.0
      %937 = vmatpush1.msra.mxu0 0.0
      %938 = vmatprep.subr.mxu0 0.0
      %939 = vmatpush1.msra.mxu0 0.0
      %940 = vmatprep.subr.mxu0 0.0
      %941 = vmatpush1.msra.mxu0 0.0
      %942 = vmatprep.subr.mxu0 0.0
      %943 = vmatpush1.msra.mxu0 0.0
      %944 = vmatprep.subr.mxu0 0.0
      %945 = vmatpush1.msra.mxu0 0.0
      %946 = vmatprep.subr.mxu0 0.0
      %947 = vmatpush1.msra.mxu0 0.0
      %948 = vmatprep.subr.mxu0 0.0
      %949 = vmatpush1.msra.mxu0 0.0
      %950 = vmatprep.mubr.f32.mxu0 0.0
      %951 = vmatmul.mubr.f32.gmra.mrb[0].mxu0 %v794
      %v952 = vpop.f32.mrb[0].mxu0
      %v953 = vadd.f32 0.0, %v952
      %v954 = vpop.f32.mrb[0].mxu0
      %955 = vmatprep.mubr.f32.mxu0 0.0
      %956 = vmatmul.mubr.f32.gmra.mrb[0].mxu0 %v797
      %v957 = vpop.f32.mrb[0].mxu0
      %v958 = vadd.f32 0.0, %v957
      %v959 = vpop.f32.mrb[0].mxu0
      %960 = vmatprep.mubr.f32.mxu0 0.0
      %961 = vmatmul.mubr.f32.gmra.mrb[0].mxu0 %v800
      %v962 = vpop.f32.mrb[0].mxu0
      %v963 = vadd.f32 0.0, %v962
      %v964 = vpop.f32.mrb[0].mxu0
      %965 = vmatprep.mubr.f32.mxu0 0.0
      %966 = vmatmul.mubr.f32.gmra.mrb[0].mxu0 %v803
      %v967 = vpop.f32.mrb[0].mxu0
      %v968 = vadd.f32 0.0, %v967
      %v969 = vpop.f32.mrb[0].mxu0
      %970 = vmatprep.mubr.f32.mxu0 0.0
      %971 = vmatmul.mubr.f32.gmra.mrb[0].mxu0 %v806
      %v972 = vpop.f32.mrb[0].mxu0
      %v973 = vadd.f32 0.0, %v972
      %v974 = vpop.f32.mrb[0].mxu0
      %975 = vmatprep.mubr.f32.mxu0 0.0
      %976 = vmatmul.mubr.f32.gmra.mrb[0].mxu0 %v809
      %v977 = vpop.f32.mrb[0].mxu0
      %v978 = vadd.f32 0.0, %v977
      %v979 = vpop.f32.mrb[0].mxu0
      %980 = vmatprep.mubr.f32.mxu0 0.0
      %981 = vmatmul.mubr.f32.gmra.mrb[0].mxu0 %v812
      %v982 = vpop.f32.mrb[0].mxu0
      %v983 = vadd.f32 0.0, %v982
      %v984 = vpop.f32.mrb[0].mxu0
      %985 = vmatprep.mubr.f32.mxu0 0.0
      %986 = vmatmul.mubr.f32.gmra.mrb[0].mxu0 %v815
      %v987 = vpop.f32.mrb[0].mxu0
      %v988 = vadd.f32 0.0, %v987
      %v989 = vpop.f32.mrb[0].mxu0
      %990 = vmatprep.mubr.f32.mxu0 0.0
      %991 = vmatmul.mubr.f32.gmra.mrb[0].mxu0 %v818
      %v992 = vpop.f32.mrb[0].mxu0
      %v993 = vadd.f32 0.0, %v992
      %v994 = vpop.f32.mrb[0].mxu0
      %995 = vmatprep.mubr.f32.mxu0 0.0
      %996 = vmatmul.mubr.f32.gmra.mrb[0].mxu0 %v821
      %v997 = vpop.f32.mrb[0].mxu0
      %v998 = vadd.f32 0.0, %v997
      %v999 = vpop.f32.mrb[0].mxu0
      %1000 = vmatprep.mubr.f32.mxu0 0.0
      %1001 = vmatmul.mubr.f32.gmra.mrb[0].mxu0 %v824
      %v1002 = vpop.f32.mrb[0].mxu0
      %v1003 = vadd.f32 0.0, %v1002
      %v1004 = vpop.f32.mrb[0].mxu0
      %1005 = vmatprep.mubr.f32.mxu0 0.0
      %1006 = vmatmul.mubr.f32.gmra.mrb[0].mxu0 %v827
      %v1007 = vpop.f32.mrb[0].mxu0
      %v1008 = vadd.f32 0.0, %v1007
      %v1009 = vpop.f32.mrb[0].mxu0
      %1010 = vmatprep.mubr.f32.mxu0 0.0
      %1011 = vmatmul.mubr.f32.gmra.mrb[0].mxu0 %v830
      %v1012 = vpop.f32.mrb[0].mxu0
      %v1013 = vadd.f32 0.0, %v1012
      %v1014 = vpop.f32.mrb[0].mxu0
      %1015 = vmatprep.mubr.f32.mxu0 0.0
      %1016 = vmatmul.mubr.f32.gmra.mrb[0].mxu0 %v833
      %v1017 = vpop.f32.mrb[0].mxu0
      %v1018 = vadd.f32 0.0, %v1017
      %v1019 = vpop.f32.mrb[0].mxu0
      %1020 = vmatprep.mubr.f32.mxu0 0.0
      %1021 = vmatmul.mubr.f32.gmra.mrb[0].mxu0 %v836
      %v1022 = vpop.f32.mrb[0].mxu0
      %v1023 = vadd.f32 0.0, %v1022
      %v1024 = vpop.f32.mrb[0].mxu0
      %1025 = vmatprep.mubr.f32.mxu0 0.0
      %1026 = vmatmul.mubr.f32.gmra.mrb[0].mxu0 %v839
      %v1027 = vpop.f32.mrb[0].mxu0
      %v1028 = vadd.f32 0.0, %v1027
      %v1029 = vpop.f32.mrb[0].mxu0
      %1030 = vmatprep.mubr.f32.mxu0 0.0
      %1031 = vmatmul.mubr.f32.gmra.mrb[0].mxu0 %v842
      %v1032 = vpop.f32.mrb[0].mxu0
      %v1033 = vadd.f32 0.0, %v1032
      %v1034 = vpop.f32.mrb[0].mxu0
      %1035 = vmatprep.mubr.f32.mxu0 0.0
      %1036 = vmatmul.mubr.f32.gmra.mrb[0].mxu0 %v845
      %v1037 = vpop.f32.mrb[0].mxu0
      %v1038 = vadd.f32 0.0, %v1037
      %v1039 = vpop.f32.mrb[0].mxu0
      %1040 = vmatprep.mubr.f32.mxu0 0.0
      %1041 = vmatmul.mubr.f32.gmra.mrb[0].mxu0 %v848
      %v1042 = vpop.f32.mrb[0].mxu0
      %v1043 = vadd.f32 0.0, %v1042
      %v1044 = vpop.f32.mrb[0].mxu0
      %1045 = vmatprep.mubr.f32.mxu0 0.0
      %1046 = vmatmul.mubr.f32.gmra.mrb[0].mxu0 %v851
      %v1047 = vpop.f32.mrb[0].mxu0
      %v1048 = vadd.f32 0.0, %v1047
      %v1049 = vpop.f32.mrb[0].mxu0
      %1050 = vmatprep.mubr.f32.mxu0 0.0
      %1051 = vmatmul.mubr.f32.gmra.mrb[0].mxu0 %v854
      %v1052 = vpop.f32.mrb[0].mxu0
      %v1053 = vadd.f32 0.0, %v1052
      %v1054 = vpop.f32.mrb[0].mxu0
      %1055 = vmatprep.mubr.f32.mxu0 0.0
      %1056 = vmatmul.mubr.f32.gmra.mrb[0].mxu0 %v857
      %v1057 = vpop.f32.mrb[0].mxu0
      %v1058 = vadd.f32 0.0, %v1057
      %v1059 = vpop.f32.mrb[0].mxu0
      %1060 = vmatprep.mubr.f32.mxu0 0.0
      %1061 = vmatmul.mubr.f32.gmra.mrb[0].mxu0 %v860
      %v1062 = vpop.f32.mrb[0].mxu0
      %v1063 = vadd.f32 0.0, %v1062
      %v1064 = vpop.f32.mrb[0].mxu0
      %1065 = vmatprep.mubr.f32.mxu0 0.0
      %1066 = vmatmul.mubr.f32.gmra.mrb[0].mxu0 %v863
      %v1067 = vpop.f32.mrb[0].mxu0
      %v1068 = vadd.f32 0.0, %v1067
      %v1069 = vpop.f32.mrb[0].mxu0
      %1070 = vmatprep.mubr.f32.mxu0 0.0
      %1071 = vmatmul.mubr.f32.gmra.mrb[0].mxu0 %v866
      %v1072 = vpop.f32.mrb[0].mxu0
      %v1073 = vadd.f32 0.0, %v1072
      %v1074 = vpop.f32.mrb[0].mxu0
      %1075 = vmatprep.mubr.f32.mxu0 0.0
      %1076 = vmatmul.mubr.f32.gmra.mrb[0].mxu0 %v869
      %v1077 = vpop.f32.mrb[0].mxu0
      %v1078 = vadd.f32 0.0, %v1077
      %v1079 = vpop.f32.mrb[0].mxu0
      %1080 = vmatprep.mubr.f32.mxu0 0.0
      %1081 = vmatmul.mubr.f32.gmra.mrb[0].mxu0 %v872
      %v1082 = vpop.f32.mrb[0].mxu0
      %v1083 = vadd.f32 0.0, %v1082
      %v1084 = vpop.f32.mrb[0].mxu0
      %1085 = vmatprep.mubr.f32.mxu0 0.0
      %1086 = vmatmul.mubr.f32.gmra.mrb[0].mxu0 %v875
      %v1087 = vpop.f32.mrb[0].mxu0
      %v1088 = vadd.f32 0.0, %v1087
      %v1089 = vpop.f32.mrb[0].mxu0
      %1090 = vmatprep.mubr.f32.mxu0 0.0
      %1091 = vmatmul.mubr.f32.gmra.mrb[0].mxu0 %v878
      %v1092 = vpop.f32.mrb[0].mxu0
      %v1093 = vadd.f32 0.0, %v1092
      %v1094 = vpop.f32.mrb[0].mxu0
      %1095 = vmatprep.mubr.f32.mxu0 0.0
      %1096 = vmatmul.mubr.f32.gmra.mrb[0].mxu0 %v881
      %v1097 = vpop.f32.mrb[0].mxu0
      %v1098 = vadd.f32 0.0, %v1097
      %v1099 = vpop.f32.mrb[0].mxu0
      %1100 = vmatprep.mubr.f32.mxu0 0.0
      %1101 = vmatmul.mubr.f32.gmra.mrb[0].mxu0 %v884
      %v1102 = vpop.f32.mrb[0].mxu0
      %v1103 = vadd.f32 0.0, %v1102
      %v1104 = vpop.f32.mrb[0].mxu0
      %1105 = vdwg.mxu0
      %v1106 = vadd.f32 %v600, %v953
      %v1107 = vadd.f32 %v605, %v958
      %v1108 = vadd.f32 %v610, %v963
      %v1109 = vadd.f32 %v615, %v968
      %v1110 = vadd.f32 %v620, %v973
      %v1111 = vadd.f32 %v625, %v978
      %v1112 = vadd.f32 %v630, %v983
      %v1113 = vadd.f32 %v635, %v988
      %v1114 = vadd.f32 %v640, %v993
      %v1115 = vadd.f32 %v645, %v998
      %v1116 = vadd.f32 %v650, %v1003
      %v1117 = vadd.f32 %v655, %v1008
      %v1118 = vadd.f32 %v660, %v1013
      %v1119 = vadd.f32 %v665, %v1018
      %v1120 = vadd.f32 %v670, %v1023
      %v1121 = vadd.f32 %v675, %v1028
      %v1122 = vadd.f32 %v680, %v1033
      %v1123 = vadd.f32 %v685, %v1038
      %v1124 = vadd.f32 %v690, %v1043
      %v1125 = vadd.f32 %v695, %v1048
      %v1126 = vadd.f32 %v700, %v1053
      %v1127 = vadd.f32 %v705, %v1058
      %v1128 = vadd.f32 %v710, %v1063
      %v1129 = vadd.f32 %v715, %v1068
      %v1130 = vadd.f32 %v720, %v1073
      %v1131 = vadd.f32 %v725, %v1078
      %v1132 = vadd.f32 %v730, %v1083
      %v1133 = vadd.f32 %v735, %v1088
      %v1134 = vadd.f32 %v740, %v1093
      %v1135 = vadd.f32 %v745, %v1098
      %v1136 = vadd.f32 %v750, %v1103
      %v1137 = vld [vmem:[%s2] sm:$0x1]
      %v1139 = vlaneseq
      %v1140 = vshrl.u32 %v1139, 7
      %v1141 = vsub.s32 0, %v1140
      %v1142 = vrot.slane %v1137, %v1141
      %v1144 = vadd.f32 %v1106, %v1142
      %v1145 = vadd.f32 %v1107, %v1142
      %v1146 = vadd.f32 %v1108, %v1142
      %v1147 = vadd.f32 %v1109, %v1142
      %v1148 = vadd.f32 %v1110, %v1142
      %v1149 = vadd.f32 %v1111, %v1142
      %v1150 = vadd.f32 %v1112, %v1142
      %v1151 = vadd.f32 %v1113, %v1142
      %v1152 = vadd.f32 %v1114, %v1142
      %v1153 = vadd.f32 %v1115, %v1142
      %v1154 = vadd.f32 %v1116, %v1142
      %v1155 = vadd.f32 %v1117, %v1142
      %v1156 = vadd.f32 %v1118, %v1142
      %v1157 = vadd.f32 %v1119, %v1142
      %v1158 = vadd.f32 %v1120, %v1142
      %v1159 = vadd.f32 %v1121, %v1142
      %v1160 = vadd.f32 %v1122, %v1142
      %v1161 = vadd.f32 %v1123, %v1142
      %v1162 = vadd.f32 %v1124, %v1142
      %v1163 = vadd.f32 %v1125, %v1142
      %v1164 = vadd.f32 %v1126, %v1142
      %v1165 = vadd.f32 %v1127, %v1142
      %v1166 = vadd.f32 %v1128, %v1142
      %v1167 = vadd.f32 %v1129, %v1142
      %v1168 = vadd.f32 %v1130, %v1142
      %v1169 = vadd.f32 %v1131, %v1142
      %v1170 = vadd.f32 %v1132, %v1142
      %v1171 = vadd.f32 %v1133, %v1142
      %v1172 = vadd.f32 %v1134, %v1142
      %v1173 = vadd.f32 %v1135, %v1142
      %v1174 = vadd.f32 %v1136, %v1142
      %v1175 = vmax.f32 %v1144, 0.0
      %v1176 = vmax.f32 %v1145, 0.0
      %v1177 = vmax.f32 %v1146, 0.0
      %v1178 = vmax.f32 %v1147, 0.0
      %v1179 = vmax.f32 %v1148, 0.0
      %v1180 = vmax.f32 %v1149, 0.0
      %v1181 = vmax.f32 %v1150, 0.0
      %v1182 = vmax.f32 %v1151, 0.0
      %v1183 = vmax.f32 %v1152, 0.0
      %v1184 = vmax.f32 %v1153, 0.0
      %v1185 = vmax.f32 %v1154, 0.0
      %v1186 = vmax.f32 %v1155, 0.0
      %v1187 = vmax.f32 %v1156, 0.0
      %v1188 = vmax.f32 %v1157, 0.0
      %v1189 = vmax.f32 %v1158, 0.0
      %v1190 = vmax.f32 %v1159, 0.0
      %v1191 = vmax.f32 %v1160, 0.0
      %v1192 = vmax.f32 %v1161, 0.0
      %v1193 = vmax.f32 %v1162, 0.0
      %v1194 = vmax.f32 %v1163, 0.0
      %v1195 = vmax.f32 %v1164, 0.0
      %v1196 = vmax.f32 %v1165, 0.0
      %v1197 = vmax.f32 %v1166, 0.0
      %v1198 = vmax.f32 %v1167, 0.0
      %v1199 = vmax.f32 %v1168, 0.0
      %v1200 = vmax.f32 %v1169, 0.0
      %v1201 = vmax.f32 %v1170, 0.0
      %v1202 = vmax.f32 %v1171, 0.0
      %v1203 = vmax.f32 %v1172, 0.0
      %v1204 = vmax.f32 %v1173, 0.0
      %v1205 = vmax.f32 %v1174, 0.0
      %vm1206 = vcmask 261120
      %1207 = vst.msk [vmem:[#allocation2] sm:$0xff] %vm1206, %v1175
      %1208 = vst.msk [vmem:[#allocation2 + $0x8] sm:$0xff] %vm1206, %v1176
      %1209 = vst.msk [vmem:[#allocation2 + $0x10] sm:$0xff] %vm1206, %v1177
      %1210 = vst.msk [vmem:[#allocation2 + $0x18] sm:$0xff] %vm1206, %v1178
      %1211 = vst.msk [vmem:[#allocation2 + $0x20] sm:$0xff] %vm1206, %v1179
      %1212 = vst.msk [vmem:[#allocation2 + $0x28] sm:$0xff] %vm1206, %v1180
      %1213 = vst.msk [vmem:[#allocation2 + $0x30] sm:$0xff] %vm1206, %v1181
      %1214 = vst.msk [vmem:[#allocation2 + $0x38] sm:$0xff] %vm1206, %v1182
      %1215 = vst.msk [vmem:[#allocation2 + $0x40] sm:$0xff] %vm1206, %v1183
      %1216 = vst.msk [vmem:[#allocation2 + $0x48] sm:$0xff] %vm1206, %v1184
      %1217 = vst.msk [vmem:[#allocation2 + $0x50] sm:$0xff] %vm1206, %v1185
      %1218 = vst.msk [vmem:[#allocation2 + $0x58] sm:$0xff] %vm1206, %v1186
      %1219 = vst.msk [vmem:[#allocation2 + $0x60] sm:$0xff] %vm1206, %v1187
      %1220 = vst.msk [vmem:[#allocation2 + $0x68] sm:$0xff] %vm1206, %v1188
      %1221 = vst.msk [vmem:[#allocation2 + $0x70] sm:$0xff] %vm1206, %v1189
      %1222 = vst.msk [vmem:[#allocation2 + $0x78] sm:$0xff] %vm1206, %v1190
      %1223 = vst.msk [vmem:[#allocation2 + $0x80] sm:$0xff] %vm1206, %v1191
      %1224 = vst.msk [vmem:[#allocation2 + $0x88] sm:$0xff] %vm1206, %v1192
      %1225 = vst.msk [vmem:[#allocation2 + $0x90] sm:$0xff] %vm1206, %v1193
      %1226 = vst.msk [vmem:[#allocation2 + $0x98] sm:$0xff] %vm1206, %v1194
      %1227 = vst.msk [vmem:[#allocation2 + $0xa0] sm:$0xff] %vm1206, %v1195
      %1228 = vst.msk [vmem:[#allocation2 + $0xa8] sm:$0xff] %vm1206, %v1196
      %1229 = vst.msk [vmem:[#allocation2 + $0xb0] sm:$0xff] %vm1206, %v1197
      %1230 = vst.msk [vmem:[#allocation2 + $0xb8] sm:$0xff] %vm1206, %v1198
      %1231 = vst.msk [vmem:[#allocation2 + $0xc0] sm:$0xff] %vm1206, %v1199
      %1232 = vst.msk [vmem:[#allocation2 + $0xc8] sm:$0xff] %vm1206, %v1200
      %1233 = vst.msk [vmem:[#allocation2 + $0xd0] sm:$0xff] %vm1206, %v1201
      %1234 = vst.msk [vmem:[#allocation2 + $0xd8] sm:$0xff] %vm1206, %v1202
      %1235 = vst.msk [vmem:[#allocation2 + $0xe0] sm:$0xff] %vm1206, %v1203
      %1236 = vst.msk [vmem:[#allocation2 + $0xe8] sm:$0xff] %vm1206, %v1204
      %vm1237 = vcmask 257024
      %1238 = vst.msk [vmem:[#allocation2 + $0xf0] sm:$0xf] %vm1237, %v1205
      %v1239 = vld [vmem:[#allocation2] ss:$2 sm:$0xff]
      %s1240 = scalar_lea.vmem [#allocation2], 16
      %v1241 = vld [vmem:[%s1240] ss:$2 sm:$0xff]
      %s1242 = scalar_lea.vmem [#allocation2], 32
      %v1243 = vld [vmem:[%s1242] ss:$2 sm:$0xff]
      %s1244 = scalar_lea.vmem [#allocation2], 48
      %v1245 = vld [vmem:[%s1244] ss:$2 sm:$0xff]
      %s1246 = scalar_lea.vmem [#allocation2], 64
      %v1247 = vld [vmem:[%s1246] ss:$2 sm:$0xff]
      %s1248 = scalar_lea.vmem [#allocation2], 80
      %v1249 = vld [vmem:[%s1248] ss:$2 sm:$0xff]
      %s1250 = scalar_lea.vmem [#allocation2], 96
      %v1251 = vld [vmem:[%s1250] ss:$2 sm:$0xff]
      %s1252 = scalar_lea.vmem [#allocation2], 112
      %v1253 = vld [vmem:[%s1252] ss:$2 sm:$0xff]
      %s1254 = scalar_lea.vmem [#allocation2], 128
      %v1255 = vld [vmem:[%s1254] ss:$2 sm:$0xff]
      %s1256 = scalar_lea.vmem [#allocation2], 144
      %v1257 = vld [vmem:[%s1256] ss:$2 sm:$0xff]
      %s1258 = scalar_lea.vmem [#allocation2], 160
      %v1259 = vld [vmem:[%s1258] ss:$2 sm:$0xff]
      %s1260 = scalar_lea.vmem [#allocation2], 176
      %v1261 = vld [vmem:[%s1260] ss:$2 sm:$0xff]
      %s1262 = scalar_lea.vmem [#allocation2], 192
      %v1263 = vld [vmem:[%s1262] ss:$2 sm:$0xff]
      %s1264 = scalar_lea.vmem [#allocation2], 208
      %v1265 = vld [vmem:[%s1264] ss:$2 sm:$0xff]
      %s1266 = scalar_lea.vmem [#allocation2], 224
      %v1267 = vld [vmem:[%s1266] ss:$2 sm:$0xff]
      %s1268 = scalar_lea.vmem [#allocation2], 240
      %v1269 = vld [vmem:[%s1268] ss:$2 sm:$0x3]
      %s1270 = scalar_lea.vmem [#allocation2], 1
      %v1271 = vld [vmem:[%s1270] ss:$2 sm:$0xff]
      %s1272 = scalar_lea.vmem [#allocation2], 17
      %v1273 = vld [vmem:[%s1272] ss:$2 sm:$0xff]
      %s1274 = scalar_lea.vmem [#allocation2], 33
      %v1275 = vld [vmem:[%s1274] ss:$2 sm:$0xff]
      %s1276 = scalar_lea.vmem [#allocation2], 49
      %v1277 = vld [vmem:[%s1276] ss:$2 sm:$0xff]
      %s1278 = scalar_lea.vmem [#allocation2], 65
      %v1279 = vld [vmem:[%s1278] ss:$2 sm:$0xff]
      %s1280 = scalar_lea.vmem [#allocation2], 81
      %v1281 = vld [vmem:[%s1280] ss:$2 sm:$0xff]
      %s1282 = scalar_lea.vmem [#allocation2], 97
      %v1283 = vld [vmem:[%s1282] ss:$2 sm:$0xff]
      %s1284 = scalar_lea.vmem [#allocation2], 113
      %v1285 = vld [vmem:[%s1284] ss:$2 sm:$0xff]
      %s1286 = scalar_lea.vmem [#allocation2], 129
      %v1287 = vld [vmem:[%s1286] ss:$2 sm:$0xff]
      %s1288 = scalar_lea.vmem [#allocation2], 145
      %v1289 = vld [vmem:[%s1288] ss:$2 sm:$0xff]
      %s1290 = scalar_lea.vmem [#allocation2], 161
      %v1291 = vld [vmem:[%s1290] ss:$2 sm:$0xff]
      %s1292 = scalar_lea.vmem [#allocation2], 177
      %v1293 = vld [vmem:[%s1292] ss:$2 sm:$0xff]
      %s1294 = scalar_lea.vmem [#allocation2], 193
      %v1295 = vld [vmem:[%s1294] ss:$2 sm:$0xff]
      %s1296 = scalar_lea.vmem [#allocation2], 209
      %v1297 = vld [vmem:[%s1296] ss:$2 sm:$0xff]
      %s1298 = scalar_lea.vmem [#allocation2], 225
      %v1299 = vld [vmem:[%s1298] ss:$2 sm:$0xff]
      %s1300 = scalar_lea.vmem [#allocation2], 241
      %v1301 = vld [vmem:[%s1300] ss:$2 sm:$0x3]
      %v1302 = vmax.f32 %v1239, %v1271
      %v1303 = vmax.f32 %v1241, %v1273
      %v1304 = vmax.f32 %v1243, %v1275
      %v1305 = vmax.f32 %v1245, %v1277
      %v1306 = vmax.f32 %v1247, %v1279
      %v1307 = vmax.f32 %v1249, %v1281
      %v1308 = vmax.f32 %v1251, %v1283
      %v1309 = vmax.f32 %v1253, %v1285
      %v1310 = vmax.f32 %v1255, %v1287
      %v1311 = vmax.f32 %v1257, %v1289
      %v1312 = vmax.f32 %v1259, %v1291
      %v1313 = vmax.f32 %v1261, %v1293
      %v1314 = vmax.f32 %v1263, %v1295
      %v1315 = vmax.f32 %v1265, %v1297
      %v1316 = vmax.f32 %v1267, %v1299
      %v1317 = vmax.f32 %v1269, %v1301
      %1318 = vst.msk [vmem:[#allocation3] sm:$0xff] %vm1206, %v1302
      %1319 = vst.msk [vmem:[#allocation3 + $0x8] sm:$0xff] %vm1206, %v1303
      %1320 = vst.msk [vmem:[#allocation3 + $0x10] sm:$0xff] %vm1206, %v1304
      %1321 = vst.msk [vmem:[#allocation3 + $0x18] sm:$0xff] %vm1206, %v1305
      %1322 = vst.msk [vmem:[#allocation3 + $0x20] sm:$0xff] %vm1206, %v1306
      %1323 = vst.msk [vmem:[#allocation3 + $0x28] sm:$0xff] %vm1206, %v1307
      %1324 = vst.msk [vmem:[#allocation3 + $0x30] sm:$0xff] %vm1206, %v1308
      %1325 = vst.msk [vmem:[#allocation3 + $0x38] sm:$0xff] %vm1206, %v1309
      %1326 = vst.msk [vmem:[#allocation3 + $0x40] sm:$0xff] %vm1206, %v1310
      %1327 = vst.msk [vmem:[#allocation3 + $0x48] sm:$0xff] %vm1206, %v1311
      %1328 = vst.msk [vmem:[#allocation3 + $0x50] sm:$0xff] %vm1206, %v1312
      %1329 = vst.msk [vmem:[#allocation3 + $0x58] sm:$0xff] %vm1206, %v1313
      %1330 = vst.msk [vmem:[#allocation3 + $0x60] sm:$0xff] %vm1206, %v1314
      %1331 = vst.msk [vmem:[#allocation3 + $0x68] sm:$0xff] %vm1206, %v1315
      %1332 = vst.msk [vmem:[#allocation3 + $0x70] sm:$0xff] %vm1206, %v1316
      %vm1333 = vcmask 254976
      %1334 = vst.msk [vmem:[#allocation3 + $0x78] sm:$0x3] %vm1333, %v1317
      %v1335 = vld [vmem:[#allocation3] sm:$0xff]
      %v1336 = vld [vmem:[#allocation3 + $0x8] sm:$0xff]
      %v1337 = vld [vmem:[#allocation3 + $0x10] sm:$0xff]
      %v1338 = vld [vmem:[#allocation3 + $0x18] sm:$0xff]
      %v1339 = vld [vmem:[#allocation3 + $0x20] sm:$0xff]
      %v1340 = vld [vmem:[#allocation3 + $0x28] sm:$0xff]
      %v1341 = vld [vmem:[#allocation3 + $0x30] sm:$0xff]
      %v1342 = vld [vmem:[#allocation3 + $0x38] sm:$0xff]
      %v1343 = vld [vmem:[#allocation3 + $0x40] sm:$0xff]
      %v1344 = vld [vmem:[#allocation3 + $0x48] sm:$0xff]
      %v1345 = vld [vmem:[#allocation3 + $0x50] sm:$0xff]
      %v1346 = vld [vmem:[#allocation3 + $0x58] sm:$0xff]
      %v1347 = vld [vmem:[#allocation3 + $0x60] sm:$0xff]
      %v1348 = vld [vmem:[#allocation3 + $0x68] sm:$0xff]
      %v1349 = vld [vmem:[#allocation3 + $0x70] sm:$0xff]
      %v1350 = vld [vmem:[%s3] sm:$0xff]
      %v1351 = vld [vmem:[%s3 + $0x8] sm:$0xff]
      %v1352 = vld [vmem:[%s3 + $0x10] sm:$0xff]
      %v1353 = vld [vmem:[%s3 + $0x18] sm:$0xff]
      %v1354 = vld [vmem:[#allocation3 + $0x1] sm:$0xff]
      %v1355 = vld [vmem:[#allocation3 + $0x9] sm:$0xff]
      %v1356 = vld [vmem:[#allocation3 + $0x11] sm:$0xff]
      %v1357 = vld [vmem:[#allocation3 + $0x19] sm:$0xff]
      %v1358 = vld [vmem:[#allocation3 + $0x21] sm:$0xff]
      %v1359 = vld [vmem:[#allocation3 + $0x29] sm:$0xff]
      %v1360 = vld [vmem:[#allocation3 + $0x31] sm:$0xff]
      %v1361 = vld [vmem:[#allocation3 + $0x39] sm:$0xff]
      %v1362 = vld [vmem:[#allocation3 + $0x41] sm:$0xff]
      %v1363 = vld [vmem:[#allocation3 + $0x49] sm:$0xff]
      %v1364 = vld [vmem:[#allocation3 + $0x51] sm:$0xff]
      %v1365 = vld [vmem:[#allocation3 + $0x59] sm:$0xff]
      %v1366 = vld [vmem:[#allocation3 + $0x61] sm:$0xff]
      %v1367 = vld [vmem:[#allocation3 + $0x69] sm:$0xff]
      %v1368 = vld [vmem:[#allocation3 + $0x71] sm:$0xff]
      %s1369 = scalar_lea.vmem %s3, 32
      %v1370 = vld [vmem:[%s1369] sm:$0xff]
      %v1371 = vld [vmem:[%s1369 + $0x8] sm:$0xff]
      %v1372 = vld [vmem:[%s1369 + $0x10] sm:$0xff]
      %v1373 = vld [vmem:[%s1369 + $0x18] sm:$0xff]
      %v1375 = vsel %vm1206, %v1354, 0
      %v1378 = vsel %vm1206, %v1355, 0
      %v1381 = vsel %vm1206, %v1356, 0
      %v1384 = vsel %vm1206, %v1357, 0
      %v1387 = vsel %vm1206, %v1358, 0
      %v1390 = vsel %vm1206, %v1359, 0
      %v1393 = vsel %vm1206, %v1360, 0
      %v1396 = vsel %vm1206, %v1361, 0
      %v1399 = vsel %vm1206, %v1362, 0
      %v1402 = vsel %vm1206, %v1363, 0
      %v1405 = vsel %vm1206, %v1364, 0
      %v1408 = vsel %vm1206, %v1365, 0
      %v1411 = vsel %vm1206, %v1366, 0
      %v1414 = vsel %vm1206, %v1367, 0
      %v1417 = vsel %vm1206, %v1368, 0
      %1419 = vmatprep.subr.mxu0 0.0
      %1420 = vmatpush1.msra.mxu0 %v1370
      %1421 = vmatprep.subr.mxu0 0.0
      %1422 = vmatpush1.msra.mxu0 %v1371
      %1423 = vmatprep.subr.mxu0 0.0
      %1424 = vmatpush1.msra.mxu0 %v1372
      %1425 = vmatprep.subr.mxu0 0.0
      %1426 = vmatpush1.msra.mxu0 %v1373
      %1427 = vmatprep.subr.mxu0 0.0
      %1428 = vmatpush1.msra.mxu0 0.0
      %1429 = vmatprep.subr.mxu0 0.0
      %1430 = vmatpush1.msra.mxu0 0.0
      %1431 = vmatprep.subr.mxu0 0.0
      %1432 = vmatpush1.msra.mxu0 0.0
      %1433 = vmatprep.subr.mxu0 0.0
      %1434 = vmatpush1.msra.mxu0 0.0
      %1435 = vmatprep.subr.mxu0 0.0
      %1436 = vmatpush1.msra.mxu0 0.0
      %1437 = vmatprep.subr.mxu0 0.0
      %1438 = vmatpush1.msra.mxu0 0.0
      %1439 = vmatprep.subr.mxu0 0.0
      %1440 = vmatpush1.msra.mxu0 0.0
      %1441 = vmatprep.subr.mxu0 0.0
      %1442 = vmatpush1.msra.mxu0 0.0
      %1443 = vmatprep.subr.mxu0 0.0
      %1444 = vmatpush1.msra.mxu0 0.0
      %1445 = vmatprep.subr.mxu0 0.0
      %1446 = vmatpush1.msra.mxu0 0.0
      %1447 = vmatprep.subr.mxu0 0.0
      %1448 = vmatpush1.msra.mxu0 0.0
      %1449 = vmatprep.subr.mxu0 0.0
      %1450 = vmatpush1.msra.mxu0 0.0
      %1451 = vmatprep.subr.mxu0 0.0
      %1452 = vmatpush1.msra.mxu0 0.0
      %1453 = vmatprep.subr.mxu0 0.0
      %1454 = vmatpush1.msra.mxu0 0.0
      %1455 = vmatprep.subr.mxu0 0.0
      %1456 = vmatpush1.msra.mxu0 0.0
      %1457 = vmatprep.subr.mxu0 0.0
      %1458 = vmatpush1.msra.mxu0 0.0
      %1459 = vmatprep.subr.mxu0 0.0
      %1460 = vmatpush1.msra.mxu0 0.0
      %1461 = vmatprep.subr.mxu0 0.0
      %1462 = vmatpush1.msra.mxu0 0.0
      %1463 = vmatprep.subr.mxu0 0.0
      %1464 = vmatpush1.msra.mxu0 0.0
      %1465 = vmatprep.subr.mxu0 0.0
      %1466 = vmatpush1.msra.mxu0 0.0
      %1467 = vmatprep.subr.mxu0 0.0
      %1468 = vmatpush1.msra.mxu0 0.0
      %1469 = vmatprep.subr.mxu0 0.0
      %1470 = vmatpush1.msra.mxu0 0.0
      %1471 = vmatprep.subr.mxu0 0.0
      %1472 = vmatpush1.msra.mxu0 0.0
      %1473 = vmatprep.subr.mxu0 0.0
      %1474 = vmatpush1.msra.mxu0 0.0
      %1475 = vmatprep.subr.mxu0 0.0
      %1476 = vmatpush1.msra.mxu0 0.0
      %1477 = vmatprep.subr.mxu0 0.0
      %1478 = vmatpush1.msra.mxu0 0.0
      %1479 = vmatprep.subr.mxu0 0.0
      %1480 = vmatpush1.msra.mxu0 0.0
      %1481 = vmatprep.subr.mxu0 0.0
      %1482 = vmatpush1.msra.mxu0 0.0
      %1483 = vmatprep.mubr.f32.mxu0 0.0
      %1484 = vmatmul.mubr.f32.gmra.mrb[0].mxu0 %v1375
      %v1485 = vpop.f32.mrb[0].mxu0
      %v1486 = vadd.f32 0.0, %v1485
      %v1487 = vpop.f32.mrb[0].mxu0
      %1488 = vmatprep.mubr.f32.mxu0 0.0
      %1489 = vmatmul.mubr.f32.gmra.mrb[0].mxu0 %v1378
      %v1490 = vpop.f32.mrb[0].mxu0
      %v1491 = vadd.f32 0.0, %v1490
      %v1492 = vpop.f32.mrb[0].mxu0
      %1493 = vmatprep.mubr.f32.mxu0 0.0
      %1494 = vmatmul.mubr.f32.gmra.mrb[0].mxu0 %v1381
      %v1495 = vpop.f32.mrb[0].mxu0
      %v1496 = vadd.f32 0.0, %v1495
      %v1497 = vpop.f32.mrb[0].mxu0
      %1498 = vmatprep.mubr.f32.mxu0 0.0
      %1499 = vmatmul.mubr.f32.gmra.mrb[0].mxu0 %v1384
      %v1500 = vpop.f32.mrb[0].mxu0
      %v1501 = vadd.f32 0.0, %v1500
      %v1502 = vpop.f32.mrb[0].mxu0
      %1503 = vmatprep.mubr.f32.mxu0 0.0
      %1504 = vmatmul.mubr.f32.gmra.mrb[0].mxu0 %v1387
      %v1505 = vpop.f32.mrb[0].mxu0
      %v1506 = vadd.f32 0.0, %v1505
      %v1507 = vpop.f32.mrb[0].mxu0
      %1508 = vmatprep.mubr.f32.mxu0 0.0
      %1509 = vmatmul.mubr.f32.gmra.mrb[0].mxu0 %v1390
      %v1510 = vpop.f32.mrb[0].mxu0
      %v1511 = vadd.f32 0.0, %v1510
      %v1512 = vpop.f32.mrb[0].mxu0
      %1513 = vmatprep.mubr.f32.mxu0 0.0
      %1514 = vmatmul.mubr.f32.gmra.mrb[0].mxu0 %v1393
      %v1515 = vpop.f32.mrb[0].mxu0
      %v1516 = vadd.f32 0.0, %v1515
      %v1517 = vpop.f32.mrb[0].mxu0
      %1518 = vmatprep.mubr.f32.mxu0 0.0
      %1519 = vmatmul.mubr.f32.gmra.mrb[0].mxu0 %v1396
      %v1520 = vpop.f32.mrb[0].mxu0
      %v1521 = vadd.f32 0.0, %v1520
      %v1522 = vpop.f32.mrb[0].mxu0
      %1523 = vmatprep.mubr.f32.mxu0 0.0
      %1524 = vmatmul.mubr.f32.gmra.mrb[0].mxu0 %v1399
      %v1525 = vpop.f32.mrb[0].mxu0
      %v1526 = vadd.f32 0.0, %v1525
      %v1527 = vpop.f32.mrb[0].mxu0
      %1528 = vmatprep.mubr.f32.mxu0 0.0
      %1529 = vmatmul.mubr.f32.gmra.mrb[0].mxu0 %v1402
      %v1530 = vpop.f32.mrb[0].mxu0
      %v1531 = vadd.f32 0.0, %v1530
      %v1532 = vpop.f32.mrb[0].mxu0
      %1533 = vmatprep.mubr.f32.mxu0 0.0
      %1534 = vmatmul.mubr.f32.gmra.mrb[0].mxu0 %v1405
      %v1535 = vpop.f32.mrb[0].mxu0
      %v1536 = vadd.f32 0.0, %v1535
      %v1537 = vpop.f32.mrb[0].mxu0
      %1538 = vmatprep.mubr.f32.mxu0 0.0
      %1539 = vmatmul.mubr.f32.gmra.mrb[0].mxu0 %v1408
      %v1540 = vpop.f32.mrb[0].mxu0
      %v1541 = vadd.f32 0.0, %v1540
      %v1542 = vpop.f32.mrb[0].mxu0
      %1543 = vmatprep.mubr.f32.mxu0 0.0
      %1544 = vmatmul.mubr.f32.gmra.mrb[0].mxu0 %v1411
      %v1545 = vpop.f32.mrb[0].mxu0
      %v1546 = vadd.f32 0.0, %v1545
      %v1547 = vpop.f32.mrb[0].mxu0
      %1548 = vmatprep.mubr.f32.mxu0 0.0
      %1549 = vmatmul.mubr.f32.gmra.mrb[0].mxu0 %v1414
      %v1550 = vpop.f32.mrb[0].mxu0
      %v1551 = vadd.f32 0.0, %v1550
      %v1552 = vpop.f32.mrb[0].mxu0
      %1553 = vmatprep.mubr.f32.mxu0 0.0
      %1554 = vmatmul.mubr.f32.gmra.mrb[0].mxu0 %v1417
      %v1555 = vpop.f32.mrb[0].mxu0
      %v1556 = vadd.f32 0.0, %v1555
      %v1557 = vpop.f32.mrb[0].mxu0
      %1558 = vdwg.mxu0
      %v1560 = vsel %vm1206, %v1335, 0
      %v1563 = vsel %vm1206, %v1336, 0
      %v1566 = vsel %vm1206, %v1337, 0
      %v1569 = vsel %vm1206, %v1338, 0
      %v1572 = vsel %vm1206, %v1339, 0
      %v1575 = vsel %vm1206, %v1340, 0
      %v1578 = vsel %vm1206, %v1341, 0
      %v1581 = vsel %vm1206, %v1342, 0
      %v1584 = vsel %vm1206, %v1343, 0
      %v1587 = vsel %vm1206, %v1344, 0
      %v1590 = vsel %vm1206, %v1345, 0
      %v1593 = vsel %vm1206, %v1346, 0
      %v1596 = vsel %vm1206, %v1347, 0
      %v1599 = vsel %vm1206, %v1348, 0
      %v1602 = vsel %vm1206, %v1349, 0
      %1604 = vmatprep.subr.mxu0 0.0
      %1605 = vmatpush1.msra.mxu0 %v1350
      %1606 = vmatprep.subr.mxu0 0.0
      %1607 = vmatpush1.msra.mxu0 %v1351
      %1608 = vmatprep.subr.mxu0 0.0
      %1609 = vmatpush1.msra.mxu0 %v1352
      %1610 = vmatprep.subr.mxu0 0.0
      %1611 = vmatpush1.msra.mxu0 %v1353
      %1612 = vmatprep.subr.mxu0 0.0
      %1613 = vmatpush1.msra.mxu0 0.0
      %1614 = vmatprep.subr.mxu0 0.0
      %1615 = vmatpush1.msra.mxu0 0.0
      %1616 = vmatprep.subr.mxu0 0.0
      %1617 = vmatpush1.msra.mxu0 0.0
      %1618 = vmatprep.subr.mxu0 0.0
      %1619 = vmatpush1.msra.mxu0 0.0
      %1620 = vmatprep.subr.mxu0 0.0
      %1621 = vmatpush1.msra.mxu0 0.0
      %1622 = vmatprep.subr.mxu0 0.0
      %1623 = vmatpush1.msra.mxu0 0.0
      %1624 = vmatprep.subr.mxu0 0.0
      %1625 = vmatpush1.msra.mxu0 0.0
      %1626 = vmatprep.subr.mxu0 0.0
      %1627 = vmatpush1.msra.mxu0 0.0
      %1628 = vmatprep.subr.mxu0 0.0
      %1629 = vmatpush1.msra.mxu0 0.0
      %1630 = vmatprep.subr.mxu0 0.0
      %1631 = vmatpush1.msra.mxu0 0.0
      %1632 = vmatprep.subr.mxu0 0.0
      %1633 = vmatpush1.msra.mxu0 0.0
      %1634 = vmatprep.subr.mxu0 0.0
      %1635 = vmatpush1.msra.mxu0 0.0
      %1636 = vmatprep.subr.mxu0 0.0
      %1637 = vmatpush1.msra.mxu0 0.0
      %1638 = vmatprep.subr.mxu0 0.0
      %1639 = vmatpush1.msra.mxu0 0.0
      %1640 = vmatprep.subr.mxu0 0.0
      %1641 = vmatpush1.msra.mxu0 0.0
      %1642 = vmatprep.subr.mxu0 0.0
      %1643 = vmatpush1.msra.mxu0 0.0
      %1644 = vmatprep.subr.mxu0 0.0
      %1645 = vmatpush1.msra.mxu0 0.0
      %1646 = vmatprep.subr.mxu0 0.0
      %1647 = vmatpush1.msra.mxu0 0.0
      %1648 = vmatprep.subr.mxu0 0.0
      %1649 = vmatpush1.msra.mxu0 0.0
      %1650 = vmatprep.subr.mxu0 0.0
      %1651 = vmatpush1.msra.mxu0 0.0
      %1652 = vmatprep.subr.mxu0 0.0
      %1653 = vmatpush1.msra.mxu0 0.0
      %1654 = vmatprep.subr.mxu0 0.0
      %1655 = vmatpush1.msra.mxu0 0.0
      %1656 = vmatprep.subr.mxu0 0.0
      %1657 = vmatpush1.msra.mxu0 0.0
      %1658 = vmatprep.subr.mxu0 0.0
      %1659 = vmatpush1.msra.mxu0 0.0
      %1660 = vmatprep.subr.mxu0 0.0
      %1661 = vmatpush1.msra.mxu0 0.0
      %1662 = vmatprep.subr.mxu0 0.0
      %1663 = vmatpush1.msra.mxu0 0.0
      %1664 = vmatprep.subr.mxu0 0.0
      %1665 = vmatpush1.msra.mxu0 0.0
      %1666 = vmatprep.subr.mxu0 0.0
      %1667 = vmatpush1.msra.mxu0 0.0
      %1668 = vmatprep.mubr.f32.mxu0 0.0
      %1669 = vmatmul.mubr.f32.gmra.mrb[0].mxu0 %v1560
      %v1670 = vpop.f32.mrb[0].mxu0
      %v1671 = vadd.f32 %v1486, %v1670
      %v1672 = vpop.f32.mrb[0].mxu0
      %1673 = vmatprep.mubr.f32.mxu0 0.0
      %1674 = vmatmul.mubr.f32.gmra.mrb[0].mxu0 %v1563
      %v1675 = vpop.f32.mrb[0].mxu0
      %v1676 = vadd.f32 %v1491, %v1675
      %v1677 = vpop.f32.mrb[0].mxu0
      %1678 = vmatprep.mubr.f32.mxu0 0.0
      %1679 = vmatmul.mubr.f32.gmra.mrb[0].mxu0 %v1566
      %v1680 = vpop.f32.mrb[0].mxu0
      %v1681 = vadd.f32 %v1496, %v1680
      %v1682 = vpop.f32.mrb[0].mxu0
      %1683 = vmatprep.mubr.f32.mxu0 0.0
      %1684 = vmatmul.mubr.f32.gmra.mrb[0].mxu0 %v1569
      %v1685 = vpop.f32.mrb[0].mxu0
      %v1686 = vadd.f32 %v1501, %v1685
      %v1687 = vpop.f32.mrb[0].mxu0
      %1688 = vmatprep.mubr.f32.mxu0 0.0
      %1689 = vmatmul.mubr.f32.gmra.mrb[0].mxu0 %v1572
      %v1690 = vpop.f32.mrb[0].mxu0
      %v1691 = vadd.f32 %v1506, %v1690
      %v1692 = vpop.f32.mrb[0].mxu0
      %1693 = vmatprep.mubr.f32.mxu0 0.0
      %1694 = vmatmul.mubr.f32.gmra.mrb[0].mxu0 %v1575
      %v1695 = vpop.f32.mrb[0].mxu0
      %v1696 = vadd.f32 %v1511, %v1695
      %v1697 = vpop.f32.mrb[0].mxu0
      %1698 = vmatprep.mubr.f32.mxu0 0.0
      %1699 = vmatmul.mubr.f32.gmra.mrb[0].mxu0 %v1578
      %v1700 = vpop.f32.mrb[0].mxu0
      %v1701 = vadd.f32 %v1516, %v1700
      %v1702 = vpop.f32.mrb[0].mxu0
      %1703 = vmatprep.mubr.f32.mxu0 0.0
      %1704 = vmatmul.mubr.f32.gmra.mrb[0].mxu0 %v1581
      %v1705 = vpop.f32.mrb[0].mxu0
      %v1706 = vadd.f32 %v1521, %v1705
      %v1707 = vpop.f32.mrb[0].mxu0
      %1708 = vmatprep.mubr.f32.mxu0 0.0
      %1709 = vmatmul.mubr.f32.gmra.mrb[0].mxu0 %v1584
      %v1710 = vpop.f32.mrb[0].mxu0
      %v1711 = vadd.f32 %v1526, %v1710
      %v1712 = vpop.f32.mrb[0].mxu0
      %1713 = vmatprep.mubr.f32.mxu0 0.0
      %1714 = vmatmul.mubr.f32.gmra.mrb[0].mxu0 %v1587
      %v1715 = vpop.f32.mrb[0].mxu0
      %v1716 = vadd.f32 %v1531, %v1715
      %v1717 = vpop.f32.mrb[0].mxu0
      %1718 = vmatprep.mubr.f32.mxu0 0.0
      %1719 = vmatmul.mubr.f32.gmra.mrb[0].mxu0 %v1590
      %v1720 = vpop.f32.mrb[0].mxu0
      %v1721 = vadd.f32 %v1536, %v1720
      %v1722 = vpop.f32.mrb[0].mxu0
      %1723 = vmatprep.mubr.f32.mxu0 0.0
      %1724 = vmatmul.mubr.f32.gmra.mrb[0].mxu0 %v1593
      %v1725 = vpop.f32.mrb[0].mxu0
      %v1726 = vadd.f32 %v1541, %v1725
      %v1727 = vpop.f32.mrb[0].mxu0
      %1728 = vmatprep.mubr.f32.mxu0 0.0
      %1729 = vmatmul.mubr.f32.gmra.mrb[0].mxu0 %v1596
      %v1730 = vpop.f32.mrb[0].mxu0
      %v1731 = vadd.f32 %v1546, %v1730
      %v1732 = vpop.f32.mrb[0].mxu0
      %1733 = vmatprep.mubr.f32.mxu0 0.0
      %1734 = vmatmul.mubr.f32.gmra.mrb[0].mxu0 %v1599
      %v1735 = vpop.f32.mrb[0].mxu0
      %v1736 = vadd.f32 %v1551, %v1735
      %v1737 = vpop.f32.mrb[0].mxu0
      %1738 = vmatprep.mubr.f32.mxu0 0.0
      %1739 = vmatmul.mubr.f32.gmra.mrb[0].mxu0 %v1602
      %v1740 = vpop.f32.mrb[0].mxu0
      %v1741 = vadd.f32 %v1556, %v1740
      %v1742 = vpop.f32.mrb[0].mxu0
      %1743 = vdwg.mxu0
      %v1744 = vld [vmem:[#allocation3 + $0x2] sm:$0xff]
      %v1745 = vld [vmem:[#allocation3 + $0xa] sm:$0xff]
      %v1746 = vld [vmem:[#allocation3 + $0x12] sm:$0xff]
      %v1747 = vld [vmem:[#allocation3 + $0x1a] sm:$0xff]
      %v1748 = vld [vmem:[#allocation3 + $0x22] sm:$0xff]
      %v1749 = vld [vmem:[#allocation3 + $0x2a] sm:$0xff]
      %v1750 = vld [vmem:[#allocation3 + $0x32] sm:$0xff]
      %v1751 = vld [vmem:[#allocation3 + $0x3a] sm:$0xff]
      %v1752 = vld [vmem:[#allocation3 + $0x42] sm:$0xff]
      %v1753 = vld [vmem:[#allocation3 + $0x4a] sm:$0xff]
      %v1754 = vld [vmem:[#allocation3 + $0x52] sm:$0xff]
      %v1755 = vld [vmem:[#allocation3 + $0x5a] sm:$0xff]
      %v1756 = vld [vmem:[#allocation3 + $0x62] sm:$0xff]
      %v1757 = vld [vmem:[#allocation3 + $0x6a] sm:$0xff]
      %v1758 = vld [vmem:[#allocation3 + $0x72] sm:$0xff]
      %s1759 = scalar_lea.vmem %s3, 64
      %v1760 = vld [vmem:[%s1759] sm:$0xff]
      %v1761 = vld [vmem:[%s1759 + $0x8] sm:$0xff]
      %v1762 = vld [vmem:[%s1759 + $0x10] sm:$0xff]
      %v1763 = vld [vmem:[%s1759 + $0x18] sm:$0xff]
      %v1765 = vsel %vm1206, %v1744, 0
      %v1768 = vsel %vm1206, %v1745, 0
      %v1771 = vsel %vm1206, %v1746, 0
      %v1774 = vsel %vm1206, %v1747, 0
      %v1777 = vsel %vm1206, %v1748, 0
      %v1780 = vsel %vm1206, %v1749, 0
      %v1783 = vsel %vm1206, %v1750, 0
      %v1786 = vsel %vm1206, %v1751, 0
      %v1789 = vsel %vm1206, %v1752, 0
      %v1792 = vsel %vm1206, %v1753, 0
      %v1795 = vsel %vm1206, %v1754, 0
      %v1798 = vsel %vm1206, %v1755, 0
      %v1801 = vsel %vm1206, %v1756, 0
      %v1804 = vsel %vm1206, %v1757, 0
      %v1807 = vsel %vm1206, %v1758, 0
      %1809 = vmatprep.subr.mxu0 0.0
      %1810 = vmatpush1.msra.mxu0 %v1760
      %1811 = vmatprep.subr.mxu0 0.0
      %1812 = vmatpush1.msra.mxu0 %v1761
      %1813 = vmatprep.subr.mxu0 0.0
      %1814 = vmatpush1.msra.mxu0 %v1762
      %1815 = vmatprep.subr.mxu0 0.0
      %1816 = vmatpush1.msra.mxu0 %v1763
      %1817 = vmatprep.subr.mxu0 0.0
      %1818 = vmatpush1.msra.mxu0 0.0
      %1819 = vmatprep.subr.mxu0 0.0
      %1820 = vmatpush1.msra.mxu0 0.0
      %1821 = vmatprep.subr.mxu0 0.0
      %1822 = vmatpush1.msra.mxu0 0.0
      %1823 = vmatprep.subr.mxu0 0.0
      %1824 = vmatpush1.msra.mxu0 0.0
      %1825 = vmatprep.subr.mxu0 0.0
      %1826 = vmatpush1.msra.mxu0 0.0
      %1827 = vmatprep.subr.mxu0 0.0
      %1828 = vmatpush1.msra.mxu0 0.0
      %1829 = vmatprep.subr.mxu0 0.0
      %1830 = vmatpush1.msra.mxu0 0.0
      %1831 = vmatprep.subr.mxu0 0.0
      %1832 = vmatpush1.msra.mxu0 0.0
      %1833 = vmatprep.subr.mxu0 0.0
      %1834 = vmatpush1.msra.mxu0 0.0
      %1835 = vmatprep.subr.mxu0 0.0
      %1836 = vmatpush1.msra.mxu0 0.0
      %1837 = vmatprep.subr.mxu0 0.0
      %1838 = vmatpush1.msra.mxu0 0.0
      %1839 = vmatprep.subr.mxu0 0.0
      %1840 = vmatpush1.msra.mxu0 0.0
      %1841 = vmatprep.subr.mxu0 0.0
      %1842 = vmatpush1.msra.mxu0 0.0
      %1843 = vmatprep.subr.mxu0 0.0
      %1844 = vmatpush1.msra.mxu0 0.0
      %1845 = vmatprep.subr.mxu0 0.0
      %1846 = vmatpush1.msra.mxu0 0.0
      %1847 = vmatprep.subr.mxu0 0.0
      %1848 = vmatpush1.msra.mxu0 0.0
      %1849 = vmatprep.subr.mxu0 0.0
      %1850 = vmatpush1.msra.mxu0 0.0
      %1851 = vmatprep.subr.mxu0 0.0
      %1852 = vmatpush1.msra.mxu0 0.0
      %1853 = vmatprep.subr.mxu0 0.0
      %1854 = vmatpush1.msra.mxu0 0.0
      %1855 = vmatprep.subr.mxu0 0.0
      %1856 = vmatpush1.msra.mxu0 0.0
      %1857 = vmatprep.subr.mxu0 0.0
      %1858 = vmatpush1.msra.mxu0 0.0
      %1859 = vmatprep.subr.mxu0 0.0
      %1860 = vmatpush1.msra.mxu0 0.0
      %1861 = vmatprep.subr.mxu0 0.0
      %1862 = vmatpush1.msra.mxu0 0.0
      %1863 = vmatprep.subr.mxu0 0.0
      %1864 = vmatpush1.msra.mxu0 0.0
      %1865 = vmatprep.subr.mxu0 0.0
      %1866 = vmatpush1.msra.mxu0 0.0
      %1867 = vmatprep.subr.mxu0 0.0
      %1868 = vmatpush1.msra.mxu0 0.0
      %1869 = vmatprep.subr.mxu0 0.0
      %1870 = vmatpush1.msra.mxu0 0.0
      %1871 = vmatprep.subr.mxu0 0.0
      %1872 = vmatpush1.msra.mxu0 0.0
      %1873 = vmatprep.mubr.f32.mxu0 0.0
      %1874 = vmatmul.mubr.f32.gmra.mrb[0].mxu0 %v1765
      %v1875 = vpop.f32.mrb[0].mxu0
      %v1876 = vadd.f32 0.0, %v1875
      %v1877 = vpop.f32.mrb[0].mxu0
      %1878 = vmatprep.mubr.f32.mxu0 0.0
      %1879 = vmatmul.mubr.f32.gmra.mrb[0].mxu0 %v1768
      %v1880 = vpop.f32.mrb[0].mxu0
      %v1881 = vadd.f32 0.0, %v1880
      %v1882 = vpop.f32.mrb[0].mxu0
      %1883 = vmatprep.mubr.f32.mxu0 0.0
      %1884 = vmatmul.mubr.f32.gmra.mrb[0].mxu0 %v1771
      %v1885 = vpop.f32.mrb[0].mxu0
      %v1886 = vadd.f32 0.0, %v1885
      %v1887 = vpop.f32.mrb[0].mxu0
      %1888 = vmatprep.mubr.f32.mxu0 0.0
      %1889 = vmatmul.mubr.f32.gmra.mrb[0].mxu0 %v1774
      %v1890 = vpop.f32.mrb[0].mxu0
      %v1891 = vadd.f32 0.0, %v1890
      %v1892 = vpop.f32.mrb[0].mxu0
      %1893 = vmatprep.mubr.f32.mxu0 0.0
      %1894 = vmatmul.mubr.f32.gmra.mrb[0].mxu0 %v1777
      %v1895 = vpop.f32.mrb[0].mxu0
      %v1896 = vadd.f32 0.0, %v1895
      %v1897 = vpop.f32.mrb[0].mxu0
      %1898 = vmatprep.mubr.f32.mxu0 0.0
      %1899 = vmatmul.mubr.f32.gmra.mrb[0].mxu0 %v1780
      %v1900 = vpop.f32.mrb[0].mxu0
      %v1901 = vadd.f32 0.0, %v1900
      %v1902 = vpop.f32.mrb[0].mxu0
      %1903 = vmatprep.mubr.f32.mxu0 0.0
      %1904 = vmatmul.mubr.f32.gmra.mrb[0].mxu0 %v1783
      %v1905 = vpop.f32.mrb[0].mxu0
      %v1906 = vadd.f32 0.0, %v1905
      %v1907 = vpop.f32.mrb[0].mxu0
      %1908 = vmatprep.mubr.f32.mxu0 0.0
      %1909 = vmatmul.mubr.f32.gmra.mrb[0].mxu0 %v1786
      %v1910 = vpop.f32.mrb[0].mxu0
      %v1911 = vadd.f32 0.0, %v1910
      %v1912 = vpop.f32.mrb[0].mxu0
      %1913 = vmatprep.mubr.f32.mxu0 0.0
      %1914 = vmatmul.mubr.f32.gmra.mrb[0].mxu0 %v1789
      %v1915 = vpop.f32.mrb[0].mxu0
      %v1916 = vadd.f32 0.0, %v1915
      %v1917 = vpop.f32.mrb[0].mxu0
      %1918 = vmatprep.mubr.f32.mxu0 0.0
      %1919 = vmatmul.mubr.f32.gmra.mrb[0].mxu0 %v1792
      %v1920 = vpop.f32.mrb[0].mxu0
      %v1921 = vadd.f32 0.0, %v1920
      %v1922 = vpop.f32.mrb[0].mxu0
      %1923 = vmatprep.mubr.f32.mxu0 0.0
      %1924 = vmatmul.mubr.f32.gmra.mrb[0].mxu0 %v1795
      %v1925 = vpop.f32.mrb[0].mxu0
      %v1926 = vadd.f32 0.0, %v1925
      %v1927 = vpop.f32.mrb[0].mxu0
      %1928 = vmatprep.mubr.f32.mxu0 0.0
      %1929 = vmatmul.mubr.f32.gmra.mrb[0].mxu0 %v1798
      %v1930 = vpop.f32.mrb[0].mxu0
      %v1931 = vadd.f32 0.0, %v1930
      %v1932 = vpop.f32.mrb[0].mxu0
      %1933 = vmatprep.mubr.f32.mxu0 0.0
      %1934 = vmatmul.mubr.f32.gmra.mrb[0].mxu0 %v1801
      %v1935 = vpop.f32.mrb[0].mxu0
      %v1936 = vadd.f32 0.0, %v1935
      %v1937 = vpop.f32.mrb[0].mxu0
      %1938 = vmatprep.mubr.f32.mxu0 0.0
      %1939 = vmatmul.mubr.f32.gmra.mrb[0].mxu0 %v1804
      %v1940 = vpop.f32.mrb[0].mxu0
      %v1941 = vadd.f32 0.0, %v1940
      %v1942 = vpop.f32.mrb[0].mxu0
      %1943 = vmatprep.mubr.f32.mxu0 0.0
      %1944 = vmatmul.mubr.f32.gmra.mrb[0].mxu0 %v1807
      %v1945 = vpop.f32.mrb[0].mxu0
      %v1946 = vadd.f32 0.0, %v1945
      %v1947 = vpop.f32.mrb[0].mxu0
      %1948 = vdwg.mxu0
      %v1949 = vadd.f32 %v1671, %v1876
      %v1950 = vadd.f32 %v1676, %v1881
      %v1951 = vadd.f32 %v1681, %v1886
      %v1952 = vadd.f32 %v1686, %v1891
      %v1953 = vadd.f32 %v1691, %v1896
      %v1954 = vadd.f32 %v1696, %v1901
      %v1955 = vadd.f32 %v1701, %v1906
      %v1956 = vadd.f32 %v1706, %v1911
      %v1957 = vadd.f32 %v1711, %v1916
      %v1958 = vadd.f32 %v1716, %v1921
      %v1959 = vadd.f32 %v1721, %v1926
      %v1960 = vadd.f32 %v1726, %v1931
      %v1961 = vadd.f32 %v1731, %v1936
      %v1962 = vadd.f32 %v1736, %v1941
      %v1963 = vadd.f32 %v1741, %v1946
      %v1964 = vld [vmem:[%s4] sm:$0x1]
      %v1966 = vlaneseq
      %v1967 = vshrl.u32 %v1966, 7
      %v1968 = vsub.s32 0, %v1967
      %v1969 = vrot.slane %v1964, %v1968
      %v1971 = vadd.f32 %v1949, %v1969
      %v1972 = vadd.f32 %v1950, %v1969
      %v1973 = vadd.f32 %v1951, %v1969
      %v1974 = vadd.f32 %v1952, %v1969
      %v1975 = vadd.f32 %v1953, %v1969
      %v1976 = vadd.f32 %v1954, %v1969
      %v1977 = vadd.f32 %v1955, %v1969
      %v1978 = vadd.f32 %v1956, %v1969
      %v1979 = vadd.f32 %v1957, %v1969
      %v1980 = vadd.f32 %v1958, %v1969
      %v1981 = vadd.f32 %v1959, %v1969
      %v1982 = vadd.f32 %v1960, %v1969
      %v1983 = vadd.f32 %v1961, %v1969
      %v1984 = vadd.f32 %v1962, %v1969
      %v1985 = vadd.f32 %v1963, %v1969
      %v1986 = vmax.f32 %v1971, 0.0
      %v1987 = vmax.f32 %v1972, 0.0
      %v1988 = vmax.f32 %v1973, 0.0
      %v1989 = vmax.f32 %v1974, 0.0
      %v1990 = vmax.f32 %v1975, 0.0
      %v1991 = vmax.f32 %v1976, 0.0
      %v1992 = vmax.f32 %v1977, 0.0
      %v1993 = vmax.f32 %v1978, 0.0
      %v1994 = vmax.f32 %v1979, 0.0
      %v1995 = vmax.f32 %v1980, 0.0
      %v1996 = vmax.f32 %v1981, 0.0
      %v1997 = vmax.f32 %v1982, 0.0
      %v1998 = vmax.f32 %v1983, 0.0
      %v1999 = vmax.f32 %v1984, 0.0
      %v2000 = vmax.f32 %v1985, 0.0
      %2001 = vst.msk [vmem:[#allocation4] sm:$0xff] %vm126, %v1986
      %2002 = vst.msk [vmem:[#allocation4 + $0x8] sm:$0xff] %vm126, %v1987
      %2003 = vst.msk [vmem:[#allocation4 + $0x10] sm:$0xff] %vm126, %v1988
      %2004 = vst.msk [vmem:[#allocation4 + $0x18] sm:$0xff] %vm126, %v1989
      %2005 = vst.msk [vmem:[#allocation4 + $0x20] sm:$0xff] %vm126, %v1990
      %2006 = vst.msk [vmem:[#allocation4 + $0x28] sm:$0xff] %vm126, %v1991
      %2007 = vst.msk [vmem:[#allocation4 + $0x30] sm:$0xff] %vm126, %v1992
      %2008 = vst.msk [vmem:[#allocation4 + $0x38] sm:$0xff] %vm126, %v1993
      %2009 = vst.msk [vmem:[#allocation4 + $0x40] sm:$0xff] %vm126, %v1994
      %2010 = vst.msk [vmem:[#allocation4 + $0x48] sm:$0xff] %vm126, %v1995
      %2011 = vst.msk [vmem:[#allocation4 + $0x50] sm:$0xff] %vm126, %v1996
      %2012 = vst.msk [vmem:[#allocation4 + $0x58] sm:$0xff] %vm126, %v1997
      %2013 = vst.msk [vmem:[#allocation4 + $0x60] sm:$0xff] %vm126, %v1998
      %2014 = vst.msk [vmem:[#allocation4 + $0x68] sm:$0xff] %vm126, %v1999
      %2015 = vst.msk [vmem:[#allocation4 + $0x70] sm:$0xff] %vm126, %v2000
      %v2016 = vld [vmem:[#allocation4] ss:$2 sm:$0xff]
      %s2017 = scalar_lea.vmem [#allocation4], 16
      %v2018 = vld [vmem:[%s2017] ss:$2 sm:$0xff]
      %s2019 = scalar_lea.vmem [#allocation4], 32
      %v2020 = vld [vmem:[%s2019] ss:$2 sm:$0xff]
      %s2021 = scalar_lea.vmem [#allocation4], 48
      %v2022 = vld [vmem:[%s2021] ss:$2 sm:$0xff]
      %s2023 = scalar_lea.vmem [#allocation4], 64
      %v2024 = vld [vmem:[%s2023] ss:$2 sm:$0xff]
      %s2025 = scalar_lea.vmem [#allocation4], 80
      %v2026 = vld [vmem:[%s2025] ss:$2 sm:$0xff]
      %s2027 = scalar_lea.vmem [#allocation4], 96
      %v2028 = vld [vmem:[%s2027] ss:$2 sm:$0xff]
      %s2029 = scalar_lea.vmem [#allocation4], 112
      %v2030 = vld [vmem:[%s2029] ss:$2 sm:$0xf]
      %s2031 = scalar_lea.vmem [#allocation4], 1
      %v2032 = vld [vmem:[%s2031] ss:$2 sm:$0xff]
      %s2033 = scalar_lea.vmem [#allocation4], 17
      %v2034 = vld [vmem:[%s2033] ss:$2 sm:$0xff]
      %s2035 = scalar_lea.vmem [#allocation4], 33
      %v2036 = vld [vmem:[%s2035] ss:$2 sm:$0xff]
      %s2037 = scalar_lea.vmem [#allocation4], 49
      %v2038 = vld [vmem:[%s2037] ss:$2 sm:$0xff]
      %s2039 = scalar_lea.vmem [#allocation4], 65
      %v2040 = vld [vmem:[%s2039] ss:$2 sm:$0xff]
      %s2041 = scalar_lea.vmem [#allocation4], 81
      %v2042 = vld [vmem:[%s2041] ss:$2 sm:$0xff]
      %s2043 = scalar_lea.vmem [#allocation4], 97
      %v2044 = vld [vmem:[%s2043] ss:$2 sm:$0xff]
      %s2045 = scalar_lea.vmem [#allocation4], 113
      %v2046 = vld [vmem:[%s2045] ss:$2 sm:$0xf]
      %v2047 = vmax.f32 %v2016, %v2032
      %v2048 = vmax.f32 %v2018, %v2034
      %v2049 = vmax.f32 %v2020, %v2036
      %v2050 = vmax.f32 %v2022, %v2038
      %v2051 = vmax.f32 %v2024, %v2040
      %v2052 = vmax.f32 %v2026, %v2042
      %v2053 = vmax.f32 %v2028, %v2044
      %v2054 = vmax.f32 %v2030, %v2046
      %2055 = vst.msk [vmem:[#allocation5] sm:$0xff] %vm126, %v2047
      %2056 = vst.msk [vmem:[#allocation5 + $0x8] sm:$0xff] %vm126, %v2048
      %2057 = vst.msk [vmem:[#allocation5 + $0x10] sm:$0xff] %vm126, %v2049
      %2058 = vst.msk [vmem:[#allocation5 + $0x18] sm:$0xff] %vm126, %v2050
      %2059 = vst.msk [vmem:[#allocation5 + $0x20] sm:$0xff] %vm126, %v2051
      %2060 = vst.msk [vmem:[#allocation5 + $0x28] sm:$0xff] %vm126, %v2052
      %2061 = vst.msk [vmem:[#allocation5 + $0x30] sm:$0xff] %vm126, %v2053
      %vm2062 = vcmask 519168
      %2063 = vst.msk [vmem:[#allocation5 + $0x38] sm:$0xf] %vm2062, %v2054
      %v2064 = vld [vmem:[#allocation5] sm:$0xff]
      %v2065 = vld [vmem:[#allocation5 + $0x8] sm:$0xff]
      %v2066 = vld [vmem:[#allocation5 + $0x10] sm:$0xff]
      %v2067 = vld [vmem:[#allocation5 + $0x18] sm:$0xff]
      %v2068 = vld [vmem:[#allocation5 + $0x20] sm:$0xff]
      %v2069 = vld [vmem:[#allocation5 + $0x28] sm:$0xff]
      %v2070 = vld [vmem:[#allocation5 + $0x30] sm:$0xff]
      %v2071 = vld [vmem:[#allocation5 + $0x38] sm:$0x3]
      %v2072 = vld [vmem:[%s5] sm:$0xff]
      %v2073 = vld [vmem:[%s5 + $0x8] sm:$0xff]
      %v2074 = vld [vmem:[%s5 + $0x10] sm:$0xff]
      %v2075 = vld [vmem:[%s5 + $0x18] sm:$0xff]
      %v2076 = vld [vmem:[%s5 + $0x20] sm:$0xff]
      %v2077 = vld [vmem:[%s5 + $0x28] sm:$0xff]
      %v2078 = vld [vmem:[%s5 + $0x30] sm:$0xff]
      %v2079 = vld [vmem:[%s5 + $0x38] sm:$0xff]
      %v2080 = vld [vmem:[#allocation5 + $0x1] sm:$0xff]
      %v2081 = vld [vmem:[#allocation5 + $0x9] sm:$0xff]
      %v2082 = vld [vmem:[#allocation5 + $0x11] sm:$0xff]
      %v2083 = vld [vmem:[#allocation5 + $0x19] sm:$0xff]
      %v2084 = vld [vmem:[#allocation5 + $0x21] sm:$0xff]
      %v2085 = vld [vmem:[#allocation5 + $0x29] sm:$0xff]
      %v2086 = vld [vmem:[#allocation5 + $0x31] sm:$0xff]
      %v2087 = vld [vmem:[#allocation5 + $0x39] sm:$0x3]
      %s2088 = scalar_lea.vmem %s5, 64
      %v2089 = vld [vmem:[%s2088] sm:$0xff]
      %v2090 = vld [vmem:[%s2088 + $0x8] sm:$0xff]
      %v2091 = vld [vmem:[%s2088 + $0x10] sm:$0xff]
      %v2092 = vld [vmem:[%s2088 + $0x18] sm:$0xff]
      %v2093 = vld [vmem:[%s2088 + $0x20] sm:$0xff]
      %v2094 = vld [vmem:[%s2088 + $0x28] sm:$0xff]
      %v2095 = vld [vmem:[%s2088 + $0x30] sm:$0xff]
      %v2096 = vld [vmem:[%s2088 + $0x38] sm:$0xff]
      %v2098 = vsel %vm126, %v2080, 0
      %v2101 = vsel %vm126, %v2081, 0
      %v2104 = vsel %vm126, %v2082, 0
      %v2107 = vsel %vm126, %v2083, 0
      %v2110 = vsel %vm126, %v2084, 0
      %v2113 = vsel %vm126, %v2085, 0
      %v2116 = vsel %vm126, %v2086, 0
      %v2119 = vsel %vm126, %v2087, 0
      %2121 = vmatprep.subr.mxu0 0.0
      %2122 = vmatpush1.msra.mxu0 %v2089
      %2123 = vmatprep.subr.mxu0 0.0
      %2124 = vmatpush1.msra.mxu0 %v2090
      %2125 = vmatprep.subr.mxu0 0.0
      %2126 = vmatpush1.msra.mxu0 %v2091
      %2127 = vmatprep.subr.mxu0 0.0
      %2128 = vmatpush1.msra.mxu0 %v2092
      %2129 = vmatprep.subr.mxu0 0.0
      %2130 = vmatpush1.msra.mxu0 %v2093
      %2131 = vmatprep.subr.mxu0 0.0
      %2132 = vmatpush1.msra.mxu0 %v2094
      %2133 = vmatprep.subr.mxu0 0.0
      %2134 = vmatpush1.msra.mxu0 %v2095
      %2135 = vmatprep.subr.mxu0 0.0
      %2136 = vmatpush1.msra.mxu0 %v2096
      %2137 = vmatprep.subr.mxu0 0.0
      %2138 = vmatpush1.msra.mxu0 0.0
      %2139 = vmatprep.subr.mxu0 0.0
      %2140 = vmatpush1.msra.mxu0 0.0
      %2141 = vmatprep.subr.mxu0 0.0
      %2142 = vmatpush1.msra.mxu0 0.0
      %2143 = vmatprep.subr.mxu0 0.0
      %2144 = vmatpush1.msra.mxu0 0.0
      %2145 = vmatprep.subr.mxu0 0.0
      %2146 = vmatpush1.msra.mxu0 0.0
      %2147 = vmatprep.subr.mxu0 0.0
      %2148 = vmatpush1.msra.mxu0 0.0
      %2149 = vmatprep.subr.mxu0 0.0
      %2150 = vmatpush1.msra.mxu0 0.0
      %2151 = vmatprep.subr.mxu0 0.0
      %2152 = vmatpush1.msra.mxu0 0.0
      %2153 = vmatprep.subr.mxu0 0.0
      %2154 = vmatpush1.msra.mxu0 0.0
      %2155 = vmatprep.subr.mxu0 0.0
      %2156 = vmatpush1.msra.mxu0 0.0
      %2157 = vmatprep.subr.mxu0 0.0
      %2158 = vmatpush1.msra.mxu0 0.0
      %2159 = vmatprep.subr.mxu0 0.0
      %2160 = vmatpush1.msra.mxu0 0.0
      %2161 = vmatprep.subr.mxu0 0.0
      %2162 = vmatpush1.msra.mxu0 0.0
      %2163 = vmatprep.subr.mxu0 0.0
      %2164 = vmatpush1.msra.mxu0 0.0
      %2165 = vmatprep.subr.mxu0 0.0
      %2166 = vmatpush1.msra.mxu0 0.0
      %2167 = vmatprep.subr.mxu0 0.0
      %2168 = vmatpush1.msra.mxu0 0.0
      %2169 = vmatprep.subr.mxu0 0.0
      %2170 = vmatpush1.msra.mxu0 0.0
      %2171 = vmatprep.subr.mxu0 0.0
      %2172 = vmatpush1.msra.mxu0 0.0
      %2173 = vmatprep.subr.mxu0 0.0
      %2174 = vmatpush1.msra.mxu0 0.0
      %2175 = vmatprep.subr.mxu0 0.0
      %2176 = vmatpush1.msra.mxu0 0.0
      %2177 = vmatprep.subr.mxu0 0.0
      %2178 = vmatpush1.msra.mxu0 0.0
      %2179 = vmatprep.subr.mxu0 0.0
      %2180 = vmatpush1.msra.mxu0 0.0
      %2181 = vmatprep.subr.mxu0 0.0
      %2182 = vmatpush1.msra.mxu0 0.0
      %2183 = vmatprep.subr.mxu0 0.0
      %2184 = vmatpush1.msra.mxu0 0.0
      %2185 = vmatprep.mubr.f32.mxu0 0.0
      %2186 = vmatmul.mubr.f32.gmra.mrb[0].mxu0 %v2098
      %v2187 = vpop.f32.mrb[0].mxu0
      %v2188 = vadd.f32 0.0, %v2187
      %v2189 = vpop.f32.mrb[0].mxu0
      %2190 = vmatprep.mubr.f32.mxu0 0.0
      %2191 = vmatmul.mubr.f32.gmra.mrb[0].mxu0 %v2101
      %v2192 = vpop.f32.mrb[0].mxu0
      %v2193 = vadd.f32 0.0, %v2192
      %v2194 = vpop.f32.mrb[0].mxu0
      %2195 = vmatprep.mubr.f32.mxu0 0.0
      %2196 = vmatmul.mubr.f32.gmra.mrb[0].mxu0 %v2104
      %v2197 = vpop.f32.mrb[0].mxu0
      %v2198 = vadd.f32 0.0, %v2197
      %v2199 = vpop.f32.mrb[0].mxu0
      %2200 = vmatprep.mubr.f32.mxu0 0.0
      %2201 = vmatmul.mubr.f32.gmra.mrb[0].mxu0 %v2107
      %v2202 = vpop.f32.mrb[0].mxu0
      %v2203 = vadd.f32 0.0, %v2202
      %v2204 = vpop.f32.mrb[0].mxu0
      %2205 = vmatprep.mubr.f32.mxu0 0.0
      %2206 = vmatmul.mubr.f32.gmra.mrb[0].mxu0 %v2110
      %v2207 = vpop.f32.mrb[0].mxu0
      %v2208 = vadd.f32 0.0, %v2207
      %v2209 = vpop.f32.mrb[0].mxu0
      %2210 = vmatprep.mubr.f32.mxu0 0.0
      %2211 = vmatmul.mubr.f32.gmra.mrb[0].mxu0 %v2113
      %v2212 = vpop.f32.mrb[0].mxu0
      %v2213 = vadd.f32 0.0, %v2212
      %v2214 = vpop.f32.mrb[0].mxu0
      %2215 = vmatprep.mubr.f32.mxu0 0.0
      %2216 = vmatmul.mubr.f32.gmra.mrb[0].mxu0 %v2116
      %v2217 = vpop.f32.mrb[0].mxu0
      %v2218 = vadd.f32 0.0, %v2217
      %v2219 = vpop.f32.mrb[0].mxu0
      %2220 = vmatprep.mubr.f32.mxu0 0.0
      %2221 = vmatmul.mubr.f32.gmra.mrb[0].mxu0 %v2119
      %v2222 = vpop.f32.mrb[0].mxu0
      %v2223 = vadd.f32 0.0, %v2222
      %v2224 = vpop.f32.mrb[0].mxu0
      %2225 = vdwg.mxu0
      %v2227 = vsel %vm126, %v2064, 0
      %v2230 = vsel %vm126, %v2065, 0
      %v2233 = vsel %vm126, %v2066, 0
      %v2236 = vsel %vm126, %v2067, 0
      %v2239 = vsel %vm126, %v2068, 0
      %v2242 = vsel %vm126, %v2069, 0
      %v2245 = vsel %vm126, %v2070, 0
      %v2248 = vsel %vm126, %v2071, 0
      %2250 = vmatprep.subr.mxu0 0.0
      %2251 = vmatpush1.msra.mxu0 %v2072
      %2252 = vmatprep.subr.mxu0 0.0
      %2253 = vmatpush1.msra.mxu0 %v2073
      %2254 = vmatprep.subr.mxu0 0.0
      %2255 = vmatpush1.msra.mxu0 %v2074
      %2256 = vmatprep.subr.mxu0 0.0
      %2257 = vmatpush1.msra.mxu0 %v2075
      %2258 = vmatprep.subr.mxu0 0.0
      %2259 = vmatpush1.msra.mxu0 %v2076
      %2260 = vmatprep.subr.mxu0 0.0
      %2261 = vmatpush1.msra.mxu0 %v2077
      %2262 = vmatprep.subr.mxu0 0.0
      %2263 = vmatpush1.msra.mxu0 %v2078
      %2264 = vmatprep.subr.mxu0 0.0
      %2265 = vmatpush1.msra.mxu0 %v2079
      %2266 = vmatprep.subr.mxu0 0.0
      %2267 = vmatpush1.msra.mxu0 0.0
      %2268 = vmatprep.subr.mxu0 0.0
      %2269 = vmatpush1.msra.mxu0 0.0
      %2270 = vmatprep.subr.mxu0 0.0
      %2271 = vmatpush1.msra.mxu0 0.0
      %2272 = vmatprep.subr.mxu0 0.0
      %2273 = vmatpush1.msra.mxu0 0.0
      %2274 = vmatprep.subr.mxu0 0.0
      %2275 = vmatpush1.msra.mxu0 0.0
      %2276 = vmatprep.subr.mxu0 0.0
      %2277 = vmatpush1.msra.mxu0 0.0
      %2278 = vmatprep.subr.mxu0 0.0
      %2279 = vmatpush1.msra.mxu0 0.0
      %2280 = vmatprep.subr.mxu0 0.0
      %2281 = vmatpush1.msra.mxu0 0.0
      %2282 = vmatprep.subr.mxu0 0.0
      %2283 = vmatpush1.msra.mxu0 0.0
      %2284 = vmatprep.subr.mxu0 0.0
      %2285 = vmatpush1.msra.mxu0 0.0
      %2286 = vmatprep.subr.mxu0 0.0
      %2287 = vmatpush1.msra.mxu0 0.0
      %2288 = vmatprep.subr.mxu0 0.0
      %2289 = vmatpush1.msra.mxu0 0.0
      %2290 = vmatprep.subr.mxu0 0.0
      %2291 = vmatpush1.msra.mxu0 0.0
      %2292 = vmatprep.subr.mxu0 0.0
      %2293 = vmatpush1.msra.mxu0 0.0
      %2294 = vmatprep.subr.mxu0 0.0
      %2295 = vmatpush1.msra.mxu0 0.0
      %2296 = vmatprep.subr.mxu0 0.0
      %2297 = vmatpush1.msra.mxu0 0.0
      %2298 = vmatprep.subr.mxu0 0.0
      %2299 = vmatpush1.msra.mxu0 0.0
      %2300 = vmatprep.subr.mxu0 0.0
      %2301 = vmatpush1.msra.mxu0 0.0
      %2302 = vmatprep.subr.mxu0 0.0
      %2303 = vmatpush1.msra.mxu0 0.0
      %2304 = vmatprep.subr.mxu0 0.0
      %2305 = vmatpush1.msra.mxu0 0.0
      %2306 = vmatprep.subr.mxu0 0.0
      %2307 = vmatpush1.msra.mxu0 0.0
      %2308 = vmatprep.subr.mxu0 0.0
      %2309 = vmatpush1.msra.mxu0 0.0
      %2310 = vmatprep.subr.mxu0 0.0
      %2311 = vmatpush1.msra.mxu0 0.0
      %2312 = vmatprep.subr.mxu0 0.0
      %2313 = vmatpush1.msra.mxu0 0.0
      %2314 = vmatprep.mubr.f32.mxu0 0.0
      %2315 = vmatmul.mubr.f32.gmra.mrb[0].mxu0 %v2227
      %v2316 = vpop.f32.mrb[0].mxu0
      %v2317 = vadd.f32 %v2188, %v2316
      %v2318 = vpop.f32.mrb[0].mxu0
      %2319 = vmatprep.mubr.f32.mxu0 0.0
      %2320 = vmatmul.mubr.f32.gmra.mrb[0].mxu0 %v2230
      %v2321 = vpop.f32.mrb[0].mxu0
      %v2322 = vadd.f32 %v2193, %v2321
      %v2323 = vpop.f32.mrb[0].mxu0
      %2324 = vmatprep.mubr.f32.mxu0 0.0
      %2325 = vmatmul.mubr.f32.gmra.mrb[0].mxu0 %v2233
      %v2326 = vpop.f32.mrb[0].mxu0
      %v2327 = vadd.f32 %v2198, %v2326
      %v2328 = vpop.f32.mrb[0].mxu0
      %2329 = vmatprep.mubr.f32.mxu0 0.0
      %2330 = vmatmul.mubr.f32.gmra.mrb[0].mxu0 %v2236
      %v2331 = vpop.f32.mrb[0].mxu0
      %v2332 = vadd.f32 %v2203, %v2331
      %v2333 = vpop.f32.mrb[0].mxu0
      %2334 = vmatprep.mubr.f32.mxu0 0.0
      %2335 = vmatmul.mubr.f32.gmra.mrb[0].mxu0 %v2239
      %v2336 = vpop.f32.mrb[0].mxu0
      %v2337 = vadd.f32 %v2208, %v2336
      %v2338 = vpop.f32.mrb[0].mxu0
      %2339 = vmatprep.mubr.f32.mxu0 0.0
      %2340 = vmatmul.mubr.f32.gmra.mrb[0].mxu0 %v2242
      %v2341 = vpop.f32.mrb[0].mxu0
      %v2342 = vadd.f32 %v2213, %v2341
      %v2343 = vpop.f32.mrb[0].mxu0
      %2344 = vmatprep.mubr.f32.mxu0 0.0
      %2345 = vmatmul.mubr.f32.gmra.mrb[0].mxu0 %v2245
      %v2346 = vpop.f32.mrb[0].mxu0
      %v2347 = vadd.f32 %v2218, %v2346
      %v2348 = vpop.f32.mrb[0].mxu0
      %2349 = vmatprep.mubr.f32.mxu0 0.0
      %2350 = vmatmul.mubr.f32.gmra.mrb[0].mxu0 %v2248
      %v2351 = vpop.f32.mrb[0].mxu0
      %v2352 = vadd.f32 %v2223, %v2351
      %v2353 = vpop.f32.mrb[0].mxu0
      %2354 = vdwg.mxu0
      %v2355 = vld [vmem:[#allocation5 + $0x2] sm:$0xff]
      %v2356 = vld [vmem:[#allocation5 + $0xa] sm:$0xff]
      %v2357 = vld [vmem:[#allocation5 + $0x12] sm:$0xff]
      %v2358 = vld [vmem:[#allocation5 + $0x1a] sm:$0xff]
      %v2359 = vld [vmem:[#allocation5 + $0x22] sm:$0xff]
      %v2360 = vld [vmem:[#allocation5 + $0x2a] sm:$0xff]
      %v2361 = vld [vmem:[#allocation5 + $0x32] sm:$0xff]
      %v2362 = vld [vmem:[#allocation5 + $0x3a] sm:$0x3]
      %s2363 = scalar_lea.vmem %s5, 128
      %v2364 = vld [vmem:[%s2363] sm:$0xff]
      %v2365 = vld [vmem:[%s2363 + $0x8] sm:$0xff]
      %v2366 = vld [vmem:[%s2363 + $0x10] sm:$0xff]
      %v2367 = vld [vmem:[%s2363 + $0x18] sm:$0xff]
      %v2368 = vld [vmem:[%s2363 + $0x20] sm:$0xff]
      %v2369 = vld [vmem:[%s2363 + $0x28] sm:$0xff]
      %v2370 = vld [vmem:[%s2363 + $0x30] sm:$0xff]
      %v2371 = vld [vmem:[%s2363 + $0x38] sm:$0xff]
      %v2373 = vsel %vm126, %v2355, 0
      %v2376 = vsel %vm126, %v2356, 0
      %v2379 = vsel %vm126, %v2357, 0
      %v2382 = vsel %vm126, %v2358, 0
      %v2385 = vsel %vm126, %v2359, 0
      %v2388 = vsel %vm126, %v2360, 0
      %v2391 = vsel %vm126, %v2361, 0
      %v2394 = vsel %vm126, %v2362, 0
      %2396 = vmatprep.subr.mxu0 0.0
      %2397 = vmatpush1.msra.mxu0 %v2364
      %2398 = vmatprep.subr.mxu0 0.0
      %2399 = vmatpush1.msra.mxu0 %v2365
      %2400 = vmatprep.subr.mxu0 0.0
      %2401 = vmatpush1.msra.mxu0 %v2366
      %2402 = vmatprep.subr.mxu0 0.0
      %2403 = vmatpush1.msra.mxu0 %v2367
      %2404 = vmatprep.subr.mxu0 0.0
      %2405 = vmatpush1.msra.mxu0 %v2368
      %2406 = vmatprep.subr.mxu0 0.0
      %2407 = vmatpush1.msra.mxu0 %v2369
      %2408 = vmatprep.subr.mxu0 0.0
      %2409 = vmatpush1.msra.mxu0 %v2370
      %2410 = vmatprep.subr.mxu0 0.0
      %2411 = vmatpush1.msra.mxu0 %v2371
      %2412 = vmatprep.subr.mxu0 0.0
      %2413 = vmatpush1.msra.mxu0 0.0
      %2414 = vmatprep.subr.mxu0 0.0
      %2415 = vmatpush1.msra.mxu0 0.0
      %2416 = vmatprep.subr.mxu0 0.0
      %2417 = vmatpush1.msra.mxu0 0.0
      %2418 = vmatprep.subr.mxu0 0.0
      %2419 = vmatpush1.msra.mxu0 0.0
      %2420 = vmatprep.subr.mxu0 0.0
      %2421 = vmatpush1.msra.mxu0 0.0
      %2422 = vmatprep.subr.mxu0 0.0
      %2423 = vmatpush1.msra.mxu0 0.0
      %2424 = vmatprep.subr.mxu0 0.0
      %2425 = vmatpush1.msra.mxu0 0.0
      %2426 = vmatprep.subr.mxu0 0.0
      %2427 = vmatpush1.msra.mxu0 0.0
      %2428 = vmatprep.subr.mxu0 0.0
      %2429 = vmatpush1.msra.mxu0 0.0
      %2430 = vmatprep.subr.mxu0 0.0
      %2431 = vmatpush1.msra.mxu0 0.0
      %2432 = vmatprep.subr.mxu0 0.0
      %2433 = vmatpush1.msra.mxu0 0.0
      %2434 = vmatprep.subr.mxu0 0.0
      %2435 = vmatpush1.msra.mxu0 0.0
      %2436 = vmatprep.subr.mxu0 0.0
      %2437 = vmatpush1.msra.mxu0 0.0
      %2438 = vmatprep.subr.mxu0 0.0
      %2439 = vmatpush1.msra.mxu0 0.0
      %2440 = vmatprep.subr.mxu0 0.0
      %2441 = vmatpush1.msra.mxu0 0.0
      %2442 = vmatprep.subr.mxu0 0.0
      %2443 = vmatpush1.msra.mxu0 0.0
      %2444 = vmatprep.subr.mxu0 0.0
      %2445 = vmatpush1.msra.mxu0 0.0
      %2446 = vmatprep.subr.mxu0 0.0
      %2447 = vmatpush1.msra.mxu0 0.0
      %2448 = vmatprep.subr.mxu0 0.0
      %2449 = vmatpush1.msra.mxu0 0.0
      %2450 = vmatprep.subr.mxu0 0.0
      %2451 = vmatpush1.msra.mxu0 0.0
      %2452 = vmatprep.subr.mxu0 0.0
      %2453 = vmatpush1.msra.mxu0 0.0
      %2454 = vmatprep.subr.mxu0 0.0
      %2455 = vmatpush1.msra.mxu0 0.0
      %2456 = vmatprep.subr.mxu0 0.0
      %2457 = vmatpush1.msra.mxu0 0.0
      %2458 = vmatprep.subr.mxu0 0.0
      %2459 = vmatpush1.msra.mxu0 0.0
      %2460 = vmatprep.mubr.f32.mxu0 0.0
      %2461 = vmatmul.mubr.f32.gmra.mrb[0].mxu0 %v2373
      %v2462 = vpop.f32.mrb[0].mxu0
      %v2463 = vadd.f32 0.0, %v2462
      %v2464 = vpop.f32.mrb[0].mxu0
      %2465 = vmatprep.mubr.f32.mxu0 0.0
      %2466 = vmatmul.mubr.f32.gmra.mrb[0].mxu0 %v2376
      %v2467 = vpop.f32.mrb[0].mxu0
      %v2468 = vadd.f32 0.0, %v2467
      %v2469 = vpop.f32.mrb[0].mxu0
      %2470 = vmatprep.mubr.f32.mxu0 0.0
      %2471 = vmatmul.mubr.f32.gmra.mrb[0].mxu0 %v2379
      %v2472 = vpop.f32.mrb[0].mxu0
      %v2473 = vadd.f32 0.0, %v2472
      %v2474 = vpop.f32.mrb[0].mxu0
      %2475 = vmatprep.mubr.f32.mxu0 0.0
      %2476 = vmatmul.mubr.f32.gmra.mrb[0].mxu0 %v2382
      %v2477 = vpop.f32.mrb[0].mxu0
      %v2478 = vadd.f32 0.0, %v2477
      %v2479 = vpop.f32.mrb[0].mxu0
      %2480 = vmatprep.mubr.f32.mxu0 0.0
      %2481 = vmatmul.mubr.f32.gmra.mrb[0].mxu0 %v2385
      %v2482 = vpop.f32.mrb[0].mxu0
      %v2483 = vadd.f32 0.0, %v2482
      %v2484 = vpop.f32.mrb[0].mxu0
      %2485 = vmatprep.mubr.f32.mxu0 0.0
      %2486 = vmatmul.mubr.f32.gmra.mrb[0].mxu0 %v2388
      %v2487 = vpop.f32.mrb[0].mxu0
      %v2488 = vadd.f32 0.0, %v2487
      %v2489 = vpop.f32.mrb[0].mxu0
      %2490 = vmatprep.mubr.f32.mxu0 0.0
      %2491 = vmatmul.mubr.f32.gmra.mrb[0].mxu0 %v2391
      %v2492 = vpop.f32.mrb[0].mxu0
      %v2493 = vadd.f32 0.0, %v2492
      %v2494 = vpop.f32.mrb[0].mxu0
      %2495 = vmatprep.mubr.f32.mxu0 0.0
      %2496 = vmatmul.mubr.f32.gmra.mrb[0].mxu0 %v2394
      %v2497 = vpop.f32.mrb[0].mxu0
      %v2498 = vadd.f32 0.0, %v2497
      %v2499 = vpop.f32.mrb[0].mxu0
      %2500 = vdwg.mxu0
      %v2501 = vadd.f32 %v2317, %v2463
      %v2502 = vadd.f32 %v2322, %v2468
      %v2503 = vadd.f32 %v2327, %v2473
      %v2504 = vadd.f32 %v2332, %v2478
      %v2505 = vadd.f32 %v2337, %v2483
      %v2506 = vadd.f32 %v2342, %v2488
      %v2507 = vadd.f32 %v2347, %v2493
      %v2508 = vadd.f32 %v2352, %v2498
      %v2509 = vld [vmem:[%s6] sm:$0x1]
      %v2511 = vlaneseq
      %v2512 = vshrl.u32 %v2511, 7
      %v2513 = vsub.s32 0, %v2512
      %v2514 = vrot.slane %v2509, %v2513
      %v2516 = vadd.f32 %v2501, %v2514
      %v2517 = vadd.f32 %v2502, %v2514
      %v2518 = vadd.f32 %v2503, %v2514
      %v2519 = vadd.f32 %v2504, %v2514
      %v2520 = vadd.f32 %v2505, %v2514
      %v2521 = vadd.f32 %v2506, %v2514
      %v2522 = vadd.f32 %v2507, %v2514
      %v2523 = vadd.f32 %v2508, %v2514
      %v2524 = vmax.f32 %v2516, 0.0
      %v2525 = vmax.f32 %v2517, 0.0
      %v2526 = vmax.f32 %v2518, 0.0
      %v2527 = vmax.f32 %v2519, 0.0
      %v2528 = vmax.f32 %v2520, 0.0
      %v2529 = vmax.f32 %v2521, 0.0
      %v2530 = vmax.f32 %v2522, 0.0
      %v2531 = vmax.f32 %v2523, 0.0
      %2532 = vst [vmem:[#allocation6] sm:$0xff] %v2524
      %2533 = vst [vmem:[#allocation6 + $0x8] sm:$0xff] %v2525
      %2534 = vst [vmem:[#allocation6 + $0x10] sm:$0xff] %v2526
      %2535 = vst [vmem:[#allocation6 + $0x18] sm:$0xff] %v2527
      %2536 = vst [vmem:[#allocation6 + $0x20] sm:$0xff] %v2528
      %2537 = vst [vmem:[#allocation6 + $0x28] sm:$0xff] %v2529
      %2538 = vst [vmem:[#allocation6 + $0x30] sm:$0xff] %v2530
      %2539 = vst [vmem:[#allocation6 + $0x38] sm:$0x3] %v2531
      %v2540 = vld [vmem:[#allocation6] ss:$2 sm:$0xff]
      %s2541 = scalar_lea.vmem [#allocation6], 16
      %v2542 = vld [vmem:[%s2541] ss:$2 sm:$0xff]
      %s2543 = scalar_lea.vmem [#allocation6], 32
      %v2544 = vld [vmem:[%s2543] ss:$2 sm:$0xff]
      %s2545 = scalar_lea.vmem [#allocation6], 48
      %v2546 = vld [vmem:[%s2545] ss:$2 sm:$0x1f]
      %s2547 = scalar_lea.vmem [#allocation6], 1
      %v2548 = vld [vmem:[%s2547] ss:$2 sm:$0xff]
      %s2549 = scalar_lea.vmem [#allocation6], 17
      %v2550 = vld [vmem:[%s2549] ss:$2 sm:$0xff]
      %s2551 = scalar_lea.vmem [#allocation6], 33
      %v2552 = vld [vmem:[%s2551] ss:$2 sm:$0xff]
      %s2553 = scalar_lea.vmem [#allocation6], 49
      %v2554 = vld [vmem:[%s2553] ss:$2 sm:$0x1f]
      %v2555 = vmax.f32 %v2540, %v2548
      %v2556 = vmax.f32 %v2542, %v2550
      %v2557 = vmax.f32 %v2544, %v2552
      %v2558 = vmax.f32 %v2546, %v2554
      %s2559 = smul.u32 %s40, 32
      %s2560 = scalar_lea.vmem [#allocation7], %s2559
      %2561 = vst [vmem:[%s2560] sm:$0xff] %v2555
      %2562 = vst [vmem:[%s2560 + $0x8] sm:$0xff] %v2556
      %2563 = vst [vmem:[%s2560 + $0x10] sm:$0xff] %v2557
      %2564 = vst [vmem:[%s2560 + $0x18] sm:$0x1f] %v2558
    $region50: #{tpu_custom_call.1} parent=1 // loop_footer
      %s44 = sadd.s32 1, %s40
    $region51: #{tpu_custom_call.1} parent=1 // loop_footer_branch
      %39 = sbr.rel target = $region47
    $region52: #{tpu_custom_call.1} parent=1 // loop_exit
      _
    %v2565 = vld [vmem:[%s8] sm:$0x1]
    %v2567 = vlaneseq
    %v2568 = vshrl.u32 %v2567, 7
    %v2569 = vsub.s32 0, %v2568
    %v2570 = vrot.slane %v2565, %v2569
    %v2572 = vadd.f32 %v2570, 0.0
    %v2573 = vld [vmem:[#allocation7] sm:$0x1]
    %v2574 = vld [vmem:[#allocation7 + $0x20] sm:$0x1]
    %v2575 = vld [vmem:[%s7] sm:$0xff]
    %v2576 = vld [vmem:[%s7 + $0x8] sm:$0xff]
    %v2577 = vld [vmem:[%s7 + $0x10] sm:$0xff]
    %v2578 = vld [vmem:[%s7 + $0x18] sm:$0xff]
    %v2579 = vld [vmem:[%s7 + $0x20] sm:$0xff]
    %v2580 = vld [vmem:[%s7 + $0x28] sm:$0xff]
    %v2581 = vld [vmem:[%s7 + $0x30] sm:$0xff]
    %v2582 = vld [vmem:[%s7 + $0x38] sm:$0xff]
    %v2583 = vld [vmem:[%s7 + $0x40] sm:$0xff]
    %v2584 = vld [vmem:[%s7 + $0x48] sm:$0xff]
    %v2585 = vld [vmem:[%s7 + $0x50] sm:$0xff]
    %v2586 = vld [vmem:[%s7 + $0x58] sm:$0xff]
    %v2587 = vld [vmem:[%s7 + $0x60] sm:$0xff]
    %v2588 = vld [vmem:[%s7 + $0x68] sm:$0xff]
    %v2589 = vld [vmem:[%s7 + $0x70] sm:$0xff]
    %v2590 = vld [vmem:[%s7 + $0x78] sm:$0xff]
    %v2593 = vrot.slane %v2574, 7
    %vm2594 = vcmask 1041409
    %v2595 = vsel %vm2594, %v2593, %v2573
    %2597 = vmatprep.subr.mxu0 0.0
    %2598 = vmatpush1.msra.mxu0 %v2575
    %2599 = vmatprep.subr.mxu0 0.0
    %2600 = vmatpush1.msra.mxu0 %v2576
    %2601 = vmatprep.subr.mxu0 0.0
    %2602 = vmatpush1.msra.mxu0 %v2577
    %2603 = vmatprep.subr.mxu0 0.0
    %2604 = vmatpush1.msra.mxu0 %v2578
    %2605 = vmatprep.subr.mxu0 0.0
    %2606 = vmatpush1.msra.mxu0 %v2579
    %2607 = vmatprep.subr.mxu0 0.0
    %2608 = vmatpush1.msra.mxu0 %v2580
    %2609 = vmatprep.subr.mxu0 0.0
    %2610 = vmatpush1.msra.mxu0 %v2581
    %2611 = vmatprep.subr.mxu0 0.0
    %2612 = vmatpush1.msra.mxu0 %v2582
    %2613 = vmatprep.subr.mxu0 0.0
    %2614 = vmatpush1.msra.mxu0 %v2583
    %2615 = vmatprep.subr.mxu0 0.0
    %2616 = vmatpush1.msra.mxu0 %v2584
    %2617 = vmatprep.subr.mxu0 0.0
    %2618 = vmatpush1.msra.mxu0 %v2585
    %2619 = vmatprep.subr.mxu0 0.0
    %2620 = vmatpush1.msra.mxu0 %v2586
    %2621 = vmatprep.subr.mxu0 0.0
    %2622 = vmatpush1.msra.mxu0 %v2587
    %2623 = vmatprep.subr.mxu0 0.0
    %2624 = vmatpush1.msra.mxu0 %v2588
    %2625 = vmatprep.subr.mxu0 0.0
    %2626 = vmatpush1.msra.mxu0 %v2589
    %2627 = vmatprep.subr.mxu0 0.0
    %2628 = vmatpush1.msra.mxu0 %v2590
    %2629 = vmatprep.subr.mxu0 0.0
    %2630 = vmatpush1.msra.mxu0 0.0
    %2631 = vmatprep.subr.mxu0 0.0
    %2632 = vmatpush1.msra.mxu0 0.0
    %2633 = vmatprep.subr.mxu0 0.0
    %2634 = vmatpush1.msra.mxu0 0.0
    %2635 = vmatprep.subr.mxu0 0.0
    %2636 = vmatpush1.msra.mxu0 0.0
    %2637 = vmatprep.subr.mxu0 0.0
    %2638 = vmatpush1.msra.mxu0 0.0
    %2639 = vmatprep.subr.mxu0 0.0
    %2640 = vmatpush1.msra.mxu0 0.0
    %2641 = vmatprep.subr.mxu0 0.0
    %2642 = vmatpush1.msra.mxu0 0.0
    %2643 = vmatprep.subr.mxu0 0.0
    %2644 = vmatpush1.msra.mxu0 0.0
    %2645 = vmatprep.subr.mxu0 0.0
    %2646 = vmatpush1.msra.mxu0 0.0
    %2647 = vmatprep.subr.mxu0 0.0
    %2648 = vmatpush1.msra.mxu0 0.0
    %2649 = vmatprep.subr.mxu0 0.0
    %2650 = vmatpush1.msra.mxu0 0.0
    %2651 = vmatprep.subr.mxu0 0.0
    %2652 = vmatpush1.msra.mxu0 0.0
    %2653 = vmatprep.subr.mxu0 0.0
    %2654 = vmatpush1.msra.mxu0 0.0
    %2655 = vmatprep.subr.mxu0 0.0
    %2656 = vmatpush1.msra.mxu0 0.0
    %2657 = vmatprep.subr.mxu0 0.0
    %2658 = vmatpush1.msra.mxu0 0.0
    %2659 = vmatprep.subr.mxu0 0.0
    %2660 = vmatpush1.msra.mxu0 0.0
    %2661 = vmatprep.mubr.f32.mxu0 0.0
    %2662 = vmatmul.mubr.f32.gmra.mrb[0].mxu0 %v2595
    %v2663 = vpop.f32.mrb[0].mxu0
    %v2664 = vadd.f32 0.0, %v2663
    %v2665 = vpop.f32.mrb[0].mxu0
    %2666 = vdwg.mxu0
    %v2667 = vadd.f32 %v2572, %v2664
    %v2668 = vld [vmem:[#allocation7 + $0x1] sm:$0x1]
    %v2669 = vld [vmem:[#allocation7 + $0x21] sm:$0x1]
    %s2670 = scalar_lea.vmem %s7, 128
    %v2671 = vld [vmem:[%s2670] sm:$0xff]
    %v2672 = vld [vmem:[%s2670 + $0x8] sm:$0xff]
    %v2673 = vld [vmem:[%s2670 + $0x10] sm:$0xff]
    %v2674 = vld [vmem:[%s2670 + $0x18] sm:$0xff]
    %v2675 = vld [vmem:[%s2670 + $0x20] sm:$0xff]
    %v2676 = vld [vmem:[%s2670 + $0x28] sm:$0xff]
    %v2677 = vld [vmem:[%s2670 + $0x30] sm:$0xff]
    %v2678 = vld [vmem:[%s2670 + $0x38] sm:$0xff]
    %v2679 = vld [vmem:[%s2670 + $0x40] sm:$0xff]
    %v2680 = vld [vmem:[%s2670 + $0x48] sm:$0xff]
    %v2681 = vld [vmem:[%s2670 + $0x50] sm:$0xff]
    %v2682 = vld [vmem:[%s2670 + $0x58] sm:$0xff]
    %v2683 = vld [vmem:[%s2670 + $0x60] sm:$0xff]
    %v2684 = vld [vmem:[%s2670 + $0x68] sm:$0xff]
    %v2685 = vld [vmem:[%s2670 + $0x70] sm:$0xff]
    %v2686 = vld [vmem:[%s2670 + $0x78] sm:$0xff]
    %v2689 = vrot.slane %v2669, 7
    %v2690 = vsel %vm2594, %v2689, %v2668
    %2692 = vmatprep.subr.mxu0 0.0
    %2693 = vmatpush1.msra.mxu0 %v2671
    %2694 = vmatprep.subr.mxu0 0.0
    %2695 = vmatpush1.msra.mxu0 %v2672
    %2696 = vmatprep.subr.mxu0 0.0
    %2697 = vmatpush1.msra.mxu0 %v2673
    %2698 = vmatprep.subr.mxu0 0.0
    %2699 = vmatpush1.msra.mxu0 %v2674
    %2700 = vmatprep.subr.mxu0 0.0
    %2701 = vmatpush1.msra.mxu0 %v2675
    %2702 = vmatprep.subr.mxu0 0.0
    %2703 = vmatpush1.msra.mxu0 %v2676
    %2704 = vmatprep.subr.mxu0 0.0
    %2705 = vmatpush1.msra.mxu0 %v2677
    %2706 = vmatprep.subr.mxu0 0.0
    %2707 = vmatpush1.msra.mxu0 %v2678
    %2708 = vmatprep.subr.mxu0 0.0
    %2709 = vmatpush1.msra.mxu0 %v2679
    %2710 = vmatprep.subr.mxu0 0.0
    %2711 = vmatpush1.msra.mxu0 %v2680
    %2712 = vmatprep.subr.mxu0 0.0
    %2713 = vmatpush1.msra.mxu0 %v2681
    %2714 = vmatprep.subr.mxu0 0.0
    %2715 = vmatpush1.msra.mxu0 %v2682
    %2716 = vmatprep.subr.mxu0 0.0
    %2717 = vmatpush1.msra.mxu0 %v2683
    %2718 = vmatprep.subr.mxu0 0.0
    %2719 = vmatpush1.msra.mxu0 %v2684
    %2720 = vmatprep.subr.mxu0 0.0
    %2721 = vmatpush1.msra.mxu0 %v2685
    %2722 = vmatprep.subr.mxu0 0.0
    %2723 = vmatpush1.msra.mxu0 %v2686
    %2724 = vmatprep.subr.mxu0 0.0
    %2725 = vmatpush1.msra.mxu0 0.0
    %2726 = vmatprep.subr.mxu0 0.0
    %2727 = vmatpush1.msra.mxu0 0.0
    %2728 = vmatprep.subr.mxu0 0.0
    %2729 = vmatpush1.msra.mxu0 0.0
    %2730 = vmatprep.subr.mxu0 0.0
    %2731 = vmatpush1.msra.mxu0 0.0
    %2732 = vmatprep.subr.mxu0 0.0
    %2733 = vmatpush1.msra.mxu0 0.0
    %2734 = vmatprep.subr.mxu0 0.0
    %2735 = vmatpush1.msra.mxu0 0.0
    %2736 = vmatprep.subr.mxu0 0.0
    %2737 = vmatpush1.msra.mxu0 0.0
    %2738 = vmatprep.subr.mxu0 0.0
    %2739 = vmatpush1.msra.mxu0 0.0
    %2740 = vmatprep.subr.mxu0 0.0
    %2741 = vmatpush1.msra.mxu0 0.0
    %2742 = vmatprep.subr.mxu0 0.0
    %2743 = vmatpush1.msra.mxu0 0.0
    %2744 = vmatprep.subr.mxu0 0.0
    %2745 = vmatpush1.msra.mxu0 0.0
    %2746 = vmatprep.subr.mxu0 0.0
    %2747 = vmatpush1.msra.mxu0 0.0
    %2748 = vmatprep.subr.mxu0 0.0
    %2749 = vmatpush1.msra.mxu0 0.0
    %2750 = vmatprep.subr.mxu0 0.0
    %2751 = vmatpush1.msra.mxu0 0.0
    %2752 = vmatprep.subr.mxu0 0.0
    %2753 = vmatpush1.msra.mxu0 0.0
    %2754 = vmatprep.subr.mxu0 0.0
    %2755 = vmatpush1.msra.mxu0 0.0
    %2756 = vmatprep.mubr.f32.mxu0 0.0
    %2757 = vmatmul.mubr.f32.gmra.mrb[0].mxu0 %v2690
    %v2758 = vpop.f32.mrb[0].mxu0
    %v2759 = vadd.f32 0.0, %v2758
    %v2760 = vpop.f32.mrb[0].mxu0
    %2761 = vdwg.mxu0
    %v2762 = vadd.f32 %v2667, %v2759
    %v2763 = vld [vmem:[#allocation7 + $0x2] sm:$0x1]
    %v2764 = vld [vmem:[#allocation7 + $0x22] sm:$0x1]
    %s2765 = scalar_lea.vmem %s7, 256
    %v2766 = vld [vmem:[%s2765] sm:$0xff]
    %v2767 = vld [vmem:[%s2765 + $0x8] sm:$0xff]
    %v2768 = vld [vmem:[%s2765 + $0x10] sm:$0xff]
    %v2769 = vld [vmem:[%s2765 + $0x18] sm:$0xff]
    %v2770 = vld [vmem:[%s2765 + $0x20] sm:$0xff]
    %v2771 = vld [vmem:[%s2765 + $0x28] sm:$0xff]
    %v2772 = vld [vmem:[%s2765 + $0x30] sm:$0xff]
    %v2773 = vld [vmem:[%s2765 + $0x38] sm:$0xff]
    %v2774 = vld [vmem:[%s2765 + $0x40] sm:$0xff]
    %v2775 = vld [vmem:[%s2765 + $0x48] sm:$0xff]
    %v2776 = vld [vmem:[%s2765 + $0x50] sm:$0xff]
    %v2777 = vld [vmem:[%s2765 + $0x58] sm:$0xff]
    %v2778 = vld [vmem:[%s2765 + $0x60] sm:$0xff]
    %v2779 = vld [vmem:[%s2765 + $0x68] sm:$0xff]
    %v2780 = vld [vmem:[%s2765 + $0x70] sm:$0xff]
    %v2781 = vld [vmem:[%s2765 + $0x78] sm:$0xff]
    %v2784 = vrot.slane %v2764, 7
    %v2785 = vsel %vm2594, %v2784, %v2763
    %2787 = vmatprep.subr.mxu0 0.0
    %2788 = vmatpush1.msra.mxu0 %v2766
    %2789 = vmatprep.subr.mxu0 0.0
    %2790 = vmatpush1.msra.mxu0 %v2767
    %2791 = vmatprep.subr.mxu0 0.0
    %2792 = vmatpush1.msra.mxu0 %v2768
    %2793 = vmatprep.subr.mxu0 0.0
    %2794 = vmatpush1.msra.mxu0 %v2769
    %2795 = vmatprep.subr.mxu0 0.0
    %2796 = vmatpush1.msra.mxu0 %v2770
    %2797 = vmatprep.subr.mxu0 0.0
    %2798 = vmatpush1.msra.mxu0 %v2771
    %2799 = vmatprep.subr.mxu0 0.0
    %2800 = vmatpush1.msra.mxu0 %v2772
    %2801 = vmatprep.subr.mxu0 0.0
    %2802 = vmatpush1.msra.mxu0 %v2773
    %2803 = vmatprep.subr.mxu0 0.0
    %2804 = vmatpush1.msra.mxu0 %v2774
    %2805 = vmatprep.subr.mxu0 0.0
    %2806 = vmatpush1.msra.mxu0 %v2775
    %2807 = vmatprep.subr.mxu0 0.0
    %2808 = vmatpush1.msra.mxu0 %v2776
    %2809 = vmatprep.subr.mxu0 0.0
    %2810 = vmatpush1.msra.mxu0 %v2777
    %2811 = vmatprep.subr.mxu0 0.0
    %2812 = vmatpush1.msra.mxu0 %v2778
    %2813 = vmatprep.subr.mxu0 0.0
    %2814 = vmatpush1.msra.mxu0 %v2779
    %2815 = vmatprep.subr.mxu0 0.0
    %2816 = vmatpush1.msra.mxu0 %v2780
    %2817 = vmatprep.subr.mxu0 0.0
    %2818 = vmatpush1.msra.mxu0 %v2781
    %2819 = vmatprep.subr.mxu0 0.0
    %2820 = vmatpush1.msra.mxu0 0.0
    %2821 = vmatprep.subr.mxu0 0.0
    %2822 = vmatpush1.msra.mxu0 0.0
    %2823 = vmatprep.subr.mxu0 0.0
    %2824 = vmatpush1.msra.mxu0 0.0
    %2825 = vmatprep.subr.mxu0 0.0
    %2826 = vmatpush1.msra.mxu0 0.0
    %2827 = vmatprep.subr.mxu0 0.0
    %2828 = vmatpush1.msra.mxu0 0.0
    %2829 = vmatprep.subr.mxu0 0.0
    %2830 = vmatpush1.msra.mxu0 0.0
    %2831 = vmatprep.subr.mxu0 0.0
    %2832 = vmatpush1.msra.mxu0 0.0
    %2833 = vmatprep.subr.mxu0 0.0
    %2834 = vmatpush1.msra.mxu0 0.0
    %2835 = vmatprep.subr.mxu0 0.0
    %2836 = vmatpush1.msra.mxu0 0.0
    %2837 = vmatprep.subr.mxu0 0.0
    %2838 = vmatpush1.msra.mxu0 0.0
    %2839 = vmatprep.subr.mxu0 0.0
    %2840 = vmatpush1.msra.mxu0 0.0
    %2841 = vmatprep.subr.mxu0 0.0
    %2842 = vmatpush1.msra.mxu0 0.0
    %2843 = vmatprep.subr.mxu0 0.0
    %2844 = vmatpush1.msra.mxu0 0.0
    %2845 = vmatprep.subr.mxu0 0.0
    %2846 = vmatpush1.msra.mxu0 0.0
    %2847 = vmatprep.subr.mxu0 0.0
    %2848 = vmatpush1.msra.mxu0 0.0
    %2849 = vmatprep.subr.mxu0 0.0
    %2850 = vmatpush1.msra.mxu0 0.0
    %2851 = vmatprep.mubr.f32.mxu0 0.0
    %2852 = vmatmul.mubr.f32.gmra.mrb[0].mxu0 %v2785
    %v2853 = vpop.f32.mrb[0].mxu0
    %v2854 = vadd.f32 0.0, %v2853
    %v2855 = vpop.f32.mrb[0].mxu0
    %2856 = vdwg.mxu0
    %v2857 = vadd.f32 %v2762, %v2854
    %v2858 = vld [vmem:[#allocation7 + $0x3] sm:$0x1]
    %v2859 = vld [vmem:[#allocation7 + $0x23] sm:$0x1]
    %s2860 = scalar_lea.vmem %s7, 384
    %v2861 = vld [vmem:[%s2860] sm:$0xff]
    %v2862 = vld [vmem:[%s2860 + $0x8] sm:$0xff]
    %v2863 = vld [vmem:[%s2860 + $0x10] sm:$0xff]
    %v2864 = vld [vmem:[%s2860 + $0x18] sm:$0xff]
    %v2865 = vld [vmem:[%s2860 + $0x20] sm:$0xff]
    %v2866 = vld [vmem:[%s2860 + $0x28] sm:$0xff]
    %v2867 = vld [vmem:[%s2860 + $0x30] sm:$0xff]
    %v2868 = vld [vmem:[%s2860 + $0x38] sm:$0xff]
    %v2869 = vld [vmem:[%s2860 + $0x40] sm:$0xff]
    %v2870 = vld [vmem:[%s2860 + $0x48] sm:$0xff]
    %v2871 = vld [vmem:[%s2860 + $0x50] sm:$0xff]
    %v2872 = vld [vmem:[%s2860 + $0x58] sm:$0xff]
    %v2873 = vld [vmem:[%s2860 + $0x60] sm:$0xff]
    %v2874 = vld [vmem:[%s2860 + $0x68] sm:$0xff]
    %v2875 = vld [vmem:[%s2860 + $0x70] sm:$0xff]
    %v2876 = vld [vmem:[%s2860 + $0x78] sm:$0xff]
    %v2879 = vrot.slane %v2859, 7
    %v2880 = vsel %vm2594, %v2879, %v2858
    %2882 = vmatprep.subr.mxu0 0.0
    %2883 = vmatpush1.msra.mxu0 %v2861
    %2884 = vmatprep.subr.mxu0 0.0
    %2885 = vmatpush1.msra.mxu0 %v2862
    %2886 = vmatprep.subr.mxu0 0.0
    %2887 = vmatpush1.msra.mxu0 %v2863
    %2888 = vmatprep.subr.mxu0 0.0
    %2889 = vmatpush1.msra.mxu0 %v2864
    %2890 = vmatprep.subr.mxu0 0.0
    %2891 = vmatpush1.msra.mxu0 %v2865
    %2892 = vmatprep.subr.mxu0 0.0
    %2893 = vmatpush1.msra.mxu0 %v2866
    %2894 = vmatprep.subr.mxu0 0.0
    %2895 = vmatpush1.msra.mxu0 %v2867
    %2896 = vmatprep.subr.mxu0 0.0
    %2897 = vmatpush1.msra.mxu0 %v2868
    %2898 = vmatprep.subr.mxu0 0.0
    %2899 = vmatpush1.msra.mxu0 %v2869
    %2900 = vmatprep.subr.mxu0 0.0
    %2901 = vmatpush1.msra.mxu0 %v2870
    %2902 = vmatprep.subr.mxu0 0.0
    %2903 = vmatpush1.msra.mxu0 %v2871
    %2904 = vmatprep.subr.mxu0 0.0
    %2905 = vmatpush1.msra.mxu0 %v2872
    %2906 = vmatprep.subr.mxu0 0.0
    %2907 = vmatpush1.msra.mxu0 %v2873
    %2908 = vmatprep.subr.mxu0 0.0
    %2909 = vmatpush1.msra.mxu0 %v2874
    %2910 = vmatprep.subr.mxu0 0.0
    %2911 = vmatpush1.msra.mxu0 %v2875
    %2912 = vmatprep.subr.mxu0 0.0
    %2913 = vmatpush1.msra.mxu0 %v2876
    %2914 = vmatprep.subr.mxu0 0.0
    %2915 = vmatpush1.msra.mxu0 0.0
    %2916 = vmatprep.subr.mxu0 0.0
    %2917 = vmatpush1.msra.mxu0 0.0
    %2918 = vmatprep.subr.mxu0 0.0
    %2919 = vmatpush1.msra.mxu0 0.0
    %2920 = vmatprep.subr.mxu0 0.0
    %2921 = vmatpush1.msra.mxu0 0.0
    %2922 = vmatprep.subr.mxu0 0.0
    %2923 = vmatpush1.msra.mxu0 0.0
    %2924 = vmatprep.subr.mxu0 0.0
    %2925 = vmatpush1.msra.mxu0 0.0
    %2926 = vmatprep.subr.mxu0 0.0
    %2927 = vmatpush1.msra.mxu0 0.0
    %2928 = vmatprep.subr.mxu0 0.0
    %2929 = vmatpush1.msra.mxu0 0.0
    %2930 = vmatprep.subr.mxu0 0.0
    %2931 = vmatpush1.msra.mxu0 0.0
    %2932 = vmatprep.subr.mxu0 0.0
    %2933 = vmatpush1.msra.mxu0 0.0
    %2934 = vmatprep.subr.mxu0 0.0
    %2935 = vmatpush1.msra.mxu0 0.0
    %2936 = vmatprep.subr.mxu0 0.0
    %2937 = vmatpush1.msra.mxu0 0.0
    %2938 = vmatprep.subr.mxu0 0.0
    %2939 = vmatpush1.msra.mxu0 0.0
    %2940 = vmatprep.subr.mxu0 0.0
    %2941 = vmatpush1.msra.mxu0 0.0
    %2942 = vmatprep.subr.mxu0 0.0
    %2943 = vmatpush1.msra.mxu0 0.0
    %2944 = vmatprep.subr.mxu0 0.0
    %2945 = vmatpush1.msra.mxu0 0.0
    %2946 = vmatprep.mubr.f32.mxu0 0.0
    %2947 = vmatmul.mubr.f32.gmra.mrb[0].mxu0 %v2880
    %v2948 = vpop.f32.mrb[0].mxu0
    %v2949 = vadd.f32 0.0, %v2948
    %v2950 = vpop.f32.mrb[0].mxu0
    %2951 = vdwg.mxu0
    %v2952 = vadd.f32 %v2857, %v2949
    %v2953 = vld [vmem:[#allocation7 + $0x4] sm:$0x1]
    %v2954 = vld [vmem:[#allocation7 + $0x24] sm:$0x1]
    %s2955 = scalar_lea.vmem %s7, 512
    %v2956 = vld [vmem:[%s2955] sm:$0xff]
    %v2957 = vld [vmem:[%s2955 + $0x8] sm:$0xff]
    %v2958 = vld [vmem:[%s2955 + $0x10] sm:$0xff]
    %v2959 = vld [vmem:[%s2955 + $0x18] sm:$0xff]
    %v2960 = vld [vmem:[%s2955 + $0x20] sm:$0xff]
    %v2961 = vld [vmem:[%s2955 + $0x28] sm:$0xff]
    %v2962 = vld [vmem:[%s2955 + $0x30] sm:$0xff]
    %v2963 = vld [vmem:[%s2955 + $0x38] sm:$0xff]
    %v2964 = vld [vmem:[%s2955 + $0x40] sm:$0xff]
    %v2965 = vld [vmem:[%s2955 + $0x48] sm:$0xff]
    %v2966 = vld [vmem:[%s2955 + $0x50] sm:$0xff]
    %v2967 = vld [vmem:[%s2955 + $0x58] sm:$0xff]
    %v2968 = vld [vmem:[%s2955 + $0x60] sm:$0xff]
    %v2969 = vld [vmem:[%s2955 + $0x68] sm:$0xff]
    %v2970 = vld [vmem:[%s2955 + $0x70] sm:$0xff]
    %v2971 = vld [vmem:[%s2955 + $0x78] sm:$0xff]
    %v2974 = vrot.slane %v2954, 7
    %v2975 = vsel %vm2594, %v2974, %v2953
    %2977 = vmatprep.subr.mxu0 0.0
    %2978 = vmatpush1.msra.mxu0 %v2956
    %2979 = vmatprep.subr.mxu0 0.0
    %2980 = vmatpush1.msra.mxu0 %v2957
    %2981 = vmatprep.subr.mxu0 0.0
    %2982 = vmatpush1.msra.mxu0 %v2958
    %2983 = vmatprep.subr.mxu0 0.0
    %2984 = vmatpush1.msra.mxu0 %v2959
    %2985 = vmatprep.subr.mxu0 0.0
    %2986 = vmatpush1.msra.mxu0 %v2960
    %2987 = vmatprep.subr.mxu0 0.0
    %2988 = vmatpush1.msra.mxu0 %v2961
    %2989 = vmatprep.subr.mxu0 0.0
    %2990 = vmatpush1.msra.mxu0 %v2962
    %2991 = vmatprep.subr.mxu0 0.0
    %2992 = vmatpush1.msra.mxu0 %v2963
    %2993 = vmatprep.subr.mxu0 0.0
    %2994 = vmatpush1.msra.mxu0 %v2964
    %2995 = vmatprep.subr.mxu0 0.0
    %2996 = vmatpush1.msra.mxu0 %v2965
    %2997 = vmatprep.subr.mxu0 0.0
    %2998 = vmatpush1.msra.mxu0 %v2966
    %2999 = vmatprep.subr.mxu0 0.0
    %3000 = vmatpush1.msra.mxu0 %v2967
    %3001 = vmatprep.subr.mxu0 0.0
    %3002 = vmatpush1.msra.mxu0 %v2968
    %3003 = vmatprep.subr.mxu0 0.0
    %3004 = vmatpush1.msra.mxu0 %v2969
    %3005 = vmatprep.subr.mxu0 0.0
    %3006 = vmatpush1.msra.mxu0 %v2970
    %3007 = vmatprep.subr.mxu0 0.0
    %3008 = vmatpush1.msra.mxu0 %v2971
    %3009 = vmatprep.subr.mxu0 0.0
    %3010 = vmatpush1.msra.mxu0 0.0
    %3011 = vmatprep.subr.mxu0 0.0
    %3012 = vmatpush1.msra.mxu0 0.0
    %3013 = vmatprep.subr.mxu0 0.0
    %3014 = vmatpush1.msra.mxu0 0.0
    %3015 = vmatprep.subr.mxu0 0.0
    %3016 = vmatpush1.msra.mxu0 0.0
    %3017 = vmatprep.subr.mxu0 0.0
    %3018 = vmatpush1.msra.mxu0 0.0
    %3019 = vmatprep.subr.mxu0 0.0
    %3020 = vmatpush1.msra.mxu0 0.0
    %3021 = vmatprep.subr.mxu0 0.0
    %3022 = vmatpush1.msra.mxu0 0.0
    %3023 = vmatprep.subr.mxu0 0.0
    %3024 = vmatpush1.msra.mxu0 0.0
    %3025 = vmatprep.subr.mxu0 0.0
    %3026 = vmatpush1.msra.mxu0 0.0
    %3027 = vmatprep.subr.mxu0 0.0
    %3028 = vmatpush1.msra.mxu0 0.0
    %3029 = vmatprep.subr.mxu0 0.0
    %3030 = vmatpush1.msra.mxu0 0.0
    %3031 = vmatprep.subr.mxu0 0.0
    %3032 = vmatpush1.msra.mxu0 0.0
    %3033 = vmatprep.subr.mxu0 0.0
    %3034 = vmatpush1.msra.mxu0 0.0
    %3035 = vmatprep.subr.mxu0 0.0
    %3036 = vmatpush1.msra.mxu0 0.0
    %3037 = vmatprep.subr.mxu0 0.0
    %3038 = vmatpush1.msra.mxu0 0.0
    %3039 = vmatprep.subr.mxu0 0.0
    %3040 = vmatpush1.msra.mxu0 0.0
    %3041 = vmatprep.mubr.f32.mxu0 0.0
    %3042 = vmatmul.mubr.f32.gmra.mrb[0].mxu0 %v2975
    %v3043 = vpop.f32.mrb[0].mxu0
    %v3044 = vadd.f32 0.0, %v3043
    %v3045 = vpop.f32.mrb[0].mxu0
    %3046 = vdwg.mxu0
    %v3047 = vadd.f32 %v2952, %v3044
    %v3048 = vld [vmem:[#allocation7 + $0x5] sm:$0x1]
    %v3049 = vld [vmem:[#allocation7 + $0x25] sm:$0x1]
    %s3050 = scalar_lea.vmem %s7, 640
    %v3051 = vld [vmem:[%s3050] sm:$0xff]
    %v3052 = vld [vmem:[%s3050 + $0x8] sm:$0xff]
    %v3053 = vld [vmem:[%s3050 + $0x10] sm:$0xff]
    %v3054 = vld [vmem:[%s3050 + $0x18] sm:$0xff]
    %v3055 = vld [vmem:[%s3050 + $0x20] sm:$0xff]
    %v3056 = vld [vmem:[%s3050 + $0x28] sm:$0xff]
    %v3057 = vld [vmem:[%s3050 + $0x30] sm:$0xff]
    %v3058 = vld [vmem:[%s3050 + $0x38] sm:$0xff]
    %v3059 = vld [vmem:[%s3050 + $0x40] sm:$0xff]
    %v3060 = vld [vmem:[%s3050 + $0x48] sm:$0xff]
    %v3061 = vld [vmem:[%s3050 + $0x50] sm:$0xff]
    %v3062 = vld [vmem:[%s3050 + $0x58] sm:$0xff]
    %v3063 = vld [vmem:[%s3050 + $0x60] sm:$0xff]
    %v3064 = vld [vmem:[%s3050 + $0x68] sm:$0xff]
    %v3065 = vld [vmem:[%s3050 + $0x70] sm:$0xff]
    %v3066 = vld [vmem:[%s3050 + $0x78] sm:$0xff]
    %v3069 = vrot.slane %v3049, 7
    %v3070 = vsel %vm2594, %v3069, %v3048
    %3072 = vmatprep.subr.mxu0 0.0
    %3073 = vmatpush1.msra.mxu0 %v3051
    %3074 = vmatprep.subr.mxu0 0.0
    %3075 = vmatpush1.msra.mxu0 %v3052
    %3076 = vmatprep.subr.mxu0 0.0
    %3077 = vmatpush1.msra.mxu0 %v3053
    %3078 = vmatprep.subr.mxu0 0.0
    %3079 = vmatpush1.msra.mxu0 %v3054
    %3080 = vmatprep.subr.mxu0 0.0
    %3081 = vmatpush1.msra.mxu0 %v3055
    %3082 = vmatprep.subr.mxu0 0.0
    %3083 = vmatpush1.msra.mxu0 %v3056
    %3084 = vmatprep.subr.mxu0 0.0
    %3085 = vmatpush1.msra.mxu0 %v3057
    %3086 = vmatprep.subr.mxu0 0.0
    %3087 = vmatpush1.msra.mxu0 %v3058
    %3088 = vmatprep.subr.mxu0 0.0
    %3089 = vmatpush1.msra.mxu0 %v3059
    %3090 = vmatprep.subr.mxu0 0.0
    %3091 = vmatpush1.msra.mxu0 %v3060
    %3092 = vmatprep.subr.mxu0 0.0
    %3093 = vmatpush1.msra.mxu0 %v3061
    %3094 = vmatprep.subr.mxu0 0.0
    %3095 = vmatpush1.msra.mxu0 %v3062
    %3096 = vmatprep.subr.mxu0 0.0
    %3097 = vmatpush1.msra.mxu0 %v3063
    %3098 = vmatprep.subr.mxu0 0.0
    %3099 = vmatpush1.msra.mxu0 %v3064
    %3100 = vmatprep.subr.mxu0 0.0
    %3101 = vmatpush1.msra.mxu0 %v3065
    %3102 = vmatprep.subr.mxu0 0.0
    %3103 = vmatpush1.msra.mxu0 %v3066
    %3104 = vmatprep.subr.mxu0 0.0
    %3105 = vmatpush1.msra.mxu0 0.0
    %3106 = vmatprep.subr.mxu0 0.0
    %3107 = vmatpush1.msra.mxu0 0.0
    %3108 = vmatprep.subr.mxu0 0.0
    %3109 = vmatpush1.msra.mxu0 0.0
    %3110 = vmatprep.subr.mxu0 0.0
    %3111 = vmatpush1.msra.mxu0 0.0
    %3112 = vmatprep.subr.mxu0 0.0
    %3113 = vmatpush1.msra.mxu0 0.0
    %3114 = vmatprep.subr.mxu0 0.0
    %3115 = vmatpush1.msra.mxu0 0.0
    %3116 = vmatprep.subr.mxu0 0.0
    %3117 = vmatpush1.msra.mxu0 0.0
    %3118 = vmatprep.subr.mxu0 0.0
    %3119 = vmatpush1.msra.mxu0 0.0
    %3120 = vmatprep.subr.mxu0 0.0
    %3121 = vmatpush1.msra.mxu0 0.0
    %3122 = vmatprep.subr.mxu0 0.0
    %3123 = vmatpush1.msra.mxu0 0.0
    %3124 = vmatprep.subr.mxu0 0.0
    %3125 = vmatpush1.msra.mxu0 0.0
    %3126 = vmatprep.subr.mxu0 0.0
    %3127 = vmatpush1.msra.mxu0 0.0
    %3128 = vmatprep.subr.mxu0 0.0
    %3129 = vmatpush1.msra.mxu0 0.0
    %3130 = vmatprep.subr.mxu0 0.0
    %3131 = vmatpush1.msra.mxu0 0.0
    %3132 = vmatprep.subr.mxu0 0.0
    %3133 = vmatpush1.msra.mxu0 0.0
    %3134 = vmatprep.subr.mxu0 0.0
    %3135 = vmatpush1.msra.mxu0 0.0
    %3136 = vmatprep.mubr.f32.mxu0 0.0
    %3137 = vmatmul.mubr.f32.gmra.mrb[0].mxu0 %v3070
    %v3138 = vpop.f32.mrb[0].mxu0
    %v3139 = vadd.f32 0.0, %v3138
    %v3140 = vpop.f32.mrb[0].mxu0
    %3141 = vdwg.mxu0
    %v3142 = vadd.f32 %v3047, %v3139
    %v3143 = vld [vmem:[#allocation7 + $0x6] sm:$0x1]
    %v3144 = vld [vmem:[#allocation7 + $0x26] sm:$0x1]
    %s3145 = scalar_lea.vmem %s7, 768
    %v3146 = vld [vmem:[%s3145] sm:$0xff]
    %v3147 = vld [vmem:[%s3145 + $0x8] sm:$0xff]
    %v3148 = vld [vmem:[%s3145 + $0x10] sm:$0xff]
    %v3149 = vld [vmem:[%s3145 + $0x18] sm:$0xff]
    %v3150 = vld [vmem:[%s3145 + $0x20] sm:$0xff]
    %v3151 = vld [vmem:[%s3145 + $0x28] sm:$0xff]
    %v3152 = vld [vmem:[%s3145 + $0x30] sm:$0xff]
    %v3153 = vld [vmem:[%s3145 + $0x38] sm:$0xff]
    %v3154 = vld [vmem:[%s3145 + $0x40] sm:$0xff]
    %v3155 = vld [vmem:[%s3145 + $0x48] sm:$0xff]
    %v3156 = vld [vmem:[%s3145 + $0x50] sm:$0xff]
    %v3157 = vld [vmem:[%s3145 + $0x58] sm:$0xff]
    %v3158 = vld [vmem:[%s3145 + $0x60] sm:$0xff]
    %v3159 = vld [vmem:[%s3145 + $0x68] sm:$0xff]
    %v3160 = vld [vmem:[%s3145 + $0x70] sm:$0xff]
    %v3161 = vld [vmem:[%s3145 + $0x78] sm:$0xff]
    %v3164 = vrot.slane %v3144, 7
    %v3165 = vsel %vm2594, %v3164, %v3143
    %3167 = vmatprep.subr.mxu0 0.0
    %3168 = vmatpush1.msra.mxu0 %v3146
    %3169 = vmatprep.subr.mxu0 0.0
    %3170 = vmatpush1.msra.mxu0 %v3147
    %3171 = vmatprep.subr.mxu0 0.0
    %3172 = vmatpush1.msra.mxu0 %v3148
    %3173 = vmatprep.subr.mxu0 0.0
    %3174 = vmatpush1.msra.mxu0 %v3149
    %3175 = vmatprep.subr.mxu0 0.0
    %3176 = vmatpush1.msra.mxu0 %v3150
    %3177 = vmatprep.subr.mxu0 0.0
    %3178 = vmatpush1.msra.mxu0 %v3151
    %3179 = vmatprep.subr.mxu0 0.0
    %3180 = vmatpush1.msra.mxu0 %v3152
    %3181 = vmatprep.subr.mxu0 0.0
    %3182 = vmatpush1.msra.mxu0 %v3153
    %3183 = vmatprep.subr.mxu0 0.0
    %3184 = vmatpush1.msra.mxu0 %v3154
    %3185 = vmatprep.subr.mxu0 0.0
    %3186 = vmatpush1.msra.mxu0 %v3155
    %3187 = vmatprep.subr.mxu0 0.0
    %3188 = vmatpush1.msra.mxu0 %v3156
    %3189 = vmatprep.subr.mxu0 0.0
    %3190 = vmatpush1.msra.mxu0 %v3157
    %3191 = vmatprep.subr.mxu0 0.0
    %3192 = vmatpush1.msra.mxu0 %v3158
    %3193 = vmatprep.subr.mxu0 0.0
    %3194 = vmatpush1.msra.mxu0 %v3159
    %3195 = vmatprep.subr.mxu0 0.0
    %3196 = vmatpush1.msra.mxu0 %v3160
    %3197 = vmatprep.subr.mxu0 0.0
    %3198 = vmatpush1.msra.mxu0 %v3161
    %3199 = vmatprep.subr.mxu0 0.0
    %3200 = vmatpush1.msra.mxu0 0.0
    %3201 = vmatprep.subr.mxu0 0.0
    %3202 = vmatpush1.msra.mxu0 0.0
    %3203 = vmatprep.subr.mxu0 0.0
    %3204 = vmatpush1.msra.mxu0 0.0
    %3205 = vmatprep.subr.mxu0 0.0
    %3206 = vmatpush1.msra.mxu0 0.0
    %3207 = vmatprep.subr.mxu0 0.0
    %3208 = vmatpush1.msra.mxu0 0.0
    %3209 = vmatprep.subr.mxu0 0.0
    %3210 = vmatpush1.msra.mxu0 0.0
    %3211 = vmatprep.subr.mxu0 0.0
    %3212 = vmatpush1.msra.mxu0 0.0
    %3213 = vmatprep.subr.mxu0 0.0
    %3214 = vmatpush1.msra.mxu0 0.0
    %3215 = vmatprep.subr.mxu0 0.0
    %3216 = vmatpush1.msra.mxu0 0.0
    %3217 = vmatprep.subr.mxu0 0.0
    %3218 = vmatpush1.msra.mxu0 0.0
    %3219 = vmatprep.subr.mxu0 0.0
    %3220 = vmatpush1.msra.mxu0 0.0
    %3221 = vmatprep.subr.mxu0 0.0
    %3222 = vmatpush1.msra.mxu0 0.0
    %3223 = vmatprep.subr.mxu0 0.0
    %3224 = vmatpush1.msra.mxu0 0.0
    %3225 = vmatprep.subr.mxu0 0.0
    %3226 = vmatpush1.msra.mxu0 0.0
    %3227 = vmatprep.subr.mxu0 0.0
    %3228 = vmatpush1.msra.mxu0 0.0
    %3229 = vmatprep.subr.mxu0 0.0
    %3230 = vmatpush1.msra.mxu0 0.0
    %3231 = vmatprep.mubr.f32.mxu0 0.0
    %3232 = vmatmul.mubr.f32.gmra.mrb[0].mxu0 %v3165
    %v3233 = vpop.f32.mrb[0].mxu0
    %v3234 = vadd.f32 0.0, %v3233
    %v3235 = vpop.f32.mrb[0].mxu0
    %3236 = vdwg.mxu0
    %v3237 = vadd.f32 %v3142, %v3234
    %v3238 = vld [vmem:[#allocation7 + $0x7] sm:$0x1]
    %v3239 = vld [vmem:[#allocation7 + $0x27] sm:$0x1]
    %s3240 = scalar_lea.vmem %s7, 896
    %v3241 = vld [vmem:[%s3240] sm:$0xff]
    %v3242 = vld [vmem:[%s3240 + $0x8] sm:$0xff]
    %v3243 = vld [vmem:[%s3240 + $0x10] sm:$0xff]
    %v3244 = vld [vmem:[%s3240 + $0x18] sm:$0xff]
    %v3245 = vld [vmem:[%s3240 + $0x20] sm:$0xff]
    %v3246 = vld [vmem:[%s3240 + $0x28] sm:$0xff]
    %v3247 = vld [vmem:[%s3240 + $0x30] sm:$0xff]
    %v3248 = vld [vmem:[%s3240 + $0x38] sm:$0xff]
    %v3249 = vld [vmem:[%s3240 + $0x40] sm:$0xff]
    %v3250 = vld [vmem:[%s3240 + $0x48] sm:$0xff]
    %v3251 = vld [vmem:[%s3240 + $0x50] sm:$0xff]
    %v3252 = vld [vmem:[%s3240 + $0x58] sm:$0xff]
    %v3253 = vld [vmem:[%s3240 + $0x60] sm:$0xff]
    %v3254 = vld [vmem:[%s3240 + $0x68] sm:$0xff]
    %v3255 = vld [vmem:[%s3240 + $0x70] sm:$0xff]
    %v3256 = vld [vmem:[%s3240 + $0x78] sm:$0xff]
    %v3259 = vrot.slane %v3239, 7
    %v3260 = vsel %vm2594, %v3259, %v3238
    %3262 = vmatprep.subr.mxu0 0.0
    %3263 = vmatpush1.msra.mxu0 %v3241
    %3264 = vmatprep.subr.mxu0 0.0
    %3265 = vmatpush1.msra.mxu0 %v3242
    %3266 = vmatprep.subr.mxu0 0.0
    %3267 = vmatpush1.msra.mxu0 %v3243
    %3268 = vmatprep.subr.mxu0 0.0
    %3269 = vmatpush1.msra.mxu0 %v3244
    %3270 = vmatprep.subr.mxu0 0.0
    %3271 = vmatpush1.msra.mxu0 %v3245
    %3272 = vmatprep.subr.mxu0 0.0
    %3273 = vmatpush1.msra.mxu0 %v3246
    %3274 = vmatprep.subr.mxu0 0.0
    %3275 = vmatpush1.msra.mxu0 %v3247
    %3276 = vmatprep.subr.mxu0 0.0
    %3277 = vmatpush1.msra.mxu0 %v3248
    %3278 = vmatprep.subr.mxu0 0.0
    %3279 = vmatpush1.msra.mxu0 %v3249
    %3280 = vmatprep.subr.mxu0 0.0
    %3281 = vmatpush1.msra.mxu0 %v3250
    %3282 = vmatprep.subr.mxu0 0.0
    %3283 = vmatpush1.msra.mxu0 %v3251
    %3284 = vmatprep.subr.mxu0 0.0
    %3285 = vmatpush1.msra.mxu0 %v3252
    %3286 = vmatprep.subr.mxu0 0.0
    %3287 = vmatpush1.msra.mxu0 %v3253
    %3288 = vmatprep.subr.mxu0 0.0
    %3289 = vmatpush1.msra.mxu0 %v3254
    %3290 = vmatprep.subr.mxu0 0.0
    %3291 = vmatpush1.msra.mxu0 %v3255
    %3292 = vmatprep.subr.mxu0 0.0
    %3293 = vmatpush1.msra.mxu0 %v3256
    %3294 = vmatprep.subr.mxu0 0.0
    %3295 = vmatpush1.msra.mxu0 0.0
    %3296 = vmatprep.subr.mxu0 0.0
    %3297 = vmatpush1.msra.mxu0 0.0
    %3298 = vmatprep.subr.mxu0 0.0
    %3299 = vmatpush1.msra.mxu0 0.0
    %3300 = vmatprep.subr.mxu0 0.0
    %3301 = vmatpush1.msra.mxu0 0.0
    %3302 = vmatprep.subr.mxu0 0.0
    %3303 = vmatpush1.msra.mxu0 0.0
    %3304 = vmatprep.subr.mxu0 0.0
    %3305 = vmatpush1.msra.mxu0 0.0
    %3306 = vmatprep.subr.mxu0 0.0
    %3307 = vmatpush1.msra.mxu0 0.0
    %3308 = vmatprep.subr.mxu0 0.0
    %3309 = vmatpush1.msra.mxu0 0.0
    %3310 = vmatprep.subr.mxu0 0.0
    %3311 = vmatpush1.msra.mxu0 0.0
    %3312 = vmatprep.subr.mxu0 0.0
    %3313 = vmatpush1.msra.mxu0 0.0
    %3314 = vmatprep.subr.mxu0 0.0
    %3315 = vmatpush1.msra.mxu0 0.0
    %3316 = vmatprep.subr.mxu0 0.0
    %3317 = vmatpush1.msra.mxu0 0.0
    %3318 = vmatprep.subr.mxu0 0.0
    %3319 = vmatpush1.msra.mxu0 0.0
    %3320 = vmatprep.subr.mxu0 0.0
    %3321 = vmatpush1.msra.mxu0 0.0
    %3322 = vmatprep.subr.mxu0 0.0
    %3323 = vmatpush1.msra.mxu0 0.0
    %3324 = vmatprep.subr.mxu0 0.0
    %3325 = vmatpush1.msra.mxu0 0.0
    %3326 = vmatprep.mubr.f32.mxu0 0.0
    %3327 = vmatmul.mubr.f32.gmra.mrb[0].mxu0 %v3260
    %v3328 = vpop.f32.mrb[0].mxu0
    %v3329 = vadd.f32 0.0, %v3328
    %v3330 = vpop.f32.mrb[0].mxu0
    %3331 = vdwg.mxu0
    %v3332 = vadd.f32 %v3237, %v3329
    %v3333 = vld [vmem:[#allocation7 + $0x8] sm:$0x1]
    %v3334 = vld [vmem:[#allocation7 + $0x28] sm:$0x1]
    %s3335 = scalar_lea.vmem %s7, 1024
    %v3336 = vld [vmem:[%s3335] sm:$0xff]
    %v3337 = vld [vmem:[%s3335 + $0x8] sm:$0xff]
    %v3338 = vld [vmem:[%s3335 + $0x10] sm:$0xff]
    %v3339 = vld [vmem:[%s3335 + $0x18] sm:$0xff]
    %v3340 = vld [vmem:[%s3335 + $0x20] sm:$0xff]
    %v3341 = vld [vmem:[%s3335 + $0x28] sm:$0xff]
    %v3342 = vld [vmem:[%s3335 + $0x30] sm:$0xff]
    %v3343 = vld [vmem:[%s3335 + $0x38] sm:$0xff]
    %v3344 = vld [vmem:[%s3335 + $0x40] sm:$0xff]
    %v3345 = vld [vmem:[%s3335 + $0x48] sm:$0xff]
    %v3346 = vld [vmem:[%s3335 + $0x50] sm:$0xff]
    %v3347 = vld [vmem:[%s3335 + $0x58] sm:$0xff]
    %v3348 = vld [vmem:[%s3335 + $0x60] sm:$0xff]
    %v3349 = vld [vmem:[%s3335 + $0x68] sm:$0xff]
    %v3350 = vld [vmem:[%s3335 + $0x70] sm:$0xff]
    %v3351 = vld [vmem:[%s3335 + $0x78] sm:$0xff]
    %v3354 = vrot.slane %v3334, 7
    %v3355 = vsel %vm2594, %v3354, %v3333
    %3357 = vmatprep.subr.mxu0 0.0
    %3358 = vmatpush1.msra.mxu0 %v3336
    %3359 = vmatprep.subr.mxu0 0.0
    %3360 = vmatpush1.msra.mxu0 %v3337
    %3361 = vmatprep.subr.mxu0 0.0
    %3362 = vmatpush1.msra.mxu0 %v3338
    %3363 = vmatprep.subr.mxu0 0.0
    %3364 = vmatpush1.msra.mxu0 %v3339
    %3365 = vmatprep.subr.mxu0 0.0
    %3366 = vmatpush1.msra.mxu0 %v3340
    %3367 = vmatprep.subr.mxu0 0.0
    %3368 = vmatpush1.msra.mxu0 %v3341
    %3369 = vmatprep.subr.mxu0 0.0
    %3370 = vmatpush1.msra.mxu0 %v3342
    %3371 = vmatprep.subr.mxu0 0.0
    %3372 = vmatpush1.msra.mxu0 %v3343
    %3373 = vmatprep.subr.mxu0 0.0
    %3374 = vmatpush1.msra.mxu0 %v3344
    %3375 = vmatprep.subr.mxu0 0.0
    %3376 = vmatpush1.msra.mxu0 %v3345
    %3377 = vmatprep.subr.mxu0 0.0
    %3378 = vmatpush1.msra.mxu0 %v3346
    %3379 = vmatprep.subr.mxu0 0.0
    %3380 = vmatpush1.msra.mxu0 %v3347
    %3381 = vmatprep.subr.mxu0 0.0
    %3382 = vmatpush1.msra.mxu0 %v3348
    %3383 = vmatprep.subr.mxu0 0.0
    %3384 = vmatpush1.msra.mxu0 %v3349
    %3385 = vmatprep.subr.mxu0 0.0
    %3386 = vmatpush1.msra.mxu0 %v3350
    %3387 = vmatprep.subr.mxu0 0.0
    %3388 = vmatpush1.msra.mxu0 %v3351
    %3389 = vmatprep.subr.mxu0 0.0
    %3390 = vmatpush1.msra.mxu0 0.0
    %3391 = vmatprep.subr.mxu0 0.0
    %3392 = vmatpush1.msra.mxu0 0.0
    %3393 = vmatprep.subr.mxu0 0.0
    %3394 = vmatpush1.msra.mxu0 0.0
    %3395 = vmatprep.subr.mxu0 0.0
    %3396 = vmatpush1.msra.mxu0 0.0
    %3397 = vmatprep.subr.mxu0 0.0
    %3398 = vmatpush1.msra.mxu0 0.0
    %3399 = vmatprep.subr.mxu0 0.0
    %3400 = vmatpush1.msra.mxu0 0.0
    %3401 = vmatprep.subr.mxu0 0.0
    %3402 = vmatpush1.msra.mxu0 0.0
    %3403 = vmatprep.subr.mxu0 0.0
    %3404 = vmatpush1.msra.mxu0 0.0
    %3405 = vmatprep.subr.mxu0 0.0
    %3406 = vmatpush1.msra.mxu0 0.0
    %3407 = vmatprep.subr.mxu0 0.0
    %3408 = vmatpush1.msra.mxu0 0.0
    %3409 = vmatprep.subr.mxu0 0.0
    %3410 = vmatpush1.msra.mxu0 0.0
    %3411 = vmatprep.subr.mxu0 0.0
    %3412 = vmatpush1.msra.mxu0 0.0
    %3413 = vmatprep.subr.mxu0 0.0
    %3414 = vmatpush1.msra.mxu0 0.0
    %3415 = vmatprep.subr.mxu0 0.0
    %3416 = vmatpush1.msra.mxu0 0.0
    %3417 = vmatprep.subr.mxu0 0.0
    %3418 = vmatpush1.msra.mxu0 0.0
    %3419 = vmatprep.subr.mxu0 0.0
    %3420 = vmatpush1.msra.mxu0 0.0
    %3421 = vmatprep.mubr.f32.mxu0 0.0
    %3422 = vmatmul.mubr.f32.gmra.mrb[0].mxu0 %v3355
    %v3423 = vpop.f32.mrb[0].mxu0
    %v3424 = vadd.f32 0.0, %v3423
    %v3425 = vpop.f32.mrb[0].mxu0
    %3426 = vdwg.mxu0
    %v3427 = vadd.f32 %v3332, %v3424
    %v3428 = vld [vmem:[#allocation7 + $0x9] sm:$0x1]
    %v3429 = vld [vmem:[#allocation7 + $0x29] sm:$0x1]
    %s3430 = scalar_lea.vmem %s7, 1152
    %v3431 = vld [vmem:[%s3430] sm:$0xff]
    %v3432 = vld [vmem:[%s3430 + $0x8] sm:$0xff]
    %v3433 = vld [vmem:[%s3430 + $0x10] sm:$0xff]
    %v3434 = vld [vmem:[%s3430 + $0x18] sm:$0xff]
    %v3435 = vld [vmem:[%s3430 + $0x20] sm:$0xff]
    %v3436 = vld [vmem:[%s3430 + $0x28] sm:$0xff]
    %v3437 = vld [vmem:[%s3430 + $0x30] sm:$0xff]
    %v3438 = vld [vmem:[%s3430 + $0x38] sm:$0xff]
    %v3439 = vld [vmem:[%s3430 + $0x40] sm:$0xff]
    %v3440 = vld [vmem:[%s3430 + $0x48] sm:$0xff]
    %v3441 = vld [vmem:[%s3430 + $0x50] sm:$0xff]
    %v3442 = vld [vmem:[%s3430 + $0x58] sm:$0xff]
    %v3443 = vld [vmem:[%s3430 + $0x60] sm:$0xff]
    %v3444 = vld [vmem:[%s3430 + $0x68] sm:$0xff]
    %v3445 = vld [vmem:[%s3430 + $0x70] sm:$0xff]
    %v3446 = vld [vmem:[%s3430 + $0x78] sm:$0xff]
    %v3449 = vrot.slane %v3429, 7
    %v3450 = vsel %vm2594, %v3449, %v3428
    %3452 = vmatprep.subr.mxu0 0.0
    %3453 = vmatpush1.msra.mxu0 %v3431
    %3454 = vmatprep.subr.mxu0 0.0
    %3455 = vmatpush1.msra.mxu0 %v3432
    %3456 = vmatprep.subr.mxu0 0.0
    %3457 = vmatpush1.msra.mxu0 %v3433
    %3458 = vmatprep.subr.mxu0 0.0
    %3459 = vmatpush1.msra.mxu0 %v3434
    %3460 = vmatprep.subr.mxu0 0.0
    %3461 = vmatpush1.msra.mxu0 %v3435
    %3462 = vmatprep.subr.mxu0 0.0
    %3463 = vmatpush1.msra.mxu0 %v3436
    %3464 = vmatprep.subr.mxu0 0.0
    %3465 = vmatpush1.msra.mxu0 %v3437
    %3466 = vmatprep.subr.mxu0 0.0
    %3467 = vmatpush1.msra.mxu0 %v3438
    %3468 = vmatprep.subr.mxu0 0.0
    %3469 = vmatpush1.msra.mxu0 %v3439
    %3470 = vmatprep.subr.mxu0 0.0
    %3471 = vmatpush1.msra.mxu0 %v3440
    %3472 = vmatprep.subr.mxu0 0.0
    %3473 = vmatpush1.msra.mxu0 %v3441
    %3474 = vmatprep.subr.mxu0 0.0
    %3475 = vmatpush1.msra.mxu0 %v3442
    %3476 = vmatprep.subr.mxu0 0.0
    %3477 = vmatpush1.msra.mxu0 %v3443
    %3478 = vmatprep.subr.mxu0 0.0
    %3479 = vmatpush1.msra.mxu0 %v3444
    %3480 = vmatprep.subr.mxu0 0.0
    %3481 = vmatpush1.msra.mxu0 %v3445
    %3482 = vmatprep.subr.mxu0 0.0
    %3483 = vmatpush1.msra.mxu0 %v3446
    %3484 = vmatprep.subr.mxu0 0.0
    %3485 = vmatpush1.msra.mxu0 0.0
    %3486 = vmatprep.subr.mxu0 0.0
    %3487 = vmatpush1.msra.mxu0 0.0
    %3488 = vmatprep.subr.mxu0 0.0
    %3489 = vmatpush1.msra.mxu0 0.0
    %3490 = vmatprep.subr.mxu0 0.0
    %3491 = vmatpush1.msra.mxu0 0.0
    %3492 = vmatprep.subr.mxu0 0.0
    %3493 = vmatpush1.msra.mxu0 0.0
    %3494 = vmatprep.subr.mxu0 0.0
    %3495 = vmatpush1.msra.mxu0 0.0
    %3496 = vmatprep.subr.mxu0 0.0
    %3497 = vmatpush1.msra.mxu0 0.0
    %3498 = vmatprep.subr.mxu0 0.0
    %3499 = vmatpush1.msra.mxu0 0.0
    %3500 = vmatprep.subr.mxu0 0.0
    %3501 = vmatpush1.msra.mxu0 0.0
    %3502 = vmatprep.subr.mxu0 0.0
    %3503 = vmatpush1.msra.mxu0 0.0
    %3504 = vmatprep.subr.mxu0 0.0
    %3505 = vmatpush1.msra.mxu0 0.0
    %3506 = vmatprep.subr.mxu0 0.0
    %3507 = vmatpush1.msra.mxu0 0.0
    %3508 = vmatprep.subr.mxu0 0.0
    %3509 = vmatpush1.msra.mxu0 0.0
    %3510 = vmatprep.subr.mxu0 0.0
    %3511 = vmatpush1.msra.mxu0 0.0
    %3512 = vmatprep.subr.mxu0 0.0
    %3513 = vmatpush1.msra.mxu0 0.0
    %3514 = vmatprep.subr.mxu0 0.0
    %3515 = vmatpush1.msra.mxu0 0.0
    %3516 = vmatprep.mubr.f32.mxu0 0.0
    %3517 = vmatmul.mubr.f32.gmra.mrb[0].mxu0 %v3450
    %v3518 = vpop.f32.mrb[0].mxu0
    %v3519 = vadd.f32 0.0, %v3518
    %v3520 = vpop.f32.mrb[0].mxu0
    %3521 = vdwg.mxu0
    %v3522 = vadd.f32 %v3427, %v3519
    %v3523 = vld [vmem:[#allocation7 + $0xa] sm:$0x1]
    %v3524 = vld [vmem:[#allocation7 + $0x2a] sm:$0x1]
    %s3525 = scalar_lea.vmem %s7, 1280
    %v3526 = vld [vmem:[%s3525] sm:$0xff]
    %v3527 = vld [vmem:[%s3525 + $0x8] sm:$0xff]
    %v3528 = vld [vmem:[%s3525 + $0x10] sm:$0xff]
    %v3529 = vld [vmem:[%s3525 + $0x18] sm:$0xff]
    %v3530 = vld [vmem:[%s3525 + $0x20] sm:$0xff]
    %v3531 = vld [vmem:[%s3525 + $0x28] sm:$0xff]
    %v3532 = vld [vmem:[%s3525 + $0x30] sm:$0xff]
    %v3533 = vld [vmem:[%s3525 + $0x38] sm:$0xff]
    %v3534 = vld [vmem:[%s3525 + $0x40] sm:$0xff]
    %v3535 = vld [vmem:[%s3525 + $0x48] sm:$0xff]
    %v3536 = vld [vmem:[%s3525 + $0x50] sm:$0xff]
    %v3537 = vld [vmem:[%s3525 + $0x58] sm:$0xff]
    %v3538 = vld [vmem:[%s3525 + $0x60] sm:$0xff]
    %v3539 = vld [vmem:[%s3525 + $0x68] sm:$0xff]
    %v3540 = vld [vmem:[%s3525 + $0x70] sm:$0xff]
    %v3541 = vld [vmem:[%s3525 + $0x78] sm:$0xff]
    %v3544 = vrot.slane %v3524, 7
    %v3545 = vsel %vm2594, %v3544, %v3523
    %3547 = vmatprep.subr.mxu0 0.0
    %3548 = vmatpush1.msra.mxu0 %v3526
    %3549 = vmatprep.subr.mxu0 0.0
    %3550 = vmatpush1.msra.mxu0 %v3527
    %3551 = vmatprep.subr.mxu0 0.0
    %3552 = vmatpush1.msra.mxu0 %v3528
    %3553 = vmatprep.subr.mxu0 0.0
    %3554 = vmatpush1.msra.mxu0 %v3529
    %3555 = vmatprep.subr.mxu0 0.0
    %3556 = vmatpush1.msra.mxu0 %v3530
    %3557 = vmatprep.subr.mxu0 0.0
    %3558 = vmatpush1.msra.mxu0 %v3531
    %3559 = vmatprep.subr.mxu0 0.0
    %3560 = vmatpush1.msra.mxu0 %v3532
    %3561 = vmatprep.subr.mxu0 0.0
    %3562 = vmatpush1.msra.mxu0 %v3533
    %3563 = vmatprep.subr.mxu0 0.0
    %3564 = vmatpush1.msra.mxu0 %v3534
    %3565 = vmatprep.subr.mxu0 0.0
    %3566 = vmatpush1.msra.mxu0 %v3535
    %3567 = vmatprep.subr.mxu0 0.0
    %3568 = vmatpush1.msra.mxu0 %v3536
    %3569 = vmatprep.subr.mxu0 0.0
    %3570 = vmatpush1.msra.mxu0 %v3537
    %3571 = vmatprep.subr.mxu0 0.0
    %3572 = vmatpush1.msra.mxu0 %v3538
    %3573 = vmatprep.subr.mxu0 0.0
    %3574 = vmatpush1.msra.mxu0 %v3539
    %3575 = vmatprep.subr.mxu0 0.0
    %3576 = vmatpush1.msra.mxu0 %v3540
    %3577 = vmatprep.subr.mxu0 0.0
    %3578 = vmatpush1.msra.mxu0 %v3541
    %3579 = vmatprep.subr.mxu0 0.0
    %3580 = vmatpush1.msra.mxu0 0.0
    %3581 = vmatprep.subr.mxu0 0.0
    %3582 = vmatpush1.msra.mxu0 0.0
    %3583 = vmatprep.subr.mxu0 0.0
    %3584 = vmatpush1.msra.mxu0 0.0
    %3585 = vmatprep.subr.mxu0 0.0
    %3586 = vmatpush1.msra.mxu0 0.0
    %3587 = vmatprep.subr.mxu0 0.0
    %3588 = vmatpush1.msra.mxu0 0.0
    %3589 = vmatprep.subr.mxu0 0.0
    %3590 = vmatpush1.msra.mxu0 0.0
    %3591 = vmatprep.subr.mxu0 0.0
    %3592 = vmatpush1.msra.mxu0 0.0
    %3593 = vmatprep.subr.mxu0 0.0
    %3594 = vmatpush1.msra.mxu0 0.0
    %3595 = vmatprep.subr.mxu0 0.0
    %3596 = vmatpush1.msra.mxu0 0.0
    %3597 = vmatprep.subr.mxu0 0.0
    %3598 = vmatpush1.msra.mxu0 0.0
    %3599 = vmatprep.subr.mxu0 0.0
    %3600 = vmatpush1.msra.mxu0 0.0
    %3601 = vmatprep.subr.mxu0 0.0
    %3602 = vmatpush1.msra.mxu0 0.0
    %3603 = vmatprep.subr.mxu0 0.0
    %3604 = vmatpush1.msra.mxu0 0.0
    %3605 = vmatprep.subr.mxu0 0.0
    %3606 = vmatpush1.msra.mxu0 0.0
    %3607 = vmatprep.subr.mxu0 0.0
    %3608 = vmatpush1.msra.mxu0 0.0
    %3609 = vmatprep.subr.mxu0 0.0
    %3610 = vmatpush1.msra.mxu0 0.0
    %3611 = vmatprep.mubr.f32.mxu0 0.0
    %3612 = vmatmul.mubr.f32.gmra.mrb[0].mxu0 %v3545
    %v3613 = vpop.f32.mrb[0].mxu0
    %v3614 = vadd.f32 0.0, %v3613
    %v3615 = vpop.f32.mrb[0].mxu0
    %3616 = vdwg.mxu0
    %v3617 = vadd.f32 %v3522, %v3614
    %v3618 = vld [vmem:[#allocation7 + $0xb] sm:$0x1]
    %v3619 = vld [vmem:[#allocation7 + $0x2b] sm:$0x1]
    %s3620 = scalar_lea.vmem %s7, 1408
    %v3621 = vld [vmem:[%s3620] sm:$0xff]
    %v3622 = vld [vmem:[%s3620 + $0x8] sm:$0xff]
    %v3623 = vld [vmem:[%s3620 + $0x10] sm:$0xff]
    %v3624 = vld [vmem:[%s3620 + $0x18] sm:$0xff]
    %v3625 = vld [vmem:[%s3620 + $0x20] sm:$0xff]
    %v3626 = vld [vmem:[%s3620 + $0x28] sm:$0xff]
    %v3627 = vld [vmem:[%s3620 + $0x30] sm:$0xff]
    %v3628 = vld [vmem:[%s3620 + $0x38] sm:$0xff]
    %v3629 = vld [vmem:[%s3620 + $0x40] sm:$0xff]
    %v3630 = vld [vmem:[%s3620 + $0x48] sm:$0xff]
    %v3631 = vld [vmem:[%s3620 + $0x50] sm:$0xff]
    %v3632 = vld [vmem:[%s3620 + $0x58] sm:$0xff]
    %v3633 = vld [vmem:[%s3620 + $0x60] sm:$0xff]
    %v3634 = vld [vmem:[%s3620 + $0x68] sm:$0xff]
    %v3635 = vld [vmem:[%s3620 + $0x70] sm:$0xff]
    %v3636 = vld [vmem:[%s3620 + $0x78] sm:$0xff]
    %v3639 = vrot.slane %v3619, 7
    %v3640 = vsel %vm2594, %v3639, %v3618
    %3642 = vmatprep.subr.mxu0 0.0
    %3643 = vmatpush1.msra.mxu0 %v3621
    %3644 = vmatprep.subr.mxu0 0.0
    %3645 = vmatpush1.msra.mxu0 %v3622
    %3646 = vmatprep.subr.mxu0 0.0
    %3647 = vmatpush1.msra.mxu0 %v3623
    %3648 = vmatprep.subr.mxu0 0.0
    %3649 = vmatpush1.msra.mxu0 %v3624
    %3650 = vmatprep.subr.mxu0 0.0
    %3651 = vmatpush1.msra.mxu0 %v3625
    %3652 = vmatprep.subr.mxu0 0.0
    %3653 = vmatpush1.msra.mxu0 %v3626
    %3654 = vmatprep.subr.mxu0 0.0
    %3655 = vmatpush1.msra.mxu0 %v3627
    %3656 = vmatprep.subr.mxu0 0.0
    %3657 = vmatpush1.msra.mxu0 %v3628
    %3658 = vmatprep.subr.mxu0 0.0
    %3659 = vmatpush1.msra.mxu0 %v3629
    %3660 = vmatprep.subr.mxu0 0.0
    %3661 = vmatpush1.msra.mxu0 %v3630
    %3662 = vmatprep.subr.mxu0 0.0
    %3663 = vmatpush1.msra.mxu0 %v3631
    %3664 = vmatprep.subr.mxu0 0.0
    %3665 = vmatpush1.msra.mxu0 %v3632
    %3666 = vmatprep.subr.mxu0 0.0
    %3667 = vmatpush1.msra.mxu0 %v3633
    %3668 = vmatprep.subr.mxu0 0.0
    %3669 = vmatpush1.msra.mxu0 %v3634
    %3670 = vmatprep.subr.mxu0 0.0
    %3671 = vmatpush1.msra.mxu0 %v3635
    %3672 = vmatprep.subr.mxu0 0.0
    %3673 = vmatpush1.msra.mxu0 %v3636
    %3674 = vmatprep.subr.mxu0 0.0
    %3675 = vmatpush1.msra.mxu0 0.0
    %3676 = vmatprep.subr.mxu0 0.0
    %3677 = vmatpush1.msra.mxu0 0.0
    %3678 = vmatprep.subr.mxu0 0.0
    %3679 = vmatpush1.msra.mxu0 0.0
    %3680 = vmatprep.subr.mxu0 0.0
    %3681 = vmatpush1.msra.mxu0 0.0
    %3682 = vmatprep.subr.mxu0 0.0
    %3683 = vmatpush1.msra.mxu0 0.0
    %3684 = vmatprep.subr.mxu0 0.0
    %3685 = vmatpush1.msra.mxu0 0.0
    %3686 = vmatprep.subr.mxu0 0.0
    %3687 = vmatpush1.msra.mxu0 0.0
    %3688 = vmatprep.subr.mxu0 0.0
    %3689 = vmatpush1.msra.mxu0 0.0
    %3690 = vmatprep.subr.mxu0 0.0
    %3691 = vmatpush1.msra.mxu0 0.0
    %3692 = vmatprep.subr.mxu0 0.0
    %3693 = vmatpush1.msra.mxu0 0.0
    %3694 = vmatprep.subr.mxu0 0.0
    %3695 = vmatpush1.msra.mxu0 0.0
    %3696 = vmatprep.subr.mxu0 0.0
    %3697 = vmatpush1.msra.mxu0 0.0
    %3698 = vmatprep.subr.mxu0 0.0
    %3699 = vmatpush1.msra.mxu0 0.0
    %3700 = vmatprep.subr.mxu0 0.0
    %3701 = vmatpush1.msra.mxu0 0.0
    %3702 = vmatprep.subr.mxu0 0.0
    %3703 = vmatpush1.msra.mxu0 0.0
    %3704 = vmatprep.subr.mxu0 0.0
    %3705 = vmatpush1.msra.mxu0 0.0
    %3706 = vmatprep.mubr.f32.mxu0 0.0
    %3707 = vmatmul.mubr.f32.gmra.mrb[0].mxu0 %v3640
    %v3708 = vpop.f32.mrb[0].mxu0
    %v3709 = vadd.f32 0.0, %v3708
    %v3710 = vpop.f32.mrb[0].mxu0
    %3711 = vdwg.mxu0
    %v3712 = vadd.f32 %v3617, %v3709
    %v3713 = vld [vmem:[#allocation7 + $0xc] sm:$0x1]
    %v3714 = vld [vmem:[#allocation7 + $0x2c] sm:$0x1]
    %s3715 = scalar_lea.vmem %s7, 1536
    %v3716 = vld [vmem:[%s3715] sm:$0xff]
    %v3717 = vld [vmem:[%s3715 + $0x8] sm:$0xff]
    %v3718 = vld [vmem:[%s3715 + $0x10] sm:$0xff]
    %v3719 = vld [vmem:[%s3715 + $0x18] sm:$0xff]
    %v3720 = vld [vmem:[%s3715 + $0x20] sm:$0xff]
    %v3721 = vld [vmem:[%s3715 + $0x28] sm:$0xff]
    %v3722 = vld [vmem:[%s3715 + $0x30] sm:$0xff]
    %v3723 = vld [vmem:[%s3715 + $0x38] sm:$0xff]
    %v3724 = vld [vmem:[%s3715 + $0x40] sm:$0xff]
    %v3725 = vld [vmem:[%s3715 + $0x48] sm:$0xff]
    %v3726 = vld [vmem:[%s3715 + $0x50] sm:$0xff]
    %v3727 = vld [vmem:[%s3715 + $0x58] sm:$0xff]
    %v3728 = vld [vmem:[%s3715 + $0x60] sm:$0xff]
    %v3729 = vld [vmem:[%s3715 + $0x68] sm:$0xff]
    %v3730 = vld [vmem:[%s3715 + $0x70] sm:$0xff]
    %v3731 = vld [vmem:[%s3715 + $0x78] sm:$0xff]
    %v3734 = vrot.slane %v3714, 7
    %v3735 = vsel %vm2594, %v3734, %v3713
    %3737 = vmatprep.subr.mxu0 0.0
    %3738 = vmatpush1.msra.mxu0 %v3716
    %3739 = vmatprep.subr.mxu0 0.0
    %3740 = vmatpush1.msra.mxu0 %v3717
    %3741 = vmatprep.subr.mxu0 0.0
    %3742 = vmatpush1.msra.mxu0 %v3718
    %3743 = vmatprep.subr.mxu0 0.0
    %3744 = vmatpush1.msra.mxu0 %v3719
    %3745 = vmatprep.subr.mxu0 0.0
    %3746 = vmatpush1.msra.mxu0 %v3720
    %3747 = vmatprep.subr.mxu0 0.0
    %3748 = vmatpush1.msra.mxu0 %v3721
    %3749 = vmatprep.subr.mxu0 0.0
    %3750 = vmatpush1.msra.mxu0 %v3722
    %3751 = vmatprep.subr.mxu0 0.0
    %3752 = vmatpush1.msra.mxu0 %v3723
    %3753 = vmatprep.subr.mxu0 0.0
    %3754 = vmatpush1.msra.mxu0 %v3724
    %3755 = vmatprep.subr.mxu0 0.0
    %3756 = vmatpush1.msra.mxu0 %v3725
    %3757 = vmatprep.subr.mxu0 0.0
    %3758 = vmatpush1.msra.mxu0 %v3726
    %3759 = vmatprep.subr.mxu0 0.0
    %3760 = vmatpush1.msra.mxu0 %v3727
    %3761 = vmatprep.subr.mxu0 0.0
    %3762 = vmatpush1.msra.mxu0 %v3728
    %3763 = vmatprep.subr.mxu0 0.0
    %3764 = vmatpush1.msra.mxu0 %v3729
    %3765 = vmatprep.subr.mxu0 0.0
    %3766 = vmatpush1.msra.mxu0 %v3730
    %3767 = vmatprep.subr.mxu0 0.0
    %3768 = vmatpush1.msra.mxu0 %v3731
    %3769 = vmatprep.subr.mxu0 0.0
    %3770 = vmatpush1.msra.mxu0 0.0
    %3771 = vmatprep.subr.mxu0 0.0
    %3772 = vmatpush1.msra.mxu0 0.0
    %3773 = vmatprep.subr.mxu0 0.0
    %3774 = vmatpush1.msra.mxu0 0.0
    %3775 = vmatprep.subr.mxu0 0.0
    %3776 = vmatpush1.msra.mxu0 0.0
    %3777 = vmatprep.subr.mxu0 0.0
    %3778 = vmatpush1.msra.mxu0 0.0
    %3779 = vmatprep.subr.mxu0 0.0
    %3780 = vmatpush1.msra.mxu0 0.0
    %3781 = vmatprep.subr.mxu0 0.0
    %3782 = vmatpush1.msra.mxu0 0.0
    %3783 = vmatprep.subr.mxu0 0.0
    %3784 = vmatpush1.msra.mxu0 0.0
    %3785 = vmatprep.subr.mxu0 0.0
    %3786 = vmatpush1.msra.mxu0 0.0
    %3787 = vmatprep.subr.mxu0 0.0
    %3788 = vmatpush1.msra.mxu0 0.0
    %3789 = vmatprep.subr.mxu0 0.0
    %3790 = vmatpush1.msra.mxu0 0.0
    %3791 = vmatprep.subr.mxu0 0.0
    %3792 = vmatpush1.msra.mxu0 0.0
    %3793 = vmatprep.subr.mxu0 0.0
    %3794 = vmatpush1.msra.mxu0 0.0
    %3795 = vmatprep.subr.mxu0 0.0
    %3796 = vmatpush1.msra.mxu0 0.0
    %3797 = vmatprep.subr.mxu0 0.0
    %3798 = vmatpush1.msra.mxu0 0.0
    %3799 = vmatprep.subr.mxu0 0.0
    %3800 = vmatpush1.msra.mxu0 0.0
    %3801 = vmatprep.mubr.f32.mxu0 0.0
    %3802 = vmatmul.mubr.f32.gmra.mrb[0].mxu0 %v3735
    %v3803 = vpop.f32.mrb[0].mxu0
    %v3804 = vadd.f32 0.0, %v3803
    %v3805 = vpop.f32.mrb[0].mxu0
    %3806 = vdwg.mxu0
    %v3807 = vadd.f32 %v3712, %v3804
    %v3808 = vld [vmem:[#allocation7 + $0xd] sm:$0x1]
    %v3809 = vld [vmem:[#allocation7 + $0x2d] sm:$0x1]
    %s3810 = scalar_lea.vmem %s7, 1664
    %v3811 = vld [vmem:[%s3810] sm:$0xff]
    %v3812 = vld [vmem:[%s3810 + $0x8] sm:$0xff]
    %v3813 = vld [vmem:[%s3810 + $0x10] sm:$0xff]
    %v3814 = vld [vmem:[%s3810 + $0x18] sm:$0xff]
    %v3815 = vld [vmem:[%s3810 + $0x20] sm:$0xff]
    %v3816 = vld [vmem:[%s3810 + $0x28] sm:$0xff]
    %v3817 = vld [vmem:[%s3810 + $0x30] sm:$0xff]
    %v3818 = vld [vmem:[%s3810 + $0x38] sm:$0xff]
    %v3819 = vld [vmem:[%s3810 + $0x40] sm:$0xff]
    %v3820 = vld [vmem:[%s3810 + $0x48] sm:$0xff]
    %v3821 = vld [vmem:[%s3810 + $0x50] sm:$0xff]
    %v3822 = vld [vmem:[%s3810 + $0x58] sm:$0xff]
    %v3823 = vld [vmem:[%s3810 + $0x60] sm:$0xff]
    %v3824 = vld [vmem:[%s3810 + $0x68] sm:$0xff]
    %v3825 = vld [vmem:[%s3810 + $0x70] sm:$0xff]
    %v3826 = vld [vmem:[%s3810 + $0x78] sm:$0xff]
    %v3829 = vrot.slane %v3809, 7
    %v3830 = vsel %vm2594, %v3829, %v3808
    %3832 = vmatprep.subr.mxu0 0.0
    %3833 = vmatpush1.msra.mxu0 %v3811
    %3834 = vmatprep.subr.mxu0 0.0
    %3835 = vmatpush1.msra.mxu0 %v3812
    %3836 = vmatprep.subr.mxu0 0.0
    %3837 = vmatpush1.msra.mxu0 %v3813
    %3838 = vmatprep.subr.mxu0 0.0
    %3839 = vmatpush1.msra.mxu0 %v3814
    %3840 = vmatprep.subr.mxu0 0.0
    %3841 = vmatpush1.msra.mxu0 %v3815
    %3842 = vmatprep.subr.mxu0 0.0
    %3843 = vmatpush1.msra.mxu0 %v3816
    %3844 = vmatprep.subr.mxu0 0.0
    %3845 = vmatpush1.msra.mxu0 %v3817
    %3846 = vmatprep.subr.mxu0 0.0
    %3847 = vmatpush1.msra.mxu0 %v3818
    %3848 = vmatprep.subr.mxu0 0.0
    %3849 = vmatpush1.msra.mxu0 %v3819
    %3850 = vmatprep.subr.mxu0 0.0
    %3851 = vmatpush1.msra.mxu0 %v3820
    %3852 = vmatprep.subr.mxu0 0.0
    %3853 = vmatpush1.msra.mxu0 %v3821
    %3854 = vmatprep.subr.mxu0 0.0
    %3855 = vmatpush1.msra.mxu0 %v3822
    %3856 = vmatprep.subr.mxu0 0.0
    %3857 = vmatpush1.msra.mxu0 %v3823
    %3858 = vmatprep.subr.mxu0 0.0
    %3859 = vmatpush1.msra.mxu0 %v3824
    %3860 = vmatprep.subr.mxu0 0.0
    %3861 = vmatpush1.msra.mxu0 %v3825
    %3862 = vmatprep.subr.mxu0 0.0
    %3863 = vmatpush1.msra.mxu0 %v3826
    %3864 = vmatprep.subr.mxu0 0.0
    %3865 = vmatpush1.msra.mxu0 0.0
    %3866 = vmatprep.subr.mxu0 0.0
    %3867 = vmatpush1.msra.mxu0 0.0
    %3868 = vmatprep.subr.mxu0 0.0
    %3869 = vmatpush1.msra.mxu0 0.0
    %3870 = vmatprep.subr.mxu0 0.0
    %3871 = vmatpush1.msra.mxu0 0.0
    %3872 = vmatprep.subr.mxu0 0.0
    %3873 = vmatpush1.msra.mxu0 0.0
    %3874 = vmatprep.subr.mxu0 0.0
    %3875 = vmatpush1.msra.mxu0 0.0
    %3876 = vmatprep.subr.mxu0 0.0
    %3877 = vmatpush1.msra.mxu0 0.0
    %3878 = vmatprep.subr.mxu0 0.0
    %3879 = vmatpush1.msra.mxu0 0.0
    %3880 = vmatprep.subr.mxu0 0.0
    %3881 = vmatpush1.msra.mxu0 0.0
    %3882 = vmatprep.subr.mxu0 0.0
    %3883 = vmatpush1.msra.mxu0 0.0
    %3884 = vmatprep.subr.mxu0 0.0
    %3885 = vmatpush1.msra.mxu0 0.0
    %3886 = vmatprep.subr.mxu0 0.0
    %3887 = vmatpush1.msra.mxu0 0.0
    %3888 = vmatprep.subr.mxu0 0.0
    %3889 = vmatpush1.msra.mxu0 0.0
    %3890 = vmatprep.subr.mxu0 0.0
    %3891 = vmatpush1.msra.mxu0 0.0
    %3892 = vmatprep.subr.mxu0 0.0
    %3893 = vmatpush1.msra.mxu0 0.0
    %3894 = vmatprep.subr.mxu0 0.0
    %3895 = vmatpush1.msra.mxu0 0.0
    %3896 = vmatprep.mubr.f32.mxu0 0.0
    %3897 = vmatmul.mubr.f32.gmra.mrb[0].mxu0 %v3830
    %v3898 = vpop.f32.mrb[0].mxu0
    %v3899 = vadd.f32 0.0, %v3898
    %v3900 = vpop.f32.mrb[0].mxu0
    %3901 = vdwg.mxu0
    %v3902 = vadd.f32 %v3807, %v3899
    %v3903 = vld [vmem:[#allocation7 + $0xe] sm:$0x1]
    %v3904 = vld [vmem:[#allocation7 + $0x2e] sm:$0x1]
    %s3905 = scalar_lea.vmem %s7, 1792
    %v3906 = vld [vmem:[%s3905] sm:$0xff]
    %v3907 = vld [vmem:[%s3905 + $0x8] sm:$0xff]
    %v3908 = vld [vmem:[%s3905 + $0x10] sm:$0xff]
    %v3909 = vld [vmem:[%s3905 + $0x18] sm:$0xff]
    %v3910 = vld [vmem:[%s3905 + $0x20] sm:$0xff]
    %v3911 = vld [vmem:[%s3905 + $0x28] sm:$0xff]
    %v3912 = vld [vmem:[%s3905 + $0x30] sm:$0xff]
    %v3913 = vld [vmem:[%s3905 + $0x38] sm:$0xff]
    %v3914 = vld [vmem:[%s3905 + $0x40] sm:$0xff]
    %v3915 = vld [vmem:[%s3905 + $0x48] sm:$0xff]
    %v3916 = vld [vmem:[%s3905 + $0x50] sm:$0xff]
    %v3917 = vld [vmem:[%s3905 + $0x58] sm:$0xff]
    %v3918 = vld [vmem:[%s3905 + $0x60] sm:$0xff]
    %v3919 = vld [vmem:[%s3905 + $0x68] sm:$0xff]
    %v3920 = vld [vmem:[%s3905 + $0x70] sm:$0xff]
    %v3921 = vld [vmem:[%s3905 + $0x78] sm:$0xff]
    %v3924 = vrot.slane %v3904, 7
    %v3925 = vsel %vm2594, %v3924, %v3903
    %3927 = vmatprep.subr.mxu0 0.0
    %3928 = vmatpush1.msra.mxu0 %v3906
    %3929 = vmatprep.subr.mxu0 0.0
    %3930 = vmatpush1.msra.mxu0 %v3907
    %3931 = vmatprep.subr.mxu0 0.0
    %3932 = vmatpush1.msra.mxu0 %v3908
    %3933 = vmatprep.subr.mxu0 0.0
    %3934 = vmatpush1.msra.mxu0 %v3909
    %3935 = vmatprep.subr.mxu0 0.0
    %3936 = vmatpush1.msra.mxu0 %v3910
    %3937 = vmatprep.subr.mxu0 0.0
    %3938 = vmatpush1.msra.mxu0 %v3911
    %3939 = vmatprep.subr.mxu0 0.0
    %3940 = vmatpush1.msra.mxu0 %v3912
    %3941 = vmatprep.subr.mxu0 0.0
    %3942 = vmatpush1.msra.mxu0 %v3913
    %3943 = vmatprep.subr.mxu0 0.0
    %3944 = vmatpush1.msra.mxu0 %v3914
    %3945 = vmatprep.subr.mxu0 0.0
    %3946 = vmatpush1.msra.mxu0 %v3915
    %3947 = vmatprep.subr.mxu0 0.0
    %3948 = vmatpush1.msra.mxu0 %v3916
    %3949 = vmatprep.subr.mxu0 0.0
    %3950 = vmatpush1.msra.mxu0 %v3917
    %3951 = vmatprep.subr.mxu0 0.0
    %3952 = vmatpush1.msra.mxu0 %v3918
    %3953 = vmatprep.subr.mxu0 0.0
    %3954 = vmatpush1.msra.mxu0 %v3919
    %3955 = vmatprep.subr.mxu0 0.0
    %3956 = vmatpush1.msra.mxu0 %v3920
    %3957 = vmatprep.subr.mxu0 0.0
    %3958 = vmatpush1.msra.mxu0 %v3921
    %3959 = vmatprep.subr.mxu0 0.0
    %3960 = vmatpush1.msra.mxu0 0.0
    %3961 = vmatprep.subr.mxu0 0.0
    %3962 = vmatpush1.msra.mxu0 0.0
    %3963 = vmatprep.subr.mxu0 0.0
    %3964 = vmatpush1.msra.mxu0 0.0
    %3965 = vmatprep.subr.mxu0 0.0
    %3966 = vmatpush1.msra.mxu0 0.0
    %3967 = vmatprep.subr.mxu0 0.0
    %3968 = vmatpush1.msra.mxu0 0.0
    %3969 = vmatprep.subr.mxu0 0.0
    %3970 = vmatpush1.msra.mxu0 0.0
    %3971 = vmatprep.subr.mxu0 0.0
    %3972 = vmatpush1.msra.mxu0 0.0
    %3973 = vmatprep.subr.mxu0 0.0
    %3974 = vmatpush1.msra.mxu0 0.0
    %3975 = vmatprep.subr.mxu0 0.0
    %3976 = vmatpush1.msra.mxu0 0.0
    %3977 = vmatprep.subr.mxu0 0.0
    %3978 = vmatpush1.msra.mxu0 0.0
    %3979 = vmatprep.subr.mxu0 0.0
    %3980 = vmatpush1.msra.mxu0 0.0
    %3981 = vmatprep.subr.mxu0 0.0
    %3982 = vmatpush1.msra.mxu0 0.0
    %3983 = vmatprep.subr.mxu0 0.0
    %3984 = vmatpush1.msra.mxu0 0.0
    %3985 = vmatprep.subr.mxu0 0.0
    %3986 = vmatpush1.msra.mxu0 0.0
    %3987 = vmatprep.subr.mxu0 0.0
    %3988 = vmatpush1.msra.mxu0 0.0
    %3989 = vmatprep.subr.mxu0 0.0
    %3990 = vmatpush1.msra.mxu0 0.0
    %3991 = vmatprep.mubr.f32.mxu0 0.0
    %3992 = vmatmul.mubr.f32.gmra.mrb[0].mxu0 %v3925
    %v3993 = vpop.f32.mrb[0].mxu0
    %v3994 = vadd.f32 0.0, %v3993
    %v3995 = vpop.f32.mrb[0].mxu0
    %3996 = vdwg.mxu0
    %v3997 = vadd.f32 %v3902, %v3994
    %v3998 = vld [vmem:[#allocation7 + $0xf] sm:$0x1]
    %v3999 = vld [vmem:[#allocation7 + $0x2f] sm:$0x1]
    %s4000 = scalar_lea.vmem %s7, 1920
    %v4001 = vld [vmem:[%s4000] sm:$0xff]
    %v4002 = vld [vmem:[%s4000 + $0x8] sm:$0xff]
    %v4003 = vld [vmem:[%s4000 + $0x10] sm:$0xff]
    %v4004 = vld [vmem:[%s4000 + $0x18] sm:$0xff]
    %v4005 = vld [vmem:[%s4000 + $0x20] sm:$0xff]
    %v4006 = vld [vmem:[%s4000 + $0x28] sm:$0xff]
    %v4007 = vld [vmem:[%s4000 + $0x30] sm:$0xff]
    %v4008 = vld [vmem:[%s4000 + $0x38] sm:$0xff]
    %v4009 = vld [vmem:[%s4000 + $0x40] sm:$0xff]
    %v4010 = vld [vmem:[%s4000 + $0x48] sm:$0xff]
    %v4011 = vld [vmem:[%s4000 + $0x50] sm:$0xff]
    %v4012 = vld [vmem:[%s4000 + $0x58] sm:$0xff]
    %v4013 = vld [vmem:[%s4000 + $0x60] sm:$0xff]
    %v4014 = vld [vmem:[%s4000 + $0x68] sm:$0xff]
    %v4015 = vld [vmem:[%s4000 + $0x70] sm:$0xff]
    %v4016 = vld [vmem:[%s4000 + $0x78] sm:$0xff]
    %v4019 = vrot.slane %v3999, 7
    %v4020 = vsel %vm2594, %v4019, %v3998
    %4022 = vmatprep.subr.mxu0 0.0
    %4023 = vmatpush1.msra.mxu0 %v4001
    %4024 = vmatprep.subr.mxu0 0.0
    %4025 = vmatpush1.msra.mxu0 %v4002
    %4026 = vmatprep.subr.mxu0 0.0
    %4027 = vmatpush1.msra.mxu0 %v4003
    %4028 = vmatprep.subr.mxu0 0.0
    %4029 = vmatpush1.msra.mxu0 %v4004
    %4030 = vmatprep.subr.mxu0 0.0
    %4031 = vmatpush1.msra.mxu0 %v4005
    %4032 = vmatprep.subr.mxu0 0.0
    %4033 = vmatpush1.msra.mxu0 %v4006
    %4034 = vmatprep.subr.mxu0 0.0
    %4035 = vmatpush1.msra.mxu0 %v4007
    %4036 = vmatprep.subr.mxu0 0.0
    %4037 = vmatpush1.msra.mxu0 %v4008
    %4038 = vmatprep.subr.mxu0 0.0
    %4039 = vmatpush1.msra.mxu0 %v4009
    %4040 = vmatprep.subr.mxu0 0.0
    %4041 = vmatpush1.msra.mxu0 %v4010
    %4042 = vmatprep.subr.mxu0 0.0
    %4043 = vmatpush1.msra.mxu0 %v4011
    %4044 = vmatprep.subr.mxu0 0.0
    %4045 = vmatpush1.msra.mxu0 %v4012
    %4046 = vmatprep.subr.mxu0 0.0
    %4047 = vmatpush1.msra.mxu0 %v4013
    %4048 = vmatprep.subr.mxu0 0.0
    %4049 = vmatpush1.msra.mxu0 %v4014
    %4050 = vmatprep.subr.mxu0 0.0
    %4051 = vmatpush1.msra.mxu0 %v4015
    %4052 = vmatprep.subr.mxu0 0.0
    %4053 = vmatpush1.msra.mxu0 %v4016
    %4054 = vmatprep.subr.mxu0 0.0
    %4055 = vmatpush1.msra.mxu0 0.0
    %4056 = vmatprep.subr.mxu0 0.0
    %4057 = vmatpush1.msra.mxu0 0.0
    %4058 = vmatprep.subr.mxu0 0.0
    %4059 = vmatpush1.msra.mxu0 0.0
    %4060 = vmatprep.subr.mxu0 0.0
    %4061 = vmatpush1.msra.mxu0 0.0
    %4062 = vmatprep.subr.mxu0 0.0
    %4063 = vmatpush1.msra.mxu0 0.0
    %4064 = vmatprep.subr.mxu0 0.0
    %4065 = vmatpush1.msra.mxu0 0.0
    %4066 = vmatprep.subr.mxu0 0.0
    %4067 = vmatpush1.msra.mxu0 0.0
    %4068 = vmatprep.subr.mxu0 0.0
    %4069 = vmatpush1.msra.mxu0 0.0
    %4070 = vmatprep.subr.mxu0 0.0
    %4071 = vmatpush1.msra.mxu0 0.0
    %4072 = vmatprep.subr.mxu0 0.0
    %4073 = vmatpush1.msra.mxu0 0.0
    %4074 = vmatprep.subr.mxu0 0.0
    %4075 = vmatpush1.msra.mxu0 0.0
    %4076 = vmatprep.subr.mxu0 0.0
    %4077 = vmatpush1.msra.mxu0 0.0
    %4078 = vmatprep.subr.mxu0 0.0
    %4079 = vmatpush1.msra.mxu0 0.0
    %4080 = vmatprep.subr.mxu0 0.0
    %4081 = vmatpush1.msra.mxu0 0.0
    %4082 = vmatprep.subr.mxu0 0.0
    %4083 = vmatpush1.msra.mxu0 0.0
    %4084 = vmatprep.subr.mxu0 0.0
    %4085 = vmatpush1.msra.mxu0 0.0
    %4086 = vmatprep.mubr.f32.mxu0 0.0
    %4087 = vmatmul.mubr.f32.gmra.mrb[0].mxu0 %v4020
    %v4088 = vpop.f32.mrb[0].mxu0
    %v4089 = vadd.f32 0.0, %v4088
    %v4090 = vpop.f32.mrb[0].mxu0
    %4091 = vdwg.mxu0
    %v4092 = vadd.f32 %v3997, %v4089
    %v4093 = vld [vmem:[#allocation7 + $0x10] sm:$0x1]
    %v4094 = vld [vmem:[#allocation7 + $0x30] sm:$0x1]
    %s4095 = scalar_lea.vmem %s7, 2048
    %v4096 = vld [vmem:[%s4095] sm:$0xff]
    %v4097 = vld [vmem:[%s4095 + $0x8] sm:$0xff]
    %v4098 = vld [vmem:[%s4095 + $0x10] sm:$0xff]
    %v4099 = vld [vmem:[%s4095 + $0x18] sm:$0xff]
    %v4100 = vld [vmem:[%s4095 + $0x20] sm:$0xff]
    %v4101 = vld [vmem:[%s4095 + $0x28] sm:$0xff]
    %v4102 = vld [vmem:[%s4095 + $0x30] sm:$0xff]
    %v4103 = vld [vmem:[%s4095 + $0x38] sm:$0xff]
    %v4104 = vld [vmem:[%s4095 + $0x40] sm:$0xff]
    %v4105 = vld [vmem:[%s4095 + $0x48] sm:$0xff]
    %v4106 = vld [vmem:[%s4095 + $0x50] sm:$0xff]
    %v4107 = vld [vmem:[%s4095 + $0x58] sm:$0xff]
    %v4108 = vld [vmem:[%s4095 + $0x60] sm:$0xff]
    %v4109 = vld [vmem:[%s4095 + $0x68] sm:$0xff]
    %v4110 = vld [vmem:[%s4095 + $0x70] sm:$0xff]
    %v4111 = vld [vmem:[%s4095 + $0x78] sm:$0xff]
    %v4114 = vrot.slane %v4094, 7
    %v4115 = vsel %vm2594, %v4114, %v4093
    %4117 = vmatprep.subr.mxu0 0.0
    %4118 = vmatpush1.msra.mxu0 %v4096
    %4119 = vmatprep.subr.mxu0 0.0
    %4120 = vmatpush1.msra.mxu0 %v4097
    %4121 = vmatprep.subr.mxu0 0.0
    %4122 = vmatpush1.msra.mxu0 %v4098
    %4123 = vmatprep.subr.mxu0 0.0
    %4124 = vmatpush1.msra.mxu0 %v4099
    %4125 = vmatprep.subr.mxu0 0.0
    %4126 = vmatpush1.msra.mxu0 %v4100
    %4127 = vmatprep.subr.mxu0 0.0
    %4128 = vmatpush1.msra.mxu0 %v4101
    %4129 = vmatprep.subr.mxu0 0.0
    %4130 = vmatpush1.msra.mxu0 %v4102
    %4131 = vmatprep.subr.mxu0 0.0
    %4132 = vmatpush1.msra.mxu0 %v4103
    %4133 = vmatprep.subr.mxu0 0.0
    %4134 = vmatpush1.msra.mxu0 %v4104
    %4135 = vmatprep.subr.mxu0 0.0
    %4136 = vmatpush1.msra.mxu0 %v4105
    %4137 = vmatprep.subr.mxu0 0.0
    %4138 = vmatpush1.msra.mxu0 %v4106
    %4139 = vmatprep.subr.mxu0 0.0
    %4140 = vmatpush1.msra.mxu0 %v4107
    %4141 = vmatprep.subr.mxu0 0.0
    %4142 = vmatpush1.msra.mxu0 %v4108
    %4143 = vmatprep.subr.mxu0 0.0
    %4144 = vmatpush1.msra.mxu0 %v4109
    %4145 = vmatprep.subr.mxu0 0.0
    %4146 = vmatpush1.msra.mxu0 %v4110
    %4147 = vmatprep.subr.mxu0 0.0
    %4148 = vmatpush1.msra.mxu0 %v4111
    %4149 = vmatprep.subr.mxu0 0.0
    %4150 = vmatpush1.msra.mxu0 0.0
    %4151 = vmatprep.subr.mxu0 0.0
    %4152 = vmatpush1.msra.mxu0 0.0
    %4153 = vmatprep.subr.mxu0 0.0
    %4154 = vmatpush1.msra.mxu0 0.0
    %4155 = vmatprep.subr.mxu0 0.0
    %4156 = vmatpush1.msra.mxu0 0.0
    %4157 = vmatprep.subr.mxu0 0.0
    %4158 = vmatpush1.msra.mxu0 0.0
    %4159 = vmatprep.subr.mxu0 0.0
    %4160 = vmatpush1.msra.mxu0 0.0
    %4161 = vmatprep.subr.mxu0 0.0
    %4162 = vmatpush1.msra.mxu0 0.0
    %4163 = vmatprep.subr.mxu0 0.0
    %4164 = vmatpush1.msra.mxu0 0.0
    %4165 = vmatprep.subr.mxu0 0.0
    %4166 = vmatpush1.msra.mxu0 0.0
    %4167 = vmatprep.subr.mxu0 0.0
    %4168 = vmatpush1.msra.mxu0 0.0
    %4169 = vmatprep.subr.mxu0 0.0
    %4170 = vmatpush1.msra.mxu0 0.0
    %4171 = vmatprep.subr.mxu0 0.0
    %4172 = vmatpush1.msra.mxu0 0.0
    %4173 = vmatprep.subr.mxu0 0.0
    %4174 = vmatpush1.msra.mxu0 0.0
    %4175 = vmatprep.subr.mxu0 0.0
    %4176 = vmatpush1.msra.mxu0 0.0
    %4177 = vmatprep.subr.mxu0 0.0
    %4178 = vmatpush1.msra.mxu0 0.0
    %4179 = vmatprep.subr.mxu0 0.0
    %4180 = vmatpush1.msra.mxu0 0.0
    %4181 = vmatprep.mubr.f32.mxu0 0.0
    %4182 = vmatmul.mubr.f32.gmra.mrb[0].mxu0 %v4115
    %v4183 = vpop.f32.mrb[0].mxu0
    %v4184 = vadd.f32 0.0, %v4183
    %v4185 = vpop.f32.mrb[0].mxu0
    %4186 = vdwg.mxu0
    %v4187 = vadd.f32 %v4092, %v4184
    %v4188 = vld [vmem:[#allocation7 + $0x11] sm:$0x1]
    %v4189 = vld [vmem:[#allocation7 + $0x31] sm:$0x1]
    %s4190 = scalar_lea.vmem %s7, 2176
    %v4191 = vld [vmem:[%s4190] sm:$0xff]
    %v4192 = vld [vmem:[%s4190 + $0x8] sm:$0xff]
    %v4193 = vld [vmem:[%s4190 + $0x10] sm:$0xff]
    %v4194 = vld [vmem:[%s4190 + $0x18] sm:$0xff]
    %v4195 = vld [vmem:[%s4190 + $0x20] sm:$0xff]
    %v4196 = vld [vmem:[%s4190 + $0x28] sm:$0xff]
    %v4197 = vld [vmem:[%s4190 + $0x30] sm:$0xff]
    %v4198 = vld [vmem:[%s4190 + $0x38] sm:$0xff]
    %v4199 = vld [vmem:[%s4190 + $0x40] sm:$0xff]
    %v4200 = vld [vmem:[%s4190 + $0x48] sm:$0xff]
    %v4201 = vld [vmem:[%s4190 + $0x50] sm:$0xff]
    %v4202 = vld [vmem:[%s4190 + $0x58] sm:$0xff]
    %v4203 = vld [vmem:[%s4190 + $0x60] sm:$0xff]
    %v4204 = vld [vmem:[%s4190 + $0x68] sm:$0xff]
    %v4205 = vld [vmem:[%s4190 + $0x70] sm:$0xff]
    %v4206 = vld [vmem:[%s4190 + $0x78] sm:$0xff]
    %v4209 = vrot.slane %v4189, 7
    %v4210 = vsel %vm2594, %v4209, %v4188
    %4212 = vmatprep.subr.mxu0 0.0
    %4213 = vmatpush1.msra.mxu0 %v4191
    %4214 = vmatprep.subr.mxu0 0.0
    %4215 = vmatpush1.msra.mxu0 %v4192
    %4216 = vmatprep.subr.mxu0 0.0
    %4217 = vmatpush1.msra.mxu0 %v4193
    %4218 = vmatprep.subr.mxu0 0.0
    %4219 = vmatpush1.msra.mxu0 %v4194
    %4220 = vmatprep.subr.mxu0 0.0
    %4221 = vmatpush1.msra.mxu0 %v4195
    %4222 = vmatprep.subr.mxu0 0.0
    %4223 = vmatpush1.msra.mxu0 %v4196
    %4224 = vmatprep.subr.mxu0 0.0
    %4225 = vmatpush1.msra.mxu0 %v4197
    %4226 = vmatprep.subr.mxu0 0.0
    %4227 = vmatpush1.msra.mxu0 %v4198
    %4228 = vmatprep.subr.mxu0 0.0
    %4229 = vmatpush1.msra.mxu0 %v4199
    %4230 = vmatprep.subr.mxu0 0.0
    %4231 = vmatpush1.msra.mxu0 %v4200
    %4232 = vmatprep.subr.mxu0 0.0
    %4233 = vmatpush1.msra.mxu0 %v4201
    %4234 = vmatprep.subr.mxu0 0.0
    %4235 = vmatpush1.msra.mxu0 %v4202
    %4236 = vmatprep.subr.mxu0 0.0
    %4237 = vmatpush1.msra.mxu0 %v4203
    %4238 = vmatprep.subr.mxu0 0.0
    %4239 = vmatpush1.msra.mxu0 %v4204
    %4240 = vmatprep.subr.mxu0 0.0
    %4241 = vmatpush1.msra.mxu0 %v4205
    %4242 = vmatprep.subr.mxu0 0.0
    %4243 = vmatpush1.msra.mxu0 %v4206
    %4244 = vmatprep.subr.mxu0 0.0
    %4245 = vmatpush1.msra.mxu0 0.0
    %4246 = vmatprep.subr.mxu0 0.0
    %4247 = vmatpush1.msra.mxu0 0.0
    %4248 = vmatprep.subr.mxu0 0.0
    %4249 = vmatpush1.msra.mxu0 0.0
    %4250 = vmatprep.subr.mxu0 0.0
    %4251 = vmatpush1.msra.mxu0 0.0
    %4252 = vmatprep.subr.mxu0 0.0
    %4253 = vmatpush1.msra.mxu0 0.0
    %4254 = vmatprep.subr.mxu0 0.0
    %4255 = vmatpush1.msra.mxu0 0.0
    %4256 = vmatprep.subr.mxu0 0.0
    %4257 = vmatpush1.msra.mxu0 0.0
    %4258 = vmatprep.subr.mxu0 0.0
    %4259 = vmatpush1.msra.mxu0 0.0
    %4260 = vmatprep.subr.mxu0 0.0
    %4261 = vmatpush1.msra.mxu0 0.0
    %4262 = vmatprep.subr.mxu0 0.0
    %4263 = vmatpush1.msra.mxu0 0.0
    %4264 = vmatprep.subr.mxu0 0.0
    %4265 = vmatpush1.msra.mxu0 0.0
    %4266 = vmatprep.subr.mxu0 0.0
    %4267 = vmatpush1.msra.mxu0 0.0
    %4268 = vmatprep.subr.mxu0 0.0
    %4269 = vmatpush1.msra.mxu0 0.0
    %4270 = vmatprep.subr.mxu0 0.0
    %4271 = vmatpush1.msra.mxu0 0.0
    %4272 = vmatprep.subr.mxu0 0.0
    %4273 = vmatpush1.msra.mxu0 0.0
    %4274 = vmatprep.subr.mxu0 0.0
    %4275 = vmatpush1.msra.mxu0 0.0
    %4276 = vmatprep.mubr.f32.mxu0 0.0
    %4277 = vmatmul.mubr.f32.gmra.mrb[0].mxu0 %v4210
    %v4278 = vpop.f32.mrb[0].mxu0
    %v4279 = vadd.f32 0.0, %v4278
    %v4280 = vpop.f32.mrb[0].mxu0
    %4281 = vdwg.mxu0
    %v4282 = vadd.f32 %v4187, %v4279
    %v4283 = vld [vmem:[#allocation7 + $0x12] sm:$0x1]
    %v4284 = vld [vmem:[#allocation7 + $0x32] sm:$0x1]
    %s4285 = scalar_lea.vmem %s7, 2304
    %v4286 = vld [vmem:[%s4285] sm:$0xff]
    %v4287 = vld [vmem:[%s4285 + $0x8] sm:$0xff]
    %v4288 = vld [vmem:[%s4285 + $0x10] sm:$0xff]
    %v4289 = vld [vmem:[%s4285 + $0x18] sm:$0xff]
    %v4290 = vld [vmem:[%s4285 + $0x20] sm:$0xff]
    %v4291 = vld [vmem:[%s4285 + $0x28] sm:$0xff]
    %v4292 = vld [vmem:[%s4285 + $0x30] sm:$0xff]
    %v4293 = vld [vmem:[%s4285 + $0x38] sm:$0xff]
    %v4294 = vld [vmem:[%s4285 + $0x40] sm:$0xff]
    %v4295 = vld [vmem:[%s4285 + $0x48] sm:$0xff]
    %v4296 = vld [vmem:[%s4285 + $0x50] sm:$0xff]
    %v4297 = vld [vmem:[%s4285 + $0x58] sm:$0xff]
    %v4298 = vld [vmem:[%s4285 + $0x60] sm:$0xff]
    %v4299 = vld [vmem:[%s4285 + $0x68] sm:$0xff]
    %v4300 = vld [vmem:[%s4285 + $0x70] sm:$0xff]
    %v4301 = vld [vmem:[%s4285 + $0x78] sm:$0xff]
    %v4304 = vrot.slane %v4284, 7
    %v4305 = vsel %vm2594, %v4304, %v4283
    %4307 = vmatprep.subr.mxu0 0.0
    %4308 = vmatpush1.msra.mxu0 %v4286
    %4309 = vmatprep.subr.mxu0 0.0
    %4310 = vmatpush1.msra.mxu0 %v4287
    %4311 = vmatprep.subr.mxu0 0.0
    %4312 = vmatpush1.msra.mxu0 %v4288
    %4313 = vmatprep.subr.mxu0 0.0
    %4314 = vmatpush1.msra.mxu0 %v4289
    %4315 = vmatprep.subr.mxu0 0.0
    %4316 = vmatpush1.msra.mxu0 %v4290
    %4317 = vmatprep.subr.mxu0 0.0
    %4318 = vmatpush1.msra.mxu0 %v4291
    %4319 = vmatprep.subr.mxu0 0.0
    %4320 = vmatpush1.msra.mxu0 %v4292
    %4321 = vmatprep.subr.mxu0 0.0
    %4322 = vmatpush1.msra.mxu0 %v4293
    %4323 = vmatprep.subr.mxu0 0.0
    %4324 = vmatpush1.msra.mxu0 %v4294
    %4325 = vmatprep.subr.mxu0 0.0
    %4326 = vmatpush1.msra.mxu0 %v4295
    %4327 = vmatprep.subr.mxu0 0.0
    %4328 = vmatpush1.msra.mxu0 %v4296
    %4329 = vmatprep.subr.mxu0 0.0
    %4330 = vmatpush1.msra.mxu0 %v4297
    %4331 = vmatprep.subr.mxu0 0.0
    %4332 = vmatpush1.msra.mxu0 %v4298
    %4333 = vmatprep.subr.mxu0 0.0
    %4334 = vmatpush1.msra.mxu0 %v4299
    %4335 = vmatprep.subr.mxu0 0.0
    %4336 = vmatpush1.msra.mxu0 %v4300
    %4337 = vmatprep.subr.mxu0 0.0
    %4338 = vmatpush1.msra.mxu0 %v4301
    %4339 = vmatprep.subr.mxu0 0.0
    %4340 = vmatpush1.msra.mxu0 0.0
    %4341 = vmatprep.subr.mxu0 0.0
    %4342 = vmatpush1.msra.mxu0 0.0
    %4343 = vmatprep.subr.mxu0 0.0
    %4344 = vmatpush1.msra.mxu0 0.0
    %4345 = vmatprep.subr.mxu0 0.0
    %4346 = vmatpush1.msra.mxu0 0.0
    %4347 = vmatprep.subr.mxu0 0.0
    %4348 = vmatpush1.msra.mxu0 0.0
    %4349 = vmatprep.subr.mxu0 0.0
    %4350 = vmatpush1.msra.mxu0 0.0
    %4351 = vmatprep.subr.mxu0 0.0
    %4352 = vmatpush1.msra.mxu0 0.0
    %4353 = vmatprep.subr.mxu0 0.0
    %4354 = vmatpush1.msra.mxu0 0.0
    %4355 = vmatprep.subr.mxu0 0.0
    %4356 = vmatpush1.msra.mxu0 0.0
    %4357 = vmatprep.subr.mxu0 0.0
    %4358 = vmatpush1.msra.mxu0 0.0
    %4359 = vmatprep.subr.mxu0 0.0
    %4360 = vmatpush1.msra.mxu0 0.0
    %4361 = vmatprep.subr.mxu0 0.0
    %4362 = vmatpush1.msra.mxu0 0.0
    %4363 = vmatprep.subr.mxu0 0.0
    %4364 = vmatpush1.msra.mxu0 0.0
    %4365 = vmatprep.subr.mxu0 0.0
    %4366 = vmatpush1.msra.mxu0 0.0
    %4367 = vmatprep.subr.mxu0 0.0
    %4368 = vmatpush1.msra.mxu0 0.0
    %4369 = vmatprep.subr.mxu0 0.0
    %4370 = vmatpush1.msra.mxu0 0.0
    %4371 = vmatprep.mubr.f32.mxu0 0.0
    %4372 = vmatmul.mubr.f32.gmra.mrb[0].mxu0 %v4305
    %v4373 = vpop.f32.mrb[0].mxu0
    %v4374 = vadd.f32 0.0, %v4373
    %v4375 = vpop.f32.mrb[0].mxu0
    %4376 = vdwg.mxu0
    %v4377 = vadd.f32 %v4282, %v4374
    %v4378 = vld [vmem:[#allocation7 + $0x13] sm:$0x1]
    %v4379 = vld [vmem:[#allocation7 + $0x33] sm:$0x1]
    %s4380 = scalar_lea.vmem %s7, 2432
    %v4381 = vld [vmem:[%s4380] sm:$0xff]
    %v4382 = vld [vmem:[%s4380 + $0x8] sm:$0xff]
    %v4383 = vld [vmem:[%s4380 + $0x10] sm:$0xff]
    %v4384 = vld [vmem:[%s4380 + $0x18] sm:$0xff]
    %v4385 = vld [vmem:[%s4380 + $0x20] sm:$0xff]
    %v4386 = vld [vmem:[%s4380 + $0x28] sm:$0xff]
    %v4387 = vld [vmem:[%s4380 + $0x30] sm:$0xff]
    %v4388 = vld [vmem:[%s4380 + $0x38] sm:$0xff]
    %v4389 = vld [vmem:[%s4380 + $0x40] sm:$0xff]
    %v4390 = vld [vmem:[%s4380 + $0x48] sm:$0xff]
    %v4391 = vld [vmem:[%s4380 + $0x50] sm:$0xff]
    %v4392 = vld [vmem:[%s4380 + $0x58] sm:$0xff]
    %v4393 = vld [vmem:[%s4380 + $0x60] sm:$0xff]
    %v4394 = vld [vmem:[%s4380 + $0x68] sm:$0xff]
    %v4395 = vld [vmem:[%s4380 + $0x70] sm:$0xff]
    %v4396 = vld [vmem:[%s4380 + $0x78] sm:$0xff]
    %v4399 = vrot.slane %v4379, 7
    %v4400 = vsel %vm2594, %v4399, %v4378
    %4402 = vmatprep.subr.mxu0 0.0
    %4403 = vmatpush1.msra.mxu0 %v4381
    %4404 = vmatprep.subr.mxu0 0.0
    %4405 = vmatpush1.msra.mxu0 %v4382
    %4406 = vmatprep.subr.mxu0 0.0
    %4407 = vmatpush1.msra.mxu0 %v4383
    %4408 = vmatprep.subr.mxu0 0.0
    %4409 = vmatpush1.msra.mxu0 %v4384
    %4410 = vmatprep.subr.mxu0 0.0
    %4411 = vmatpush1.msra.mxu0 %v4385
    %4412 = vmatprep.subr.mxu0 0.0
    %4413 = vmatpush1.msra.mxu0 %v4386
    %4414 = vmatprep.subr.mxu0 0.0
    %4415 = vmatpush1.msra.mxu0 %v4387
    %4416 = vmatprep.subr.mxu0 0.0
    %4417 = vmatpush1.msra.mxu0 %v4388
    %4418 = vmatprep.subr.mxu0 0.0
    %4419 = vmatpush1.msra.mxu0 %v4389
    %4420 = vmatprep.subr.mxu0 0.0
    %4421 = vmatpush1.msra.mxu0 %v4390
    %4422 = vmatprep.subr.mxu0 0.0
    %4423 = vmatpush1.msra.mxu0 %v4391
    %4424 = vmatprep.subr.mxu0 0.0
    %4425 = vmatpush1.msra.mxu0 %v4392
    %4426 = vmatprep.subr.mxu0 0.0
    %4427 = vmatpush1.msra.mxu0 %v4393
    %4428 = vmatprep.subr.mxu0 0.0
    %4429 = vmatpush1.msra.mxu0 %v4394
    %4430 = vmatprep.subr.mxu0 0.0
    %4431 = vmatpush1.msra.mxu0 %v4395
    %4432 = vmatprep.subr.mxu0 0.0
    %4433 = vmatpush1.msra.mxu0 %v4396
    %4434 = vmatprep.subr.mxu0 0.0
    %4435 = vmatpush1.msra.mxu0 0.0
    %4436 = vmatprep.subr.mxu0 0.0
    %4437 = vmatpush1.msra.mxu0 0.0
    %4438 = vmatprep.subr.mxu0 0.0
    %4439 = vmatpush1.msra.mxu0 0.0
    %4440 = vmatprep.subr.mxu0 0.0
    %4441 = vmatpush1.msra.mxu0 0.0
    %4442 = vmatprep.subr.mxu0 0.0
    %4443 = vmatpush1.msra.mxu0 0.0
    %4444 = vmatprep.subr.mxu0 0.0
    %4445 = vmatpush1.msra.mxu0 0.0
    %4446 = vmatprep.subr.mxu0 0.0
    %4447 = vmatpush1.msra.mxu0 0.0
    %4448 = vmatprep.subr.mxu0 0.0
    %4449 = vmatpush1.msra.mxu0 0.0
    %4450 = vmatprep.subr.mxu0 0.0
    %4451 = vmatpush1.msra.mxu0 0.0
    %4452 = vmatprep.subr.mxu0 0.0
    %4453 = vmatpush1.msra.mxu0 0.0
    %4454 = vmatprep.subr.mxu0 0.0
    %4455 = vmatpush1.msra.mxu0 0.0
    %4456 = vmatprep.subr.mxu0 0.0
    %4457 = vmatpush1.msra.mxu0 0.0
    %4458 = vmatprep.subr.mxu0 0.0
    %4459 = vmatpush1.msra.mxu0 0.0
    %4460 = vmatprep.subr.mxu0 0.0
    %4461 = vmatpush1.msra.mxu0 0.0
    %4462 = vmatprep.subr.mxu0 0.0
    %4463 = vmatpush1.msra.mxu0 0.0
    %4464 = vmatprep.subr.mxu0 0.0
    %4465 = vmatpush1.msra.mxu0 0.0
    %4466 = vmatprep.mubr.f32.mxu0 0.0
    %4467 = vmatmul.mubr.f32.gmra.mrb[0].mxu0 %v4400
    %v4468 = vpop.f32.mrb[0].mxu0
    %v4469 = vadd.f32 0.0, %v4468
    %v4470 = vpop.f32.mrb[0].mxu0
    %4471 = vdwg.mxu0
    %v4472 = vadd.f32 %v4377, %v4469
    %v4473 = vld [vmem:[#allocation7 + $0x14] sm:$0x1]
    %v4474 = vld [vmem:[#allocation7 + $0x34] sm:$0x1]
    %s4475 = scalar_lea.vmem %s7, 2560
    %v4476 = vld [vmem:[%s4475] sm:$0xff]
    %v4477 = vld [vmem:[%s4475 + $0x8] sm:$0xff]
    %v4478 = vld [vmem:[%s4475 + $0x10] sm:$0xff]
    %v4479 = vld [vmem:[%s4475 + $0x18] sm:$0xff]
    %v4480 = vld [vmem:[%s4475 + $0x20] sm:$0xff]
    %v4481 = vld [vmem:[%s4475 + $0x28] sm:$0xff]
    %v4482 = vld [vmem:[%s4475 + $0x30] sm:$0xff]
    %v4483 = vld [vmem:[%s4475 + $0x38] sm:$0xff]
    %v4484 = vld [vmem:[%s4475 + $0x40] sm:$0xff]
    %v4485 = vld [vmem:[%s4475 + $0x48] sm:$0xff]
    %v4486 = vld [vmem:[%s4475 + $0x50] sm:$0xff]
    %v4487 = vld [vmem:[%s4475 + $0x58] sm:$0xff]
    %v4488 = vld [vmem:[%s4475 + $0x60] sm:$0xff]
    %v4489 = vld [vmem:[%s4475 + $0x68] sm:$0xff]
    %v4490 = vld [vmem:[%s4475 + $0x70] sm:$0xff]
    %v4491 = vld [vmem:[%s4475 + $0x78] sm:$0xff]
    %v4494 = vrot.slane %v4474, 7
    %v4495 = vsel %vm2594, %v4494, %v4473
    %4497 = vmatprep.subr.mxu0 0.0
    %4498 = vmatpush1.msra.mxu0 %v4476
    %4499 = vmatprep.subr.mxu0 0.0
    %4500 = vmatpush1.msra.mxu0 %v4477
    %4501 = vmatprep.subr.mxu0 0.0
    %4502 = vmatpush1.msra.mxu0 %v4478
    %4503 = vmatprep.subr.mxu0 0.0
    %4504 = vmatpush1.msra.mxu0 %v4479
    %4505 = vmatprep.subr.mxu0 0.0
    %4506 = vmatpush1.msra.mxu0 %v4480
    %4507 = vmatprep.subr.mxu0 0.0
    %4508 = vmatpush1.msra.mxu0 %v4481
    %4509 = vmatprep.subr.mxu0 0.0
    %4510 = vmatpush1.msra.mxu0 %v4482
    %4511 = vmatprep.subr.mxu0 0.0
    %4512 = vmatpush1.msra.mxu0 %v4483
    %4513 = vmatprep.subr.mxu0 0.0
    %4514 = vmatpush1.msra.mxu0 %v4484
    %4515 = vmatprep.subr.mxu0 0.0
    %4516 = vmatpush1.msra.mxu0 %v4485
    %4517 = vmatprep.subr.mxu0 0.0
    %4518 = vmatpush1.msra.mxu0 %v4486
    %4519 = vmatprep.subr.mxu0 0.0
    %4520 = vmatpush1.msra.mxu0 %v4487
    %4521 = vmatprep.subr.mxu0 0.0
    %4522 = vmatpush1.msra.mxu0 %v4488
    %4523 = vmatprep.subr.mxu0 0.0
    %4524 = vmatpush1.msra.mxu0 %v4489
    %4525 = vmatprep.subr.mxu0 0.0
    %4526 = vmatpush1.msra.mxu0 %v4490
    %4527 = vmatprep.subr.mxu0 0.0
    %4528 = vmatpush1.msra.mxu0 %v4491
    %4529 = vmatprep.subr.mxu0 0.0
    %4530 = vmatpush1.msra.mxu0 0.0
    %4531 = vmatprep.subr.mxu0 0.0
    %4532 = vmatpush1.msra.mxu0 0.0
    %4533 = vmatprep.subr.mxu0 0.0
    %4534 = vmatpush1.msra.mxu0 0.0
    %4535 = vmatprep.subr.mxu0 0.0
    %4536 = vmatpush1.msra.mxu0 0.0
    %4537 = vmatprep.subr.mxu0 0.0
    %4538 = vmatpush1.msra.mxu0 0.0
    %4539 = vmatprep.subr.mxu0 0.0
    %4540 = vmatpush1.msra.mxu0 0.0
    %4541 = vmatprep.subr.mxu0 0.0
    %4542 = vmatpush1.msra.mxu0 0.0
    %4543 = vmatprep.subr.mxu0 0.0
    %4544 = vmatpush1.msra.mxu0 0.0
    %4545 = vmatprep.subr.mxu0 0.0
    %4546 = vmatpush1.msra.mxu0 0.0
    %4547 = vmatprep.subr.mxu0 0.0
    %4548 = vmatpush1.msra.mxu0 0.0
    %4549 = vmatprep.subr.mxu0 0.0
    %4550 = vmatpush1.msra.mxu0 0.0
    %4551 = vmatprep.subr.mxu0 0.0
    %4552 = vmatpush1.msra.mxu0 0.0
    %4553 = vmatprep.subr.mxu0 0.0
    %4554 = vmatpush1.msra.mxu0 0.0
    %4555 = vmatprep.subr.mxu0 0.0
    %4556 = vmatpush1.msra.mxu0 0.0
    %4557 = vmatprep.subr.mxu0 0.0
    %4558 = vmatpush1.msra.mxu0 0.0
    %4559 = vmatprep.subr.mxu0 0.0
    %4560 = vmatpush1.msra.mxu0 0.0
    %4561 = vmatprep.mubr.f32.mxu0 0.0
    %4562 = vmatmul.mubr.f32.gmra.mrb[0].mxu0 %v4495
    %v4563 = vpop.f32.mrb[0].mxu0
    %v4564 = vadd.f32 0.0, %v4563
    %v4565 = vpop.f32.mrb[0].mxu0
    %4566 = vdwg.mxu0
    %v4567 = vadd.f32 %v4472, %v4564
    %v4568 = vld [vmem:[#allocation7 + $0x15] sm:$0x1]
    %v4569 = vld [vmem:[#allocation7 + $0x35] sm:$0x1]
    %s4570 = scalar_lea.vmem %s7, 2688
    %v4571 = vld [vmem:[%s4570] sm:$0xff]
    %v4572 = vld [vmem:[%s4570 + $0x8] sm:$0xff]
    %v4573 = vld [vmem:[%s4570 + $0x10] sm:$0xff]
    %v4574 = vld [vmem:[%s4570 + $0x18] sm:$0xff]
    %v4575 = vld [vmem:[%s4570 + $0x20] sm:$0xff]
    %v4576 = vld [vmem:[%s4570 + $0x28] sm:$0xff]
    %v4577 = vld [vmem:[%s4570 + $0x30] sm:$0xff]
    %v4578 = vld [vmem:[%s4570 + $0x38] sm:$0xff]
    %v4579 = vld [vmem:[%s4570 + $0x40] sm:$0xff]
    %v4580 = vld [vmem:[%s4570 + $0x48] sm:$0xff]
    %v4581 = vld [vmem:[%s4570 + $0x50] sm:$0xff]
    %v4582 = vld [vmem:[%s4570 + $0x58] sm:$0xff]
    %v4583 = vld [vmem:[%s4570 + $0x60] sm:$0xff]
    %v4584 = vld [vmem:[%s4570 + $0x68] sm:$0xff]
    %v4585 = vld [vmem:[%s4570 + $0x70] sm:$0xff]
    %v4586 = vld [vmem:[%s4570 + $0x78] sm:$0xff]
    %v4589 = vrot.slane %v4569, 7
    %v4590 = vsel %vm2594, %v4589, %v4568
    %4592 = vmatprep.subr.mxu0 0.0
    %4593 = vmatpush1.msra.mxu0 %v4571
    %4594 = vmatprep.subr.mxu0 0.0
    %4595 = vmatpush1.msra.mxu0 %v4572
    %4596 = vmatprep.subr.mxu0 0.0
    %4597 = vmatpush1.msra.mxu0 %v4573
    %4598 = vmatprep.subr.mxu0 0.0
    %4599 = vmatpush1.msra.mxu0 %v4574
    %4600 = vmatprep.subr.mxu0 0.0
    %4601 = vmatpush1.msra.mxu0 %v4575
    %4602 = vmatprep.subr.mxu0 0.0
    %4603 = vmatpush1.msra.mxu0 %v4576
    %4604 = vmatprep.subr.mxu0 0.0
    %4605 = vmatpush1.msra.mxu0 %v4577
    %4606 = vmatprep.subr.mxu0 0.0
    %4607 = vmatpush1.msra.mxu0 %v4578
    %4608 = vmatprep.subr.mxu0 0.0
    %4609 = vmatpush1.msra.mxu0 %v4579
    %4610 = vmatprep.subr.mxu0 0.0
    %4611 = vmatpush1.msra.mxu0 %v4580
    %4612 = vmatprep.subr.mxu0 0.0
    %4613 = vmatpush1.msra.mxu0 %v4581
    %4614 = vmatprep.subr.mxu0 0.0
    %4615 = vmatpush1.msra.mxu0 %v4582
    %4616 = vmatprep.subr.mxu0 0.0
    %4617 = vmatpush1.msra.mxu0 %v4583
    %4618 = vmatprep.subr.mxu0 0.0
    %4619 = vmatpush1.msra.mxu0 %v4584
    %4620 = vmatprep.subr.mxu0 0.0
    %4621 = vmatpush1.msra.mxu0 %v4585
    %4622 = vmatprep.subr.mxu0 0.0
    %4623 = vmatpush1.msra.mxu0 %v4586
    %4624 = vmatprep.subr.mxu0 0.0
    %4625 = vmatpush1.msra.mxu0 0.0
    %4626 = vmatprep.subr.mxu0 0.0
    %4627 = vmatpush1.msra.mxu0 0.0
    %4628 = vmatprep.subr.mxu0 0.0
    %4629 = vmatpush1.msra.mxu0 0.0
    %4630 = vmatprep.subr.mxu0 0.0
    %4631 = vmatpush1.msra.mxu0 0.0
    %4632 = vmatprep.subr.mxu0 0.0
    %4633 = vmatpush1.msra.mxu0 0.0
    %4634 = vmatprep.subr.mxu0 0.0
    %4635 = vmatpush1.msra.mxu0 0.0
    %4636 = vmatprep.subr.mxu0 0.0
    %4637 = vmatpush1.msra.mxu0 0.0
    %4638 = vmatprep.subr.mxu0 0.0
    %4639 = vmatpush1.msra.mxu0 0.0
    %4640 = vmatprep.subr.mxu0 0.0
    %4641 = vmatpush1.msra.mxu0 0.0
    %4642 = vmatprep.subr.mxu0 0.0
    %4643 = vmatpush1.msra.mxu0 0.0
    %4644 = vmatprep.subr.mxu0 0.0
    %4645 = vmatpush1.msra.mxu0 0.0
    %4646 = vmatprep.subr.mxu0 0.0
    %4647 = vmatpush1.msra.mxu0 0.0
    %4648 = vmatprep.subr.mxu0 0.0
    %4649 = vmatpush1.msra.mxu0 0.0
    %4650 = vmatprep.subr.mxu0 0.0
    %4651 = vmatpush1.msra.mxu0 0.0
    %4652 = vmatprep.subr.mxu0 0.0
    %4653 = vmatpush1.msra.mxu0 0.0
    %4654 = vmatprep.subr.mxu0 0.0
    %4655 = vmatpush1.msra.mxu0 0.0
    %4656 = vmatprep.mubr.f32.mxu0 0.0
    %4657 = vmatmul.mubr.f32.gmra.mrb[0].mxu0 %v4590
    %v4658 = vpop.f32.mrb[0].mxu0
    %v4659 = vadd.f32 0.0, %v4658
    %v4660 = vpop.f32.mrb[0].mxu0
    %4661 = vdwg.mxu0
    %v4662 = vadd.f32 %v4567, %v4659
    %v4663 = vld [vmem:[#allocation7 + $0x16] sm:$0x1]
    %v4664 = vld [vmem:[#allocation7 + $0x36] sm:$0x1]
    %s4665 = scalar_lea.vmem %s7, 2816
    %v4666 = vld [vmem:[%s4665] sm:$0xff]
    %v4667 = vld [vmem:[%s4665 + $0x8] sm:$0xff]
    %v4668 = vld [vmem:[%s4665 + $0x10] sm:$0xff]
    %v4669 = vld [vmem:[%s4665 + $0x18] sm:$0xff]
    %v4670 = vld [vmem:[%s4665 + $0x20] sm:$0xff]
    %v4671 = vld [vmem:[%s4665 + $0x28] sm:$0xff]
    %v4672 = vld [vmem:[%s4665 + $0x30] sm:$0xff]
    %v4673 = vld [vmem:[%s4665 + $0x38] sm:$0xff]
    %v4674 = vld [vmem:[%s4665 + $0x40] sm:$0xff]
    %v4675 = vld [vmem:[%s4665 + $0x48] sm:$0xff]
    %v4676 = vld [vmem:[%s4665 + $0x50] sm:$0xff]
    %v4677 = vld [vmem:[%s4665 + $0x58] sm:$0xff]
    %v4678 = vld [vmem:[%s4665 + $0x60] sm:$0xff]
    %v4679 = vld [vmem:[%s4665 + $0x68] sm:$0xff]
    %v4680 = vld [vmem:[%s4665 + $0x70] sm:$0xff]
    %v4681 = vld [vmem:[%s4665 + $0x78] sm:$0xff]
    %v4684 = vrot.slane %v4664, 7
    %v4685 = vsel %vm2594, %v4684, %v4663
    %4687 = vmatprep.subr.mxu0 0.0
    %4688 = vmatpush1.msra.mxu0 %v4666
    %4689 = vmatprep.subr.mxu0 0.0
    %4690 = vmatpush1.msra.mxu0 %v4667
    %4691 = vmatprep.subr.mxu0 0.0
    %4692 = vmatpush1.msra.mxu0 %v4668
    %4693 = vmatprep.subr.mxu0 0.0
    %4694 = vmatpush1.msra.mxu0 %v4669
    %4695 = vmatprep.subr.mxu0 0.0
    %4696 = vmatpush1.msra.mxu0 %v4670
    %4697 = vmatprep.subr.mxu0 0.0
    %4698 = vmatpush1.msra.mxu0 %v4671
    %4699 = vmatprep.subr.mxu0 0.0
    %4700 = vmatpush1.msra.mxu0 %v4672
    %4701 = vmatprep.subr.mxu0 0.0
    %4702 = vmatpush1.msra.mxu0 %v4673
    %4703 = vmatprep.subr.mxu0 0.0
    %4704 = vmatpush1.msra.mxu0 %v4674
    %4705 = vmatprep.subr.mxu0 0.0
    %4706 = vmatpush1.msra.mxu0 %v4675
    %4707 = vmatprep.subr.mxu0 0.0
    %4708 = vmatpush1.msra.mxu0 %v4676
    %4709 = vmatprep.subr.mxu0 0.0
    %4710 = vmatpush1.msra.mxu0 %v4677
    %4711 = vmatprep.subr.mxu0 0.0
    %4712 = vmatpush1.msra.mxu0 %v4678
    %4713 = vmatprep.subr.mxu0 0.0
    %4714 = vmatpush1.msra.mxu0 %v4679
    %4715 = vmatprep.subr.mxu0 0.0
    %4716 = vmatpush1.msra.mxu0 %v4680
    %4717 = vmatprep.subr.mxu0 0.0
    %4718 = vmatpush1.msra.mxu0 %v4681
    %4719 = vmatprep.subr.mxu0 0.0
    %4720 = vmatpush1.msra.mxu0 0.0
    %4721 = vmatprep.subr.mxu0 0.0
    %4722 = vmatpush1.msra.mxu0 0.0
    %4723 = vmatprep.subr.mxu0 0.0
    %4724 = vmatpush1.msra.mxu0 0.0
    %4725 = vmatprep.subr.mxu0 0.0
    %4726 = vmatpush1.msra.mxu0 0.0
    %4727 = vmatprep.subr.mxu0 0.0
    %4728 = vmatpush1.msra.mxu0 0.0
    %4729 = vmatprep.subr.mxu0 0.0
    %4730 = vmatpush1.msra.mxu0 0.0
    %4731 = vmatprep.subr.mxu0 0.0
    %4732 = vmatpush1.msra.mxu0 0.0
    %4733 = vmatprep.subr.mxu0 0.0
    %4734 = vmatpush1.msra.mxu0 0.0
    %4735 = vmatprep.subr.mxu0 0.0
    %4736 = vmatpush1.msra.mxu0 0.0
    %4737 = vmatprep.subr.mxu0 0.0
    %4738 = vmatpush1.msra.mxu0 0.0
    %4739 = vmatprep.subr.mxu0 0.0
    %4740 = vmatpush1.msra.mxu0 0.0
    %4741 = vmatprep.subr.mxu0 0.0
    %4742 = vmatpush1.msra.mxu0 0.0
    %4743 = vmatprep.subr.mxu0 0.0
    %4744 = vmatpush1.msra.mxu0 0.0
    %4745 = vmatprep.subr.mxu0 0.0
    %4746 = vmatpush1.msra.mxu0 0.0
    %4747 = vmatprep.subr.mxu0 0.0
    %4748 = vmatpush1.msra.mxu0 0.0
    %4749 = vmatprep.subr.mxu0 0.0
    %4750 = vmatpush1.msra.mxu0 0.0
    %4751 = vmatprep.mubr.f32.mxu0 0.0
    %4752 = vmatmul.mubr.f32.gmra.mrb[0].mxu0 %v4685
    %v4753 = vpop.f32.mrb[0].mxu0
    %v4754 = vadd.f32 0.0, %v4753
    %v4755 = vpop.f32.mrb[0].mxu0
    %4756 = vdwg.mxu0
    %v4757 = vadd.f32 %v4662, %v4754
    %v4758 = vld [vmem:[#allocation7 + $0x17] sm:$0x1]
    %v4759 = vld [vmem:[#allocation7 + $0x37] sm:$0x1]
    %s4760 = scalar_lea.vmem %s7, 2944
    %v4761 = vld [vmem:[%s4760] sm:$0xff]
    %v4762 = vld [vmem:[%s4760 + $0x8] sm:$0xff]
    %v4763 = vld [vmem:[%s4760 + $0x10] sm:$0xff]
    %v4764 = vld [vmem:[%s4760 + $0x18] sm:$0xff]
    %v4765 = vld [vmem:[%s4760 + $0x20] sm:$0xff]
    %v4766 = vld [vmem:[%s4760 + $0x28] sm:$0xff]
    %v4767 = vld [vmem:[%s4760 + $0x30] sm:$0xff]
    %v4768 = vld [vmem:[%s4760 + $0x38] sm:$0xff]
    %v4769 = vld [vmem:[%s4760 + $0x40] sm:$0xff]
    %v4770 = vld [vmem:[%s4760 + $0x48] sm:$0xff]
    %v4771 = vld [vmem:[%s4760 + $0x50] sm:$0xff]
    %v4772 = vld [vmem:[%s4760 + $0x58] sm:$0xff]
    %v4773 = vld [vmem:[%s4760 + $0x60] sm:$0xff]
    %v4774 = vld [vmem:[%s4760 + $0x68] sm:$0xff]
    %v4775 = vld [vmem:[%s4760 + $0x70] sm:$0xff]
    %v4776 = vld [vmem:[%s4760 + $0x78] sm:$0xff]
    %v4779 = vrot.slane %v4759, 7
    %v4780 = vsel %vm2594, %v4779, %v4758
    %4782 = vmatprep.subr.mxu0 0.0
    %4783 = vmatpush1.msra.mxu0 %v4761
    %4784 = vmatprep.subr.mxu0 0.0
    %4785 = vmatpush1.msra.mxu0 %v4762
    %4786 = vmatprep.subr.mxu0 0.0
    %4787 = vmatpush1.msra.mxu0 %v4763
    %4788 = vmatprep.subr.mxu0 0.0
    %4789 = vmatpush1.msra.mxu0 %v4764
    %4790 = vmatprep.subr.mxu0 0.0
    %4791 = vmatpush1.msra.mxu0 %v4765
    %4792 = vmatprep.subr.mxu0 0.0
    %4793 = vmatpush1.msra.mxu0 %v4766
    %4794 = vmatprep.subr.mxu0 0.0
    %4795 = vmatpush1.msra.mxu0 %v4767
    %4796 = vmatprep.subr.mxu0 0.0
    %4797 = vmatpush1.msra.mxu0 %v4768
    %4798 = vmatprep.subr.mxu0 0.0
    %4799 = vmatpush1.msra.mxu0 %v4769
    %4800 = vmatprep.subr.mxu0 0.0
    %4801 = vmatpush1.msra.mxu0 %v4770
    %4802 = vmatprep.subr.mxu0 0.0
    %4803 = vmatpush1.msra.mxu0 %v4771
    %4804 = vmatprep.subr.mxu0 0.0
    %4805 = vmatpush1.msra.mxu0 %v4772
    %4806 = vmatprep.subr.mxu0 0.0
    %4807 = vmatpush1.msra.mxu0 %v4773
    %4808 = vmatprep.subr.mxu0 0.0
    %4809 = vmatpush1.msra.mxu0 %v4774
    %4810 = vmatprep.subr.mxu0 0.0
    %4811 = vmatpush1.msra.mxu0 %v4775
    %4812 = vmatprep.subr.mxu0 0.0
    %4813 = vmatpush1.msra.mxu0 %v4776
    %4814 = vmatprep.subr.mxu0 0.0
    %4815 = vmatpush1.msra.mxu0 0.0
    %4816 = vmatprep.subr.mxu0 0.0
    %4817 = vmatpush1.msra.mxu0 0.0
    %4818 = vmatprep.subr.mxu0 0.0
    %4819 = vmatpush1.msra.mxu0 0.0
    %4820 = vmatprep.subr.mxu0 0.0
    %4821 = vmatpush1.msra.mxu0 0.0
    %4822 = vmatprep.subr.mxu0 0.0
    %4823 = vmatpush1.msra.mxu0 0.0
    %4824 = vmatprep.subr.mxu0 0.0
    %4825 = vmatpush1.msra.mxu0 0.0
    %4826 = vmatprep.subr.mxu0 0.0
    %4827 = vmatpush1.msra.mxu0 0.0
    %4828 = vmatprep.subr.mxu0 0.0
    %4829 = vmatpush1.msra.mxu0 0.0
    %4830 = vmatprep.subr.mxu0 0.0
    %4831 = vmatpush1.msra.mxu0 0.0
    %4832 = vmatprep.subr.mxu0 0.0
    %4833 = vmatpush1.msra.mxu0 0.0
    %4834 = vmatprep.subr.mxu0 0.0
    %4835 = vmatpush1.msra.mxu0 0.0
    %4836 = vmatprep.subr.mxu0 0.0
    %4837 = vmatpush1.msra.mxu0 0.0
    %4838 = vmatprep.subr.mxu0 0.0
    %4839 = vmatpush1.msra.mxu0 0.0
    %4840 = vmatprep.subr.mxu0 0.0
    %4841 = vmatpush1.msra.mxu0 0.0
    %4842 = vmatprep.subr.mxu0 0.0
    %4843 = vmatpush1.msra.mxu0 0.0
    %4844 = vmatprep.subr.mxu0 0.0
    %4845 = vmatpush1.msra.mxu0 0.0
    %4846 = vmatprep.mubr.f32.mxu0 0.0
    %4847 = vmatmul.mubr.f32.gmra.mrb[0].mxu0 %v4780
    %v4848 = vpop.f32.mrb[0].mxu0
    %v4849 = vadd.f32 0.0, %v4848
    %v4850 = vpop.f32.mrb[0].mxu0
    %4851 = vdwg.mxu0
    %v4852 = vadd.f32 %v4757, %v4849
    %v4853 = vld [vmem:[#allocation7 + $0x18] sm:$0x1]
    %v4854 = vld [vmem:[#allocation7 + $0x38] sm:$0x1]
    %s4855 = scalar_lea.vmem %s7, 3072
    %v4856 = vld [vmem:[%s4855] sm:$0xff]
    %v4857 = vld [vmem:[%s4855 + $0x8] sm:$0xff]
    %v4858 = vld [vmem:[%s4855 + $0x10] sm:$0xff]
    %v4859 = vld [vmem:[%s4855 + $0x18] sm:$0xff]
    %v4860 = vld [vmem:[%s4855 + $0x20] sm:$0xff]
    %v4861 = vld [vmem:[%s4855 + $0x28] sm:$0xff]
    %v4862 = vld [vmem:[%s4855 + $0x30] sm:$0xff]
    %v4863 = vld [vmem:[%s4855 + $0x38] sm:$0xff]
    %v4864 = vld [vmem:[%s4855 + $0x40] sm:$0xff]
    %v4865 = vld [vmem:[%s4855 + $0x48] sm:$0xff]
    %v4866 = vld [vmem:[%s4855 + $0x50] sm:$0xff]
    %v4867 = vld [vmem:[%s4855 + $0x58] sm:$0xff]
    %v4868 = vld [vmem:[%s4855 + $0x60] sm:$0xff]
    %v4869 = vld [vmem:[%s4855 + $0x68] sm:$0xff]
    %v4870 = vld [vmem:[%s4855 + $0x70] sm:$0xff]
    %v4871 = vld [vmem:[%s4855 + $0x78] sm:$0xff]
    %v4874 = vrot.slane %v4854, 7
    %v4875 = vsel %vm2594, %v4874, %v4853
    %4877 = vmatprep.subr.mxu0 0.0
    %4878 = vmatpush1.msra.mxu0 %v4856
    %4879 = vmatprep.subr.mxu0 0.0
    %4880 = vmatpush1.msra.mxu0 %v4857
    %4881 = vmatprep.subr.mxu0 0.0
    %4882 = vmatpush1.msra.mxu0 %v4858
    %4883 = vmatprep.subr.mxu0 0.0
    %4884 = vmatpush1.msra.mxu0 %v4859
    %4885 = vmatprep.subr.mxu0 0.0
    %4886 = vmatpush1.msra.mxu0 %v4860
    %4887 = vmatprep.subr.mxu0 0.0
    %4888 = vmatpush1.msra.mxu0 %v4861
    %4889 = vmatprep.subr.mxu0 0.0
    %4890 = vmatpush1.msra.mxu0 %v4862
    %4891 = vmatprep.subr.mxu0 0.0
    %4892 = vmatpush1.msra.mxu0 %v4863
    %4893 = vmatprep.subr.mxu0 0.0
    %4894 = vmatpush1.msra.mxu0 %v4864
    %4895 = vmatprep.subr.mxu0 0.0
    %4896 = vmatpush1.msra.mxu0 %v4865
    %4897 = vmatprep.subr.mxu0 0.0
    %4898 = vmatpush1.msra.mxu0 %v4866
    %4899 = vmatprep.subr.mxu0 0.0
    %4900 = vmatpush1.msra.mxu0 %v4867
    %4901 = vmatprep.subr.mxu0 0.0
    %4902 = vmatpush1.msra.mxu0 %v4868
    %4903 = vmatprep.subr.mxu0 0.0
    %4904 = vmatpush1.msra.mxu0 %v4869
    %4905 = vmatprep.subr.mxu0 0.0
    %4906 = vmatpush1.msra.mxu0 %v4870
    %4907 = vmatprep.subr.mxu0 0.0
    %4908 = vmatpush1.msra.mxu0 %v4871
    %4909 = vmatprep.subr.mxu0 0.0
    %4910 = vmatpush1.msra.mxu0 0.0
    %4911 = vmatprep.subr.mxu0 0.0
    %4912 = vmatpush1.msra.mxu0 0.0
    %4913 = vmatprep.subr.mxu0 0.0
    %4914 = vmatpush1.msra.mxu0 0.0
    %4915 = vmatprep.subr.mxu0 0.0
    %4916 = vmatpush1.msra.mxu0 0.0
    %4917 = vmatprep.subr.mxu0 0.0
    %4918 = vmatpush1.msra.mxu0 0.0
    %4919 = vmatprep.subr.mxu0 0.0
    %4920 = vmatpush1.msra.mxu0 0.0
    %4921 = vmatprep.subr.mxu0 0.0
    %4922 = vmatpush1.msra.mxu0 0.0
    %4923 = vmatprep.subr.mxu0 0.0
    %4924 = vmatpush1.msra.mxu0 0.0
    %4925 = vmatprep.subr.mxu0 0.0
    %4926 = vmatpush1.msra.mxu0 0.0
    %4927 = vmatprep.subr.mxu0 0.0
    %4928 = vmatpush1.msra.mxu0 0.0
    %4929 = vmatprep.subr.mxu0 0.0
    %4930 = vmatpush1.msra.mxu0 0.0
    %4931 = vmatprep.subr.mxu0 0.0
    %4932 = vmatpush1.msra.mxu0 0.0
    %4933 = vmatprep.subr.mxu0 0.0
    %4934 = vmatpush1.msra.mxu0 0.0
    %4935 = vmatprep.subr.mxu0 0.0
    %4936 = vmatpush1.msra.mxu0 0.0
    %4937 = vmatprep.subr.mxu0 0.0
    %4938 = vmatpush1.msra.mxu0 0.0
    %4939 = vmatprep.subr.mxu0 0.0
    %4940 = vmatpush1.msra.mxu0 0.0
    %4941 = vmatprep.mubr.f32.mxu0 0.0
    %4942 = vmatmul.mubr.f32.gmra.mrb[0].mxu0 %v4875
    %v4943 = vpop.f32.mrb[0].mxu0
    %v4944 = vadd.f32 0.0, %v4943
    %v4945 = vpop.f32.mrb[0].mxu0
    %4946 = vdwg.mxu0
    %v4947 = vadd.f32 %v4852, %v4944
    %v4948 = vld [vmem:[#allocation7 + $0x19] sm:$0x1]
    %v4949 = vld [vmem:[#allocation7 + $0x39] sm:$0x1]
    %s4950 = scalar_lea.vmem %s7, 3200
    %v4951 = vld [vmem:[%s4950] sm:$0xff]
    %v4952 = vld [vmem:[%s4950 + $0x8] sm:$0xff]
    %v4953 = vld [vmem:[%s4950 + $0x10] sm:$0xff]
    %v4954 = vld [vmem:[%s4950 + $0x18] sm:$0xff]
    %v4955 = vld [vmem:[%s4950 + $0x20] sm:$0xff]
    %v4956 = vld [vmem:[%s4950 + $0x28] sm:$0xff]
    %v4957 = vld [vmem:[%s4950 + $0x30] sm:$0xff]
    %v4958 = vld [vmem:[%s4950 + $0x38] sm:$0xff]
    %v4959 = vld [vmem:[%s4950 + $0x40] sm:$0xff]
    %v4960 = vld [vmem:[%s4950 + $0x48] sm:$0xff]
    %v4961 = vld [vmem:[%s4950 + $0x50] sm:$0xff]
    %v4962 = vld [vmem:[%s4950 + $0x58] sm:$0xff]
    %v4963 = vld [vmem:[%s4950 + $0x60] sm:$0xff]
    %v4964 = vld [vmem:[%s4950 + $0x68] sm:$0xff]
    %v4965 = vld [vmem:[%s4950 + $0x70] sm:$0xff]
    %v4966 = vld [vmem:[%s4950 + $0x78] sm:$0xff]
    %v4969 = vrot.slane %v4949, 7
    %v4970 = vsel %vm2594, %v4969, %v4948
    %4972 = vmatprep.subr.mxu0 0.0
    %4973 = vmatpush1.msra.mxu0 %v4951
    %4974 = vmatprep.subr.mxu0 0.0
    %4975 = vmatpush1.msra.mxu0 %v4952
    %4976 = vmatprep.subr.mxu0 0.0
    %4977 = vmatpush1.msra.mxu0 %v4953
    %4978 = vmatprep.subr.mxu0 0.0
    %4979 = vmatpush1.msra.mxu0 %v4954
    %4980 = vmatprep.subr.mxu0 0.0
    %4981 = vmatpush1.msra.mxu0 %v4955
    %4982 = vmatprep.subr.mxu0 0.0
    %4983 = vmatpush1.msra.mxu0 %v4956
    %4984 = vmatprep.subr.mxu0 0.0
    %4985 = vmatpush1.msra.mxu0 %v4957
    %4986 = vmatprep.subr.mxu0 0.0
    %4987 = vmatpush1.msra.mxu0 %v4958
    %4988 = vmatprep.subr.mxu0 0.0
    %4989 = vmatpush1.msra.mxu0 %v4959
    %4990 = vmatprep.subr.mxu0 0.0
    %4991 = vmatpush1.msra.mxu0 %v4960
    %4992 = vmatprep.subr.mxu0 0.0
    %4993 = vmatpush1.msra.mxu0 %v4961
    %4994 = vmatprep.subr.mxu0 0.0
    %4995 = vmatpush1.msra.mxu0 %v4962
    %4996 = vmatprep.subr.mxu0 0.0
    %4997 = vmatpush1.msra.mxu0 %v4963
    %4998 = vmatprep.subr.mxu0 0.0
    %4999 = vmatpush1.msra.mxu0 %v4964
    %5000 = vmatprep.subr.mxu0 0.0
    %5001 = vmatpush1.msra.mxu0 %v4965
    %5002 = vmatprep.subr.mxu0 0.0
    %5003 = vmatpush1.msra.mxu0 %v4966
    %5004 = vmatprep.subr.mxu0 0.0
    %5005 = vmatpush1.msra.mxu0 0.0
    %5006 = vmatprep.subr.mxu0 0.0
    %5007 = vmatpush1.msra.mxu0 0.0
    %5008 = vmatprep.subr.mxu0 0.0
    %5009 = vmatpush1.msra.mxu0 0.0
    %5010 = vmatprep.subr.mxu0 0.0
    %5011 = vmatpush1.msra.mxu0 0.0
    %5012 = vmatprep.subr.mxu0 0.0
    %5013 = vmatpush1.msra.mxu0 0.0
    %5014 = vmatprep.subr.mxu0 0.0
    %5015 = vmatpush1.msra.mxu0 0.0
    %5016 = vmatprep.subr.mxu0 0.0
    %5017 = vmatpush1.msra.mxu0 0.0
    %5018 = vmatprep.subr.mxu0 0.0
    %5019 = vmatpush1.msra.mxu0 0.0
    %5020 = vmatprep.subr.mxu0 0.0
    %5021 = vmatpush1.msra.mxu0 0.0
    %5022 = vmatprep.subr.mxu0 0.0
    %5023 = vmatpush1.msra.mxu0 0.0
    %5024 = vmatprep.subr.mxu0 0.0
    %5025 = vmatpush1.msra.mxu0 0.0
    %5026 = vmatprep.subr.mxu0 0.0
    %5027 = vmatpush1.msra.mxu0 0.0
    %5028 = vmatprep.subr.mxu0 0.0
    %5029 = vmatpush1.msra.mxu0 0.0
    %5030 = vmatprep.subr.mxu0 0.0
    %5031 = vmatpush1.msra.mxu0 0.0
    %5032 = vmatprep.subr.mxu0 0.0
    %5033 = vmatpush1.msra.mxu0 0.0
    %5034 = vmatprep.subr.mxu0 0.0
    %5035 = vmatpush1.msra.mxu0 0.0
    %5036 = vmatprep.mubr.f32.mxu0 0.0
    %5037 = vmatmul.mubr.f32.gmra.mrb[0].mxu0 %v4970
    %v5038 = vpop.f32.mrb[0].mxu0
    %v5039 = vadd.f32 0.0, %v5038
    %v5040 = vpop.f32.mrb[0].mxu0
    %5041 = vdwg.mxu0
    %v5042 = vadd.f32 %v4947, %v5039
    %v5043 = vld [vmem:[#allocation7 + $0x1a] sm:$0x1]
    %v5044 = vld [vmem:[#allocation7 + $0x3a] sm:$0x1]
    %s5045 = scalar_lea.vmem %s7, 3328
    %v5046 = vld [vmem:[%s5045] sm:$0xff]
    %v5047 = vld [vmem:[%s5045 + $0x8] sm:$0xff]
    %v5048 = vld [vmem:[%s5045 + $0x10] sm:$0xff]
    %v5049 = vld [vmem:[%s5045 + $0x18] sm:$0xff]
    %v5050 = vld [vmem:[%s5045 + $0x20] sm:$0xff]
    %v5051 = vld [vmem:[%s5045 + $0x28] sm:$0xff]
    %v5052 = vld [vmem:[%s5045 + $0x30] sm:$0xff]
    %v5053 = vld [vmem:[%s5045 + $0x38] sm:$0xff]
    %v5054 = vld [vmem:[%s5045 + $0x40] sm:$0xff]
    %v5055 = vld [vmem:[%s5045 + $0x48] sm:$0xff]
    %v5056 = vld [vmem:[%s5045 + $0x50] sm:$0xff]
    %v5057 = vld [vmem:[%s5045 + $0x58] sm:$0xff]
    %v5058 = vld [vmem:[%s5045 + $0x60] sm:$0xff]
    %v5059 = vld [vmem:[%s5045 + $0x68] sm:$0xff]
    %v5060 = vld [vmem:[%s5045 + $0x70] sm:$0xff]
    %v5061 = vld [vmem:[%s5045 + $0x78] sm:$0xff]
    %v5064 = vrot.slane %v5044, 7
    %v5065 = vsel %vm2594, %v5064, %v5043
    %5067 = vmatprep.subr.mxu0 0.0
    %5068 = vmatpush1.msra.mxu0 %v5046
    %5069 = vmatprep.subr.mxu0 0.0
    %5070 = vmatpush1.msra.mxu0 %v5047
    %5071 = vmatprep.subr.mxu0 0.0
    %5072 = vmatpush1.msra.mxu0 %v5048
    %5073 = vmatprep.subr.mxu0 0.0
    %5074 = vmatpush1.msra.mxu0 %v5049
    %5075 = vmatprep.subr.mxu0 0.0
    %5076 = vmatpush1.msra.mxu0 %v5050
    %5077 = vmatprep.subr.mxu0 0.0
    %5078 = vmatpush1.msra.mxu0 %v5051
    %5079 = vmatprep.subr.mxu0 0.0
    %5080 = vmatpush1.msra.mxu0 %v5052
    %5081 = vmatprep.subr.mxu0 0.0
    %5082 = vmatpush1.msra.mxu0 %v5053
    %5083 = vmatprep.subr.mxu0 0.0
    %5084 = vmatpush1.msra.mxu0 %v5054
    %5085 = vmatprep.subr.mxu0 0.0
    %5086 = vmatpush1.msra.mxu0 %v5055
    %5087 = vmatprep.subr.mxu0 0.0
    %5088 = vmatpush1.msra.mxu0 %v5056
    %5089 = vmatprep.subr.mxu0 0.0
    %5090 = vmatpush1.msra.mxu0 %v5057
    %5091 = vmatprep.subr.mxu0 0.0
    %5092 = vmatpush1.msra.mxu0 %v5058
    %5093 = vmatprep.subr.mxu0 0.0
    %5094 = vmatpush1.msra.mxu0 %v5059
    %5095 = vmatprep.subr.mxu0 0.0
    %5096 = vmatpush1.msra.mxu0 %v5060
    %5097 = vmatprep.subr.mxu0 0.0
    %5098 = vmatpush1.msra.mxu0 %v5061
    %5099 = vmatprep.subr.mxu0 0.0
    %5100 = vmatpush1.msra.mxu0 0.0
    %5101 = vmatprep.subr.mxu0 0.0
    %5102 = vmatpush1.msra.mxu0 0.0
    %5103 = vmatprep.subr.mxu0 0.0
    %5104 = vmatpush1.msra.mxu0 0.0
    %5105 = vmatprep.subr.mxu0 0.0
    %5106 = vmatpush1.msra.mxu0 0.0
    %5107 = vmatprep.subr.mxu0 0.0
    %5108 = vmatpush1.msra.mxu0 0.0
    %5109 = vmatprep.subr.mxu0 0.0
    %5110 = vmatpush1.msra.mxu0 0.0
    %5111 = vmatprep.subr.mxu0 0.0
    %5112 = vmatpush1.msra.mxu0 0.0
    %5113 = vmatprep.subr.mxu0 0.0
    %5114 = vmatpush1.msra.mxu0 0.0
    %5115 = vmatprep.subr.mxu0 0.0
    %5116 = vmatpush1.msra.mxu0 0.0
    %5117 = vmatprep.subr.mxu0 0.0
    %5118 = vmatpush1.msra.mxu0 0.0
    %5119 = vmatprep.subr.mxu0 0.0
    %5120 = vmatpush1.msra.mxu0 0.0
    %5121 = vmatprep.subr.mxu0 0.0
    %5122 = vmatpush1.msra.mxu0 0.0
    %5123 = vmatprep.subr.mxu0 0.0
    %5124 = vmatpush1.msra.mxu0 0.0
    %5125 = vmatprep.subr.mxu0 0.0
    %5126 = vmatpush1.msra.mxu0 0.0
    %5127 = vmatprep.subr.mxu0 0.0
    %5128 = vmatpush1.msra.mxu0 0.0
    %5129 = vmatprep.subr.mxu0 0.0
    %5130 = vmatpush1.msra.mxu0 0.0
    %5131 = vmatprep.mubr.f32.mxu0 0.0
    %5132 = vmatmul.mubr.f32.gmra.mrb[0].mxu0 %v5065
    %v5133 = vpop.f32.mrb[0].mxu0
    %v5134 = vadd.f32 0.0, %v5133
    %v5135 = vpop.f32.mrb[0].mxu0
    %5136 = vdwg.mxu0
    %v5137 = vadd.f32 %v5042, %v5134
    %v5138 = vld [vmem:[#allocation7 + $0x1b] sm:$0x1]
    %v5139 = vld [vmem:[#allocation7 + $0x3b] sm:$0x1]
    %s5140 = scalar_lea.vmem %s7, 3456
    %v5141 = vld [vmem:[%s5140] sm:$0xff]
    %v5142 = vld [vmem:[%s5140 + $0x8] sm:$0xff]
    %v5143 = vld [vmem:[%s5140 + $0x10] sm:$0xff]
    %v5144 = vld [vmem:[%s5140 + $0x18] sm:$0xff]
    %v5145 = vld [vmem:[%s5140 + $0x20] sm:$0xff]
    %v5146 = vld [vmem:[%s5140 + $0x28] sm:$0xff]
    %v5147 = vld [vmem:[%s5140 + $0x30] sm:$0xff]
    %v5148 = vld [vmem:[%s5140 + $0x38] sm:$0xff]
    %v5149 = vld [vmem:[%s5140 + $0x40] sm:$0xff]
    %v5150 = vld [vmem:[%s5140 + $0x48] sm:$0xff]
    %v5151 = vld [vmem:[%s5140 + $0x50] sm:$0xff]
    %v5152 = vld [vmem:[%s5140 + $0x58] sm:$0xff]
    %v5153 = vld [vmem:[%s5140 + $0x60] sm:$0xff]
    %v5154 = vld [vmem:[%s5140 + $0x68] sm:$0xff]
    %v5155 = vld [vmem:[%s5140 + $0x70] sm:$0xff]
    %v5156 = vld [vmem:[%s5140 + $0x78] sm:$0xff]
    %v5159 = vrot.slane %v5139, 7
    %v5160 = vsel %vm2594, %v5159, %v5138
    %5162 = vmatprep.subr.mxu0 0.0
    %5163 = vmatpush1.msra.mxu0 %v5141
    %5164 = vmatprep.subr.mxu0 0.0
    %5165 = vmatpush1.msra.mxu0 %v5142
    %5166 = vmatprep.subr.mxu0 0.0
    %5167 = vmatpush1.msra.mxu0 %v5143
    %5168 = vmatprep.subr.mxu0 0.0
    %5169 = vmatpush1.msra.mxu0 %v5144
    %5170 = vmatprep.subr.mxu0 0.0
    %5171 = vmatpush1.msra.mxu0 %v5145
    %5172 = vmatprep.subr.mxu0 0.0
    %5173 = vmatpush1.msra.mxu0 %v5146
    %5174 = vmatprep.subr.mxu0 0.0
    %5175 = vmatpush1.msra.mxu0 %v5147
    %5176 = vmatprep.subr.mxu0 0.0
    %5177 = vmatpush1.msra.mxu0 %v5148
    %5178 = vmatprep.subr.mxu0 0.0
    %5179 = vmatpush1.msra.mxu0 %v5149
    %5180 = vmatprep.subr.mxu0 0.0
    %5181 = vmatpush1.msra.mxu0 %v5150
    %5182 = vmatprep.subr.mxu0 0.0
    %5183 = vmatpush1.msra.mxu0 %v5151
    %5184 = vmatprep.subr.mxu0 0.0
    %5185 = vmatpush1.msra.mxu0 %v5152
    %5186 = vmatprep.subr.mxu0 0.0
    %5187 = vmatpush1.msra.mxu0 %v5153
    %5188 = vmatprep.subr.mxu0 0.0
    %5189 = vmatpush1.msra.mxu0 %v5154
    %5190 = vmatprep.subr.mxu0 0.0
    %5191 = vmatpush1.msra.mxu0 %v5155
    %5192 = vmatprep.subr.mxu0 0.0
    %5193 = vmatpush1.msra.mxu0 %v5156
    %5194 = vmatprep.subr.mxu0 0.0
    %5195 = vmatpush1.msra.mxu0 0.0
    %5196 = vmatprep.subr.mxu0 0.0
    %5197 = vmatpush1.msra.mxu0 0.0
    %5198 = vmatprep.subr.mxu0 0.0
    %5199 = vmatpush1.msra.mxu0 0.0
    %5200 = vmatprep.subr.mxu0 0.0
    %5201 = vmatpush1.msra.mxu0 0.0
    %5202 = vmatprep.subr.mxu0 0.0
    %5203 = vmatpush1.msra.mxu0 0.0
    %5204 = vmatprep.subr.mxu0 0.0
    %5205 = vmatpush1.msra.mxu0 0.0
    %5206 = vmatprep.subr.mxu0 0.0
    %5207 = vmatpush1.msra.mxu0 0.0
    %5208 = vmatprep.subr.mxu0 0.0
    %5209 = vmatpush1.msra.mxu0 0.0
    %5210 = vmatprep.subr.mxu0 0.0
    %5211 = vmatpush1.msra.mxu0 0.0
    %5212 = vmatprep.subr.mxu0 0.0
    %5213 = vmatpush1.msra.mxu0 0.0
    %5214 = vmatprep.subr.mxu0 0.0
    %5215 = vmatpush1.msra.mxu0 0.0
    %5216 = vmatprep.subr.mxu0 0.0
    %5217 = vmatpush1.msra.mxu0 0.0
    %5218 = vmatprep.subr.mxu0 0.0
    %5219 = vmatpush1.msra.mxu0 0.0
    %5220 = vmatprep.subr.mxu0 0.0
    %5221 = vmatpush1.msra.mxu0 0.0
    %5222 = vmatprep.subr.mxu0 0.0
    %5223 = vmatpush1.msra.mxu0 0.0
    %5224 = vmatprep.subr.mxu0 0.0
    %5225 = vmatpush1.msra.mxu0 0.0
    %5226 = vmatprep.mubr.f32.mxu0 0.0
    %5227 = vmatmul.mubr.f32.gmra.mrb[0].mxu0 %v5160
    %v5228 = vpop.f32.mrb[0].mxu0
    %v5229 = vadd.f32 0.0, %v5228
    %v5230 = vpop.f32.mrb[0].mxu0
    %5231 = vdwg.mxu0
    %v5232 = vadd.f32 %v5137, %v5229
    %v5233 = vld [vmem:[#allocation7 + $0x1c] sm:$0x1]
    %v5234 = vld [vmem:[#allocation7 + $0x3c] sm:$0x1]
    %s5235 = scalar_lea.vmem %s7, 3584
    %v5236 = vld [vmem:[%s5235] sm:$0xff]
    %v5237 = vld [vmem:[%s5235 + $0x8] sm:$0xff]
    %v5238 = vld [vmem:[%s5235 + $0x10] sm:$0xff]
    %v5239 = vld [vmem:[%s5235 + $0x18] sm:$0xff]
    %v5240 = vld [vmem:[%s5235 + $0x20] sm:$0xff]
    %v5241 = vld [vmem:[%s5235 + $0x28] sm:$0xff]
    %v5242 = vld [vmem:[%s5235 + $0x30] sm:$0xff]
    %v5243 = vld [vmem:[%s5235 + $0x38] sm:$0xff]
    %v5244 = vld [vmem:[%s5235 + $0x40] sm:$0xff]
    %v5245 = vld [vmem:[%s5235 + $0x48] sm:$0xff]
    %v5246 = vld [vmem:[%s5235 + $0x50] sm:$0xff]
    %v5247 = vld [vmem:[%s5235 + $0x58] sm:$0xff]
    %v5248 = vld [vmem:[%s5235 + $0x60] sm:$0xff]
    %v5249 = vld [vmem:[%s5235 + $0x68] sm:$0xff]
    %v5250 = vld [vmem:[%s5235 + $0x70] sm:$0xff]
    %v5251 = vld [vmem:[%s5235 + $0x78] sm:$0xff]
    %v5254 = vrot.slane %v5234, 7
    %v5255 = vsel %vm2594, %v5254, %v5233
    %5257 = vmatprep.subr.mxu0 0.0
    %5258 = vmatpush1.msra.mxu0 %v5236
    %5259 = vmatprep.subr.mxu0 0.0
    %5260 = vmatpush1.msra.mxu0 %v5237
    %5261 = vmatprep.subr.mxu0 0.0
    %5262 = vmatpush1.msra.mxu0 %v5238
    %5263 = vmatprep.subr.mxu0 0.0
    %5264 = vmatpush1.msra.mxu0 %v5239
    %5265 = vmatprep.subr.mxu0 0.0
    %5266 = vmatpush1.msra.mxu0 %v5240
    %5267 = vmatprep.subr.mxu0 0.0
    %5268 = vmatpush1.msra.mxu0 %v5241
    %5269 = vmatprep.subr.mxu0 0.0
    %5270 = vmatpush1.msra.mxu0 %v5242
    %5271 = vmatprep.subr.mxu0 0.0
    %5272 = vmatpush1.msra.mxu0 %v5243
    %5273 = vmatprep.subr.mxu0 0.0
    %5274 = vmatpush1.msra.mxu0 %v5244
    %5275 = vmatprep.subr.mxu0 0.0
    %5276 = vmatpush1.msra.mxu0 %v5245
    %5277 = vmatprep.subr.mxu0 0.0
    %5278 = vmatpush1.msra.mxu0 %v5246
    %5279 = vmatprep.subr.mxu0 0.0
    %5280 = vmatpush1.msra.mxu0 %v5247
    %5281 = vmatprep.subr.mxu0 0.0
    %5282 = vmatpush1.msra.mxu0 %v5248
    %5283 = vmatprep.subr.mxu0 0.0
    %5284 = vmatpush1.msra.mxu0 %v5249
    %5285 = vmatprep.subr.mxu0 0.0
    %5286 = vmatpush1.msra.mxu0 %v5250
    %5287 = vmatprep.subr.mxu0 0.0
    %5288 = vmatpush1.msra.mxu0 %v5251
    %5289 = vmatprep.subr.mxu0 0.0
    %5290 = vmatpush1.msra.mxu0 0.0
    %5291 = vmatprep.subr.mxu0 0.0
    %5292 = vmatpush1.msra.mxu0 0.0
    %5293 = vmatprep.subr.mxu0 0.0
    %5294 = vmatpush1.msra.mxu0 0.0
    %5295 = vmatprep.subr.mxu0 0.0
    %5296 = vmatpush1.msra.mxu0 0.0
    %5297 = vmatprep.subr.mxu0 0.0
    %5298 = vmatpush1.msra.mxu0 0.0
    %5299 = vmatprep.subr.mxu0 0.0
    %5300 = vmatpush1.msra.mxu0 0.0
    %5301 = vmatprep.subr.mxu0 0.0
    %5302 = vmatpush1.msra.mxu0 0.0
    %5303 = vmatprep.subr.mxu0 0.0
    %5304 = vmatpush1.msra.mxu0 0.0
    %5305 = vmatprep.subr.mxu0 0.0
    %5306 = vmatpush1.msra.mxu0 0.0
    %5307 = vmatprep.subr.mxu0 0.0
    %5308 = vmatpush1.msra.mxu0 0.0
    %5309 = vmatprep.subr.mxu0 0.0
    %5310 = vmatpush1.msra.mxu0 0.0
    %5311 = vmatprep.subr.mxu0 0.0
    %5312 = vmatpush1.msra.mxu0 0.0
    %5313 = vmatprep.subr.mxu0 0.0
    %5314 = vmatpush1.msra.mxu0 0.0
    %5315 = vmatprep.subr.mxu0 0.0
    %5316 = vmatpush1.msra.mxu0 0.0
    %5317 = vmatprep.subr.mxu0 0.0
    %5318 = vmatpush1.msra.mxu0 0.0
    %5319 = vmatprep.subr.mxu0 0.0
    %5320 = vmatpush1.msra.mxu0 0.0
    %5321 = vmatprep.mubr.f32.mxu0 0.0
    %5322 = vmatmul.mubr.f32.gmra.mrb[0].mxu0 %v5255
    %v5323 = vpop.f32.mrb[0].mxu0
    %v5324 = vadd.f32 0.0, %v5323
    %v5325 = vpop.f32.mrb[0].mxu0
    %5326 = vdwg.mxu0
    %v5327 = vadd.f32 %v5232, %v5324
    %v5328 = vld [vmem:[%s9] sm:$0xff]
    %v5329 = vld [vmem:[%s9 + $0x8] sm:$0xff]
    %v5330 = vld [vmem:[%s9 + $0x10] sm:$0xff]
    %v5331 = vld [vmem:[%s9 + $0x18] sm:$0xff]
    %v5332 = vld [vmem:[%s9 + $0x20] sm:$0xff]
    %v5333 = vld [vmem:[%s9 + $0x28] sm:$0xff]
    %v5334 = vld [vmem:[%s9 + $0x30] sm:$0xff]
    %v5335 = vld [vmem:[%s9 + $0x38] sm:$0xff]
    %v5336 = vld [vmem:[%s10] sm:$0x1]
    %v5338 = vlaneseq
    %v5339 = vshrl.u32 %v5338, 7
    %v5340 = vsub.s32 0, %v5339
    %v5341 = vrot.slane %v5336, %v5340
    %vm5343 = vcmask 523264
    %v5345 = vsel %vm5343, %v5327, 0
    %5347 = vmatprep.subr.mxu0 0.0
    %5348 = vmatpush1.msra.mxu0 %v5328
    %5349 = vmatprep.subr.mxu0 0.0
    %5350 = vmatpush1.msra.mxu0 %v5329
    %5351 = vmatprep.subr.mxu0 0.0
    %5352 = vmatpush1.msra.mxu0 %v5330
    %5353 = vmatprep.subr.mxu0 0.0
    %5354 = vmatpush1.msra.mxu0 %v5331
    %5355 = vmatprep.subr.mxu0 0.0
    %5356 = vmatpush1.msra.mxu0 %v5332
    %5357 = vmatprep.subr.mxu0 0.0
    %5358 = vmatpush1.msra.mxu0 %v5333
    %5359 = vmatprep.subr.mxu0 0.0
    %5360 = vmatpush1.msra.mxu0 %v5334
    %5361 = vmatprep.subr.mxu0 0.0
    %5362 = vmatpush1.msra.mxu0 %v5335
    %5363 = vmatprep.subr.mxu0 0.0
    %5364 = vmatpush1.msra.mxu0 0.0
    %5365 = vmatprep.subr.mxu0 0.0
    %5366 = vmatpush1.msra.mxu0 0.0
    %5367 = vmatprep.subr.mxu0 0.0
    %5368 = vmatpush1.msra.mxu0 0.0
    %5369 = vmatprep.subr.mxu0 0.0
    %5370 = vmatpush1.msra.mxu0 0.0
    %5371 = vmatprep.subr.mxu0 0.0
    %5372 = vmatpush1.msra.mxu0 0.0
    %5373 = vmatprep.subr.mxu0 0.0
    %5374 = vmatpush1.msra.mxu0 0.0
    %5375 = vmatprep.subr.mxu0 0.0
    %5376 = vmatpush1.msra.mxu0 0.0
    %5377 = vmatprep.subr.mxu0 0.0
    %5378 = vmatpush1.msra.mxu0 0.0
    %5379 = vmatprep.subr.mxu0 0.0
    %5380 = vmatpush1.msra.mxu0 0.0
    %5381 = vmatprep.subr.mxu0 0.0
    %5382 = vmatpush1.msra.mxu0 0.0
    %5383 = vmatprep.subr.mxu0 0.0
    %5384 = vmatpush1.msra.mxu0 0.0
    %5385 = vmatprep.subr.mxu0 0.0
    %5386 = vmatpush1.msra.mxu0 0.0
    %5387 = vmatprep.subr.mxu0 0.0
    %5388 = vmatpush1.msra.mxu0 0.0
    %5389 = vmatprep.subr.mxu0 0.0
    %5390 = vmatpush1.msra.mxu0 0.0
    %5391 = vmatprep.subr.mxu0 0.0
    %5392 = vmatpush1.msra.mxu0 0.0
    %5393 = vmatprep.subr.mxu0 0.0
    %5394 = vmatpush1.msra.mxu0 0.0
    %5395 = vmatprep.subr.mxu0 0.0
    %5396 = vmatpush1.msra.mxu0 0.0
    %5397 = vmatprep.subr.mxu0 0.0
    %5398 = vmatpush1.msra.mxu0 0.0
    %5399 = vmatprep.subr.mxu0 0.0
    %5400 = vmatpush1.msra.mxu0 0.0
    %5401 = vmatprep.subr.mxu0 0.0
    %5402 = vmatpush1.msra.mxu0 0.0
    %5403 = vmatprep.subr.mxu0 0.0
    %5404 = vmatpush1.msra.mxu0 0.0
    %5405 = vmatprep.subr.mxu0 0.0
    %5406 = vmatpush1.msra.mxu0 0.0
    %5407 = vmatprep.subr.mxu0 0.0
    %5408 = vmatpush1.msra.mxu0 0.0
    %5409 = vmatprep.subr.mxu0 0.0
    %5410 = vmatpush1.msra.mxu0 0.0
    %5411 = vmatprep.mubr.f32.mxu0 0.0
    %5412 = vmatmul.mubr.f32.gmra.mrb[0].mxu0 %v5345
    %v5413 = vpop.f32.mrb[0].mxu0
    %v5414 = vadd.f32 %v5341, %v5413
    %v5415 = vpop.f32.mrb[0].mxu0
    %5416 = vdwg.mxu0
    %vm5417 = vcmask 517120
    %5418 = vst.msk [vmem:[#allocation8] sm:$0x3] %vm5417, %v5414
    // Predicated region
    $region53: #{tpu_custom_call.1} parent=1 // pred_check
      _
    $region54: #{tpu_custom_call.1} parent=1 // pred_check_branch
      %5420 = sbr.rel (0) target = $region56
    $region55: #{tpu_custom_call.1} parent=1 // pred_region
      %s5422 = ssub.s32 32, 32
      %5423 = vsyncadd [#allocation9], %s5422
      %s5425 = sshll.u32 [#allocation8], 4
      %s5426 = int_to_ptr.vmem [resolvable:$true] %s5425
      %5428 = dma.vmem_to_hbm [thread:$0]  %s5426, 32, %s11, [#allocation9]
    $region56: #{tpu_custom_call.1} parent=1 // pred_fallthru
      _
    // Predicated region
    $region57: #{tpu_custom_call.1} parent=1 // pred_check
      _
    $region58: #{tpu_custom_call.1} parent=1 // pred_check_branch
      %5430 = sbr.rel (0) target = $region60
    $region59: #{tpu_custom_call.1} parent=1 // pred_region
      %5431 = dma.done [#allocation9], 32
    $region60: #{tpu_custom_call.1} parent=1 // pred_fallthru
      _
    %5432 = vsyncpa [#allocation9], 1

</llo_original>
